<compile_context>
chip_gen: v7x
topology: tpu7x:2x2x1
jax: 0.10.0
libtpu: 0.0.40
codegen_flags: <defaults>
</compile_context>

<pallas_src>
import functools

import jax
import jax.numpy as jnp
import numpy as np
from jax import lax
from jax.experimental import pallas as pl
from jax.experimental.pallas import tpu as pltpu

LANE = 128


def _round_up(x, m):
    return (x + m - 1) // m * m


def _largest_divisor_leq(n, cap):
    for c in range(min(n, cap), 0, -1):
        if n % c == 0:
            return c
    return 1


# ----------------------------------------------------------------------------
# Tiled  y = [relu](x) @ w + b  kernel.  Used for the hoisted GRU input
# projection (relu=False) and the fused ReLU+Linear classifier head (relu=True).
# ----------------------------------------------------------------------------
def matmul_bias_kernel(x_ref, w_ref, b_ref, y_ref, *, relu):
    x = x_ref[...]
    if relu:
        x = jnp.maximum(x, 0.0)
    y = jnp.dot(x.astype(w_ref.dtype), w_ref[...],
                preferred_element_type=jnp.float32)
    y_ref[...] = (y + b_ref[...]).astype(y_ref.dtype)


def matmul_bias(x2d, w, b, *, out_dtype, relu=False, tm=256):
    """x2d: (M, K), w: (K, N), b: (1, N) -> (M, N). Tiles M; K/N are kept whole
    (GRU-sized K/N fit comfortably in VMEM on all generations)."""
    M, K = x2d.shape
    N = w.shape[1]
    if M <= tm:
        TM, Mp = M, M
    else:
        TM = tm                                  # multiple of 8
        Mp = _round_up(M, TM)
    if Mp != M:
        x2d = jnp.pad(x2d, ((0, Mp - M), (0, 0)))
    y = pl.pallas_call(
        functools.partial(matmul_bias_kernel, relu=relu),
        out_shape=jax.ShapeDtypeStruct((Mp, N), out_dtype),
        grid_spec=pltpu.PrefetchScalarGridSpec(
            num_scalar_prefetch=0,
            grid=(Mp // TM,),
            in_specs=[
                pl.BlockSpec((TM, K), lambda i: (i, 0)),
                pl.BlockSpec((K, N), lambda i: (0, 0)),
                pl.BlockSpec((1, N), lambda i: (0, 0)),
            ],
            out_specs=pl.BlockSpec((TM, N), lambda i: (i, 0)),
        ),
        compiler_params=pltpu.CompilerParams(
            dimension_semantics=("parallel",)),
    )(x2d, w, b)
    return y[:M] if Mp != M else y


# ----------------------------------------------------------------------------
# GRU recurrence kernel.  gi (= x @ W_ih^T + b_ih) is precomputed, so only the
# hidden projection remains on the serial critical path.  Gate order follows
# PyTorch: [r, z, n].  Grid = (batch_blocks "parallel", time_blocks "arbitrary"),
# each grid step processes a chunk of `tc` time steps with an unrolled loop.
# ----------------------------------------------------------------------------
def gru_rec_kernel(gi_ref, whh_ref, bhh_ref, h0_ref, out_ref, hT_ref,
                   h_scratch, *, tc, hid):
    tb = pl.program_id(1)

    @pl.when(tb == 0)
    def _():
        h_scratch[...] = h0_ref[...].astype(jnp.float32)

    # Hoist the bias broadcast out of the unrolled time loop.
    bhh = jnp.broadcast_to(bhh_ref[...].astype(jnp.float32),
                           (h_scratch.shape[0], 3 * hid))

    def step(i, h_prev):
        gi = gi_ref[i].astype(jnp.float32)                 # (TB, 3*Hp)
        gh = jnp.dot(h_prev.astype(whh_ref.dtype), whh_ref[...],
                     preferred_element_type=jnp.float32) + bhh
        # hid is a multiple of 128 -> lane-aligned gate slices.
        r = jax.nn.sigmoid(gi[:, :hid] + gh[:, :hid])
        z = jax.nn.sigmoid(gi[:, hid:2 * hid] + gh[:, hid:2 * hid])
        n = jnp.tanh(gi[:, 2 * hid:] + r * gh[:, 2 * hid:])
        h_new = (1.0 - z) * n + z * h_prev
        out_ref[i] = h_new.astype(out_ref.dtype)
        return h_new

    h_last = lax.fori_loop(0, tc, step, h_scratch[...], unroll=True)
    h_scratch[...] = h_last

    @pl.when(tb == pl.num_programs(1) - 1)
    def _():
        hT_ref[...] = h_last


def gru_recurrence(gi_tm, w_hh, b_hh, h0, *, out_dtype, tc_max=16):
    """gi_tm: (T, B, 3*Hp) time-major precomputed input projection.
    Returns (out (T, B, Hp) in out_dtype, h_T (B, Hp) f32)."""
    T, B, three_h = gi_tm.shape
    Hp = three_h // 3
    TC = _largest_divisor_leq(T, tc_max)          # time chunk per grid step
    TB = B // 2 if (B % 16 == 0) else B           # 2 batch blocks -> megacore on v7x
    n_bb, n_tb = B // TB, T // TC

    out, hT = pl.pallas_call(
        functools.partial(gru_rec_kernel, tc=TC, hid=Hp),
        out_shape=(jax.ShapeDtypeStruct((T, B, Hp), out_dtype),
                   jax.ShapeDtypeStruct((B, Hp), jnp.float32)),
        grid_spec=pltpu.PrefetchScalarGridSpec(
            num_scalar_prefetch=0,
            grid=(n_bb, n_tb),
            in_specs=[
                pl.BlockSpec((TC, TB, three_h), lambda bb, tb: (tb, bb, 0)),
                # NOTE: W_hh / b_hh / h0 are grid-invariant; for very large H
                # they could additionally be single-buffered (pl.Buffered(1))
                # or DMA'd once into scratch to halve weight VMEM on v7x.
                pl.BlockSpec((Hp, three_h), lambda bb, tb: (0, 0)),
                pl.BlockSpec((1, three_h), lambda bb, tb: (0, 0)),
                pl.BlockSpec((TB, Hp), lambda bb, tb: (bb, 0)),
            ],
            out_specs=(
                pl.BlockSpec((TC, TB, Hp), lambda bb, tb: (tb, bb, 0)),
                pl.BlockSpec((TB, Hp), lambda bb, tb: (bb, 0)),
            ),
            scratch_shapes=[pltpu.VMEM((TB, Hp), jnp.float32)],
        ),
        compiler_params=pltpu.CompilerParams(
            dimension_semantics=("parallel", "arbitrary")),  # recurrence serial in time
    )(gi_tm, w_hh, b_hh, h0)
    return out, hT


# ----------------------------------------------------------------------------
# RecNet forward: out, h = GRU(x, h); y = Linear(ReLU(out[:, -out_seq:, :]))
# ----------------------------------------------------------------------------
@functools.partial(jax.jit, static_argnames=("out_seq", "out_dim"))
def recnet_forward(x, h, params, *, out_seq, out_dim):
    B, T, _ = x.shape
    H = h.shape[-1]                            # unpadded hidden dim
    cdt = params["gru"][0][0].dtype            # compute dtype for MXU matmuls
    Hp = params["gru"][0][1].shape[0]          # padded hidden dim (multiple of 128)

    # Single small transpose of the raw input; inter-layer activations stay
    # time-major, so no further HBM-round-trip transposes are needed.
    layer_in = jnp.transpose(x, (1, 0, 2))                    # (T, B, D_in)
    h_pad = jnp.pad(h, ((0, 0), (0, 0), (0, Hp - H)))

    h_finals = []
    for l, (w_ih, w_hh, b_ih, b_hh) in enumerate(params["gru"]):
        Tt, Bb, Din = layer_in.shape
        # Hoisted input projection: one big matmul instead of T tiny ones.
        gi = matmul_bias(layer_in.reshape(Tt * Bb, Din), w_ih, b_ih, out_dtype=cdt)
        gi = gi.reshape(Tt, Bb, w_ih.shape[1])                # (T, B, 3*Hp)
        out_tm, hT = gru_recurrence(gi, w_hh, b_hh, h_pad[l], out_dtype=cdt)
        # TODO(synk): inter-layer dropout (drop_prob) only applies in PyTorch
        # training mode; eval-mode semantics (no dropout) are reproduced here.
        layer_in = out_tm
        h_finals.append(hT)

    # Slice the last out_seq steps BEFORE any transpose (time-major, tiny copy).
    out_last_tm = layer_in[T - out_seq:]                      # (out_seq, B, Hp)
    w_cls, b_cls = params["cls"]                              # (Hp, Np), (1, Np)
    y2d = matmul_bias(out_last_tm.reshape(out_seq * B, Hp), w_cls, b_cls,
                      out_dtype=jnp.float32, relu=True)       # fused ReLU + Linear
    Np = w_cls.shape[1]
    y = y2d.reshape(out_seq, B, Np).transpose(1, 0, 2)[:, :, :out_dim]
    h_out = jnp.stack(h_finals, axis=0)[:, :, :H]
    return y, h_out


# ----------------------------------------------------------------------------
# Parameter construction: raw (PyTorch-semantics, f32) + padded/cast kernel copy.
# ----------------------------------------------------------------------------
def init_params(key, inp_dim, hid_dim, out_dim, num_layers):
    k = 1.0 / np.sqrt(hid_dim)
    params = {"gru": []}
    for l in range(num_layers):
        d_in = inp_dim if l == 0 else hid_dim
        key, k1, k2, k3, k4 = jax.random.split(key, 5)
        w_ih_T = jax.random.uniform(k1, (d_in, 3 * hid_dim), jnp.float32, -k, k)
        w_hh_T = jax.random.uniform(k2, (hid_dim, 3 * hid_dim), jnp.float32, -k, k)
        b_ih = jax.random.uniform(k3, (1, 3 * hid_dim), jnp.float32, -k, k)
        b_hh = jax.random.uniform(k4, (1, 3 * hid_dim), jnp.float32, -k, k)
        params["gru"].append((w_ih_T, w_hh_T, b_ih, b_hh))
    key, k5, k6 = jax.random.split(key, 3)
    w_cls_T = jax.random.uniform(k5, (hid_dim, out_dim), jnp.float32, -k, k)
    b_cls = jax.random.uniform(k6, (1, out_dim), jnp.float32, -k, k)
    params["cls"] = (w_cls_T, b_cls)
    return params


def _pad_gate_cols(w, h, hp):
    """Pad the trailing 3*h gate axis to 3*hp, padding each gate block separately."""
    if hp == h:
        return w
    pads = [(0, 0)] * (w.ndim - 1) + [(0, hp - h)]
    parts = [jnp.pad(w[..., g * h:(g + 1) * h], pads) for g in range(3)]
    return jnp.concatenate(parts, axis=-1)


def prepare_params(raw, hid_dim, out_dim, compute_dtype=jnp.float32):
    """Pad hidden / output dims to lane (128) multiples and cast matmul weights
    to the compute dtype.  Padding is exact: padded hidden columns stay 0."""
    Hp = _round_up(hid_dim, LANE)
    Np = _round_up(out_dim, LANE)
    gru = []
    for l, (w_ih_T, w_hh_T, b_ih, b_hh) in enumerate(raw["gru"]):
        d_in = w_ih_T.shape[0]
        d_in_p = d_in if l == 0 else Hp          # layers >= 1 see padded hidden
        w_ih_p = jnp.pad(_pad_gate_cols(w_ih_T, hid_dim, Hp),
                         ((0, d_in_p - d_in), (0, 0)))
        w_hh_p = jnp.pad(_pad_gate_cols(w_hh_T, hid_dim, Hp),
                         ((0, Hp - hid_dim), (0, 0)))
        b_ih_p = _pad_gate_cols(b_ih, hid_dim, Hp)
        b_hh_p = _pad_gate_cols(b_hh, hid_dim, Hp)
        gru.append((w_ih_p.astype(compute_dtype), w_hh_p.astype(compute_dtype),
                    b_ih_p.astype(jnp.float32), b_hh_p.astype(jnp.float32)))
    w_cls_T, b_cls = raw["cls"]
    w_cls_p = jnp.pad(w_cls_T, ((0, Hp - hid_dim), (0, Np - out_dim)))
    b_cls_p = jnp.pad(b_cls, ((0, 0), (0, Np - out_dim)))
    return {"gru": gru,
            "cls": (w_cls_p.astype(compute_dtype), b_cls_p.astype(jnp.float32))}


# ----------------------------------------------------------------------------
# Pure-JAX reference (PyTorch GRU semantics).
# ----------------------------------------------------------------------------
def recnet_reference(x, h, raw, out_seq):
    B, T, _ = x.shape
    layer_in = x
    h_finals = []
    for l, (w_ih_T, w_hh_T, b_ih, b_hh) in enumerate(raw["gru"]):
        H = w_hh_T.shape[0]
        h_t = h[l]
        outs = []
        for t in range(T):
            x_t = layer_in[:, t, :]
            gi = x_t @ w_ih_T + b_ih
            gh = h_t @ w_hh_T + b_hh
            r = jax.nn.sigmoid(gi[:, :H] + gh[:, :H])
            z = jax.nn.sigmoid(gi[:, H:2 * H] + gh[:, H:2 * H])
            n = jnp.tanh(gi[:, 2 * H:] + r * gh[:, 2 * H:])
            h_t = (1.0 - z) * n + z * h_t
            outs.append(h_t)
        layer_in = jnp.stack(outs, axis=1)
        h_finals.append(h_t)
    out_last = jnp.maximum(layer_in[:, -out_seq:, :], 0.0)
    w_cls_T, b_cls = raw["cls"]
    y = out_last @ w_cls_T + b_cls
    return y, jnp.stack(h_finals, axis=0)


if __name__ == "__main__":
    inp_dim, hid_dim, out_dim = 4, 32, 4
    out_seq, num_layers = 3, 2
    B, T = 2, 8

    root = jax.random.PRNGKey(0)
    kx, kp = jax.random.split(root)
    x = jax.random.normal(kx, (B, T, inp_dim), jnp.float32)
    h0 = jnp.zeros((num_layers, B, hid_dim), jnp.float32)    # RecNet.initHidden
    raw = init_params(kp, inp_dim, hid_dim, out_dim, num_layers)

    y_ref, h_ref = recnet_reference(x, h0, raw, out_seq)

    # f32 path: tight check of kernel logic (padding is numerically exact).
    params_f32 = prepare_params(raw, hid_dim, out_dim, jnp.float32)
    y32, h32 = recnet_forward(x, h0, params_f32, out_seq=out_seq, out_dim=out_dim)
    jax.block_until_ready((y32, h32))
    assert y32.shape == (B, out_seq, out_dim)
    assert h32.shape == (num_layers, B, hid_dim)
    np.testing.assert_allclose(np.asarray(y32), np.asarray(y_ref), rtol=1e-5, atol=1e-5)
    np.testing.assert_allclose(np.asarray(h32), np.asarray(h_ref), rtol=1e-5, atol=1e-5)

    # bf16 weights/activations on the MXU, f32 accumulation & hidden carry
    # (sanity check only -- bf16 rounding means a loose tolerance).
    params_bf16 = prepare_params(raw, hid_dim, out_dim, jnp.bfloat16)
    y16, h16 = recnet_forward(x, h0, params_bf16, out_seq=out_seq, out_dim=out_dim)
    jax.block_until_ready((y16, h16))
    np.testing.assert_allclose(np.asarray(y16), np.asarray(y_ref), rtol=1e-1, atol=1e-1)
    np.testing.assert_allclose(np.asarray(h16), np.asarray(h_ref), rtol=1e-1, atol=1e-1)

    print("KERNEL_OK")
</pallas_src>

<mosaic_0001>
module attributes {stable_mosaic.version = 11 : i64} {
  func.func @matmul_bias_kernel(%arg0: i32, %arg1: memref<16x4xf32, #tpu.memory_space<vmem>>, %arg2: memref<4x384xf32, #tpu.memory_space<vmem>>, %arg3: memref<1x384xf32, #tpu.memory_space<vmem>>, %arg4: memref<16x384xf32, #tpu.memory_space<vmem>>) attributes {dimension_semantics = [#tpu.dimension_semantics<parallel>], iteration_bounds = array<i64: 1>, scalar_prefetch = 0 : i64, scratch_operands = 0 : i64, tpu.core_type = #tpu.core_type<tc>, window_params = [{transform_indices = @transform_0, window_bounds = array<i64: 16, 4>}, {pipeline_mode = #tpu.pipeline_mode<synchronous>, transform_indices = @transform_1, window_bounds = array<i64: 4, 384>}, {pipeline_mode = #tpu.pipeline_mode<synchronous>, transform_indices = @transform_2, window_bounds = array<i64: 1, 384>}, {transform_indices = @transform_3, window_bounds = array<i64: 16, 384>}]} {
    %c0 = arith.constant 0 : index
    %c0_0 = arith.constant 0 : index
    %0 = vector.load %arg1[%c0, %c0_0] : memref<16x4xf32, #tpu.memory_space<vmem>>, vector<16x4xf32>
    %c0_1 = arith.constant 0 : index
    %c0_2 = arith.constant 0 : index
    %1 = vector.load %arg2[%c0_1, %c0_2] : memref<4x384xf32, #tpu.memory_space<vmem>>, vector<4x384xf32>
    %cst = arith.constant dense<0.000000e+00> : vector<16x384xf32>
    %2 = tpu.matmul %0, %1, %cst {dimension_numbers = #tpu.dot_dimension_numbers<[1], [0], [0], [1], [0, 0, 1, 1], [], []>} : vector<16x4xf32>, vector<4x384xf32>, vector<16x384xf32> -> vector<16x384xf32>
    %c0_3 = arith.constant 0 : index
    %c0_4 = arith.constant 0 : index
    %3 = vector.load %arg3[%c0_3, %c0_4] : memref<1x384xf32, #tpu.memory_space<vmem>>, vector<1x384xf32>
    %4 = vector.broadcast %3 : vector<1x384xf32> to vector<16x384xf32>
    %5 = arith.addf %2, %4 : vector<16x384xf32>
    %c0_5 = arith.constant 0 : index
    %c0_6 = arith.constant 0 : index
    %6 = vector.load %arg4[%c0_5, %c0_6] : memref<16x384xf32, #tpu.memory_space<vmem>>, vector<16x384xf32>
    tpu.vector_store %arg4[%c0_5, %c0_6], %5 {strides = array<i32>} : memref<16x384xf32, #tpu.memory_space<vmem>>, vector<16x384xf32>,
    return
  }
  func.func @transform_0(%arg0: i32) -> (i32, i32) {
    %c0_i32 = arith.constant 0 : i32
    %c0_i32_0 = arith.constant 0 : i32
    return %arg0, %c0_i32 : i32, i32
  }
  func.func @transform_1(%arg0: i32) -> (i32, i32) {
    %c0_i32 = arith.constant 0 : i32
    %c0_i32_0 = arith.constant 0 : i32
    %c0_i32_1 = arith.constant 0 : i32
    return %c0_i32, %c0_i32_0 : i32, i32
  }
  func.func @transform_2(%arg0: i32) -> (i32, i32) {
    %c0_i32 = arith.constant 0 : i32
    %c0_i32_0 = arith.constant 0 : i32
    %c0_i32_1 = arith.constant 0 : i32
    return %c0_i32, %c0_i32_0 : i32, i32
  }
  func.func @transform_3(%arg0: i32) -> (i32, i32) {
    %c0_i32 = arith.constant 0 : i32
    %c0_i32_0 = arith.constant 0 : i32
    return %arg0, %c0_i32 : i32, i32
  }
}

module attributes {stable_mosaic.version = 11 : i64} {
  func.func @matmul_bias_kernel(%arg0: i32, %arg1: memref<16x128xf32, #tpu.memory_space<vmem>>, %arg2: memref<128x384xf32, #tpu.memory_space<vmem>>, %arg3: memref<1x384xf32, #tpu.memory_space<vmem>>, %arg4: memref<16x384xf32, #tpu.memory_space<vmem>>) attributes {dimension_semantics = [#tpu.dimension_semantics<parallel>], iteration_bounds = array<i64: 1>, scalar_prefetch = 0 : i64, scratch_operands = 0 : i64, tpu.core_type = #tpu.core_type<tc>, window_params = [{transform_indices = @transform_0, window_bounds = array<i64: 16, 128>}, {pipeline_mode = #tpu.pipeline_mode<synchronous>, transform_indices = @transform_1, window_bounds = array<i64: 128, 384>}, {pipeline_mode = #tpu.pipeline_mode<synchronous>, transform_indices = @transform_2, window_bounds = array<i64: 1, 384>}, {transform_indices = @transform_3, window_bounds = array<i64: 16, 384>}]} {
    %c0 = arith.constant 0 : index
    %c0_0 = arith.constant 0 : index
    %0 = vector.load %arg1[%c0, %c0_0] : memref<16x128xf32, #tpu.memory_space<vmem>>, vector<16x128xf32>
    %c0_1 = arith.constant 0 : index
    %c0_2 = arith.constant 0 : index
    %1 = vector.load %arg2[%c0_1, %c0_2] : memref<128x384xf32, #tpu.memory_space<vmem>>, vector<128x384xf32>
    %cst = arith.constant dense<0.000000e+00> : vector<16x384xf32>
    %2 = tpu.matmul %0, %1, %cst {dimension_numbers = #tpu.dot_dimension_numbers<[1], [0], [0], [1], [0, 0, 1, 1], [], []>} : vector<16x128xf32>, vector<128x384xf32>, vector<16x384xf32> -> vector<16x384xf32>
    %c0_3 = arith.constant 0 : index
    %c0_4 = arith.constant 0 : index
    %3 = vector.load %arg3[%c0_3, %c0_4] : memref<1x384xf32, #tpu.memory_space<vmem>>, vector<1x384xf32>
    %4 = vector.broadcast %3 : vector<1x384xf32> to vector<16x384xf32>
    %5 = arith.addf %2, %4 : vector<16x384xf32>
    %c0_5 = arith.constant 0 : index
    %c0_6 = arith.constant 0 : index
    %6 = vector.load %arg4[%c0_5, %c0_6] : memref<16x384xf32, #tpu.memory_space<vmem>>, vector<16x384xf32>
    tpu.vector_store %arg4[%c0_5, %c0_6], %5 {strides = array<i32>} : memref<16x384xf32, #tpu.memory_space<vmem>>, vector<16x384xf32>,
    return
  }
  func.func @transform_0(%arg0: i32) -> (i32, i32) {
    %c0_i32 = arith.constant 0 : i32
    %c0_i32_0 = arith.constant 0 : i32
    return %arg0, %c0_i32 : i32, i32
  }
  func.func @transform_1(%arg0: i32) -> (i32, i32) {
    %c0_i32 = arith.constant 0 : i32
    %c0_i32_0 = arith.constant 0 : i32
    %c0_i32_1 = arith.constant 0 : i32
    return %c0_i32, %c0_i32_0 : i32, i32
  }
  func.func @transform_2(%arg0: i32) -> (i32, i32) {
    %c0_i32 = arith.constant 0 : i32
    %c0_i32_0 = arith.constant 0 : i32
    %c0_i32_1 = arith.constant 0 : i32
    return %c0_i32, %c0_i32_0 : i32, i32
  }
  func.func @transform_3(%arg0: i32) -> (i32, i32) {
    %c0_i32 = arith.constant 0 : i32
    %c0_i32_0 = arith.constant 0 : i32
    return %arg0, %c0_i32 : i32, i32
  }
}

module attributes {stable_mosaic.version = 11 : i64} {
  func.func @gru_rec_kernel(%arg0: i32, %arg1: i32, %arg2: memref<8x2x384xf32, #tpu.memory_space<vmem>>, %arg3: memref<128x384xf32, #tpu.memory_space<vmem>>, %arg4: memref<1x384xf32, #tpu.memory_space<vmem>>, %arg5: memref<2x128xf32, #tpu.memory_space<vmem>>, %arg6: memref<8x2x128xf32, #tpu.memory_space<vmem>>, %arg7: memref<2x128xf32, #tpu.memory_space<vmem>>, %arg8: memref<2x128xf32, #tpu.memory_space<vmem>>) attributes {dimension_semantics = [#tpu.dimension_semantics<parallel>, #tpu.dimension_semantics<arbitrary>], iteration_bounds = array<i64: 1, 1>, scalar_prefetch = 0 : i64, scratch_operands = 1 : i64, tpu.core_type = #tpu.core_type<tc>, window_params = [{transform_indices = @transform_0, window_bounds = array<i64: 8, 2, 384>}, {pipeline_mode = #tpu.pipeline_mode<synchronous>, transform_indices = @transform_1, window_bounds = array<i64: 128, 384>}, {pipeline_mode = #tpu.pipeline_mode<synchronous>, transform_indices = @transform_2, window_bounds = array<i64: 1, 384>}, {transform_indices = @transform_3, window_bounds = array<i64: 2, 128>}, {transform_indices = @transform_4, window_bounds = array<i64: 8, 2, 128>}, {transform_indices = @transform_5, window_bounds = array<i64: 2, 128>}]} {
    %c0_i32 = arith.constant 0 : i32
    %0 = arith.cmpi eq, %arg1, %c0_i32 : i32
    %1 = arith.extui %0 : i1 to i32
    %c0_i32_0 = arith.constant 0 : i32
    %2 = arith.cmpi ne, %1, %c0_i32_0 : i32
    scf.if %2 {
      %c0_88 = arith.constant 0 : index
      %c0_89 = arith.constant 0 : index
      %299 = vector.load %arg5[%c0_88, %c0_89] : memref<2x128xf32, #tpu.memory_space<vmem>>, vector<2x128xf32>
      %c0_90 = arith.constant 0 : index
      %c0_91 = arith.constant 0 : index
      %300 = vector.load %arg8[%c0_90, %c0_91] : memref<2x128xf32, #tpu.memory_space<vmem>>, vector<2x128xf32>
      tpu.vector_store %arg8[%c0_90, %c0_91], %299 {strides = array<i32>} : memref<2x128xf32, #tpu.memory_space<vmem>>, vector<2x128xf32>,
    } else {
    }
    %c0 = arith.constant 0 : index
    %c0_1 = arith.constant 0 : index
    %3 = vector.load %arg4[%c0, %c0_1] : memref<1x384xf32, #tpu.memory_space<vmem>>, vector<1x384xf32>
    %4 = vector.shape_cast %3 : vector<1x384xf32> to vector<1x384xf32>
    %5 = vector.broadcast %4 : vector<1x384xf32> to vector<2x384xf32>
    %c0_2 = arith.constant 0 : index
    %c0_3 = arith.constant 0 : index
    %6 = vector.load %arg8[%c0_2, %c0_3] : memref<2x128xf32, #tpu.memory_space<vmem>>, vector<2x128xf32>
    %c0_i32_4 = arith.constant 0 : i32
    %7 = arith.index_cast %c0_i32_4 : i32 to index
    %c0_5 = arith.constant 0 : index
    %c0_6 = arith.constant 0 : index
    %8 = vector.load %arg2[%7, %c0_5, %c0_6] : memref<8x2x384xf32, #tpu.memory_space<vmem>>, vector<1x2x384xf32>
    %9 = vector.shape_cast %8 : vector<1x2x384xf32> to vector<2x384xf32>
    %c0_7 = arith.constant 0 : index
    %c0_8 = arith.constant 0 : index
    %10 = vector.load %arg3[%c0_7, %c0_8] : memref<128x384xf32, #tpu.memory_space<vmem>>, vector<128x384xf32>
    %cst = arith.constant dense<0.000000e+00> : vector<2x384xf32>
    %11 = tpu.matmul %6, %10, %cst {dimension_numbers = #tpu.dot_dimension_numbers<[1], [0], [0], [1], [0, 0, 1, 1], [], []>} : vector<2x128xf32>, vector<128x384xf32>, vector<2x384xf32> -> vector<2x384xf32>
    %12 = arith.addf %11, %5 : vector<2x384xf32>
    %13 = vector.extract_strided_slice %9 {offsets = [0, 0], sizes = [2, 128], strides = [1, 1]} : vector<2x384xf32> to vector<2x128xf32>
    %14 = vector.extract_strided_slice %12 {offsets = [0, 0], sizes = [2, 128], strides = [1, 1]} : vector<2x384xf32> to vector<2x128xf32>
    %15 = arith.addf %13, %14 : vector<2x128xf32>
    %16 = arith.negf %15 : vector<2x128xf32>
    %17 = math.exp %16 : vector<2x128xf32>
    %cst_9 = arith.constant 1.000000e+00 : f32
    %18 = vector.broadcast %cst_9 : f32 to vector<2x128xf32>
    %19 = arith.addf %18, %17 : vector<2x128xf32>
    %20 = arith.divf %18, %19 : vector<2x128xf32>
    %21 = vector.extract_strided_slice %9 {offsets = [0, 128], sizes = [2, 128], strides = [1, 1]} : vector<2x384xf32> to vector<2x128xf32>
    %22 = vector.extract_strided_slice %12 {offsets = [0, 128], sizes = [2, 128], strides = [1, 1]} : vector<2x384xf32> to vector<2x128xf32>
    %23 = arith.addf %21, %22 : vector<2x128xf32>
    %24 = arith.negf %23 : vector<2x128xf32>
    %25 = math.exp %24 : vector<2x128xf32>
    %cst_10 = arith.constant 1.000000e+00 : f32
    %26 = vector.broadcast %cst_10 : f32 to vector<2x128xf32>
    %27 = arith.addf %26, %25 : vector<2x128xf32>
    %28 = arith.divf %26, %27 : vector<2x128xf32>
    %29 = vector.extract_strided_slice %9 {offsets = [0, 256], sizes = [2, 128], strides = [1, 1]} : vector<2x384xf32> to vector<2x128xf32>
    %30 = vector.extract_strided_slice %12 {offsets = [0, 256], sizes = [2, 128], strides = [1, 1]} : vector<2x384xf32> to vector<2x128xf32>
    %31 = arith.mulf %20, %30 : vector<2x128xf32>
    %32 = arith.addf %29, %31 : vector<2x128xf32>
    %33 = math.tanh %32 : vector<2x128xf32>
    %cst_11 = arith.constant 1.000000e+00 : f32
    %34 = vector.broadcast %cst_11 : f32 to vector<2x128xf32>
    %35 = arith.subf %34, %28 : vector<2x128xf32>
    %36 = arith.mulf %35, %33 : vector<2x128xf32>
    %37 = arith.mulf %28, %6 : vector<2x128xf32>
    %38 = arith.addf %36, %37 : vector<2x128xf32>
    %39 = arith.index_cast %c0_i32_4 : i32 to index
    %c0_12 = arith.constant 0 : index
    %c0_13 = arith.constant 0 : index
    %40 = vector.load %arg6[%39, %c0_12, %c0_13] : memref<8x2x128xf32, #tpu.memory_space<vmem>>, vector<1x2x128xf32>
    %41 = vector.shape_cast %40 : vector<1x2x128xf32> to vector<2x128xf32>
    %42 = vector.shape_cast %38 : vector<2x128xf32> to vector<1x2x128xf32>
    tpu.vector_store %arg6[%39, %c0_12, %c0_13], %42 {strides = array<i32>} : memref<8x2x128xf32, #tpu.memory_space<vmem>>, vector<1x2x128xf32>,
    %c1_i32 = arith.constant 1 : i32
    %43 = arith.index_cast %c1_i32 : i32 to index
    %c0_14 = arith.constant 0 : index
    %c0_15 = arith.constant 0 : index
    %44 = vector.load %arg2[%43, %c0_14, %c0_15] : memref<8x2x384xf32, #tpu.memory_space<vmem>>, vector<1x2x384xf32>
    %45 = vector.shape_cast %44 : vector<1x2x384xf32> to vector<2x384xf32>
    %c0_16 = arith.constant 0 : index
    %c0_17 = arith.constant 0 : index
    %46 = vector.load %arg3[%c0_16, %c0_17] : memref<128x384xf32, #tpu.memory_space<vmem>>, vector<128x384xf32>
    %cst_18 = arith.constant dense<0.000000e+00> : vector<2x384xf32>
    %47 = tpu.matmul %38, %46, %cst_18 {dimension_numbers = #tpu.dot_dimension_numbers<[1], [0], [0], [1], [0, 0, 1, 1], [], []>} : vector<2x128xf32>, vector<128x384xf32>, vector<2x384xf32> -> vector<2x384xf32>
    %48 = arith.addf %47, %5 : vector<2x384xf32>
    %49 = vector.extract_strided_slice %45 {offsets = [0, 0], sizes = [2, 128], strides = [1, 1]} : vector<2x384xf32> to vector<2x128xf32>
    %50 = vector.extract_strided_slice %48 {offsets = [0, 0], sizes = [2, 128], strides = [1, 1]} : vector<2x384xf32> to vector<2x128xf32>
    %51 = arith.addf %49, %50 : vector<2x128xf32>
    %52 = arith.negf %51 : vector<2x128xf32>
    %53 = math.exp %52 : vector<2x128xf32>
    %cst_19 = arith.constant 1.000000e+00 : f32
    %54 = vector.broadcast %cst_19 : f32 to vector<2x128xf32>
    %55 = arith.addf %54, %53 : vector<2x128xf32>
    %56 = arith.divf %54, %55 : vector<2x128xf32>
    %57 = vector.extract_strided_slice %45 {offsets = [0, 128], sizes = [2, 128], strides = [1, 1]} : vector<2x384xf32> to vector<2x128xf32>
    %58 = vector.extract_strided_slice %48 {offsets = [0, 128], sizes = [2, 128], strides = [1, 1]} : vector<2x384xf32> to vector<2x128xf32>
    %59 = arith.addf %57, %58 : vector<2x128xf32>
    %60 = arith.negf %59 : vector<2x128xf32>
    %61 = math.exp %60 : vector<2x128xf32>
    %cst_20 = arith.constant 1.000000e+00 : f32
    %62 = vector.broadcast %cst_20 : f32 to vector<2x128xf32>
    %63 = arith.addf %62, %61 : vector<2x128xf32>
    %64 = arith.divf %62, %63 : vector<2x128xf32>
    %65 = vector.extract_strided_slice %45 {offsets = [0, 256], sizes = [2, 128], strides = [1, 1]} : vector<2x384xf32> to vector<2x128xf32>
    %66 = vector.extract_strided_slice %48 {offsets = [0, 256], sizes = [2, 128], strides = [1, 1]} : vector<2x384xf32> to vector<2x128xf32>
    %67 = arith.mulf %56, %66 : vector<2x128xf32>
    %68 = arith.addf %65, %67 : vector<2x128xf32>
    %69 = math.tanh %68 : vector<2x128xf32>
    %cst_21 = arith.constant 1.000000e+00 : f32
    %70 = vector.broadcast %cst_21 : f32 to vector<2x128xf32>
    %71 = arith.subf %70, %64 : vector<2x128xf32>
    %72 = arith.mulf %71, %69 : vector<2x128xf32>
    %73 = arith.mulf %64, %38 : vector<2x128xf32>
    %74 = arith.addf %72, %73 : vector<2x128xf32>
    %75 = arith.index_cast %c1_i32 : i32 to index
    %c0_22 = arith.constant 0 : index
    %c0_23 = arith.constant 0 : index
    %76 = vector.load %arg6[%75, %c0_22, %c0_23] : memref<8x2x128xf32, #tpu.memory_space<vmem>>, vector<1x2x128xf32>
    %77 = vector.shape_cast %76 : vector<1x2x128xf32> to vector<2x128xf32>
    %78 = vector.shape_cast %74 : vector<2x128xf32> to vector<1x2x128xf32>
    tpu.vector_store %arg6[%75, %c0_22, %c0_23], %78 {strides = array<i32>} : memref<8x2x128xf32, #tpu.memory_space<vmem>>, vector<1x2x128xf32>,
    %c2_i32 = arith.constant 2 : i32
    %79 = arith.index_cast %c2_i32 : i32 to index
    %c0_24 = arith.constant 0 : index
    %c0_25 = arith.constant 0 : index
    %80 = vector.load %arg2[%79, %c0_24, %c0_25] : memref<8x2x384xf32, #tpu.memory_space<vmem>>, vector<1x2x384xf32>
    %81 = vector.shape_cast %80 : vector<1x2x384xf32> to vector<2x384xf32>
    %c0_26 = arith.constant 0 : index
    %c0_27 = arith.constant 0 : index
    %82 = vector.load %arg3[%c0_26, %c0_27] : memref<128x384xf32, #tpu.memory_space<vmem>>, vector<128x384xf32>
    %cst_28 = arith.constant dense<0.000000e+00> : vector<2x384xf32>
    %83 = tpu.matmul %74, %82, %cst_28 {dimension_numbers = #tpu.dot_dimension_numbers<[1], [0], [0], [1], [0, 0, 1, 1], [], []>} : vector<2x128xf32>, vector<128x384xf32>, vector<2x384xf32> -> vector<2x384xf32>
    %84 = arith.addf %83, %5 : vector<2x384xf32>
    %85 = vector.extract_strided_slice %81 {offsets = [0, 0], sizes = [2, 128], strides = [1, 1]} : vector<2x384xf32> to vector<2x128xf32>
    %86 = vector.extract_strided_slice %84 {offsets = [0, 0], sizes = [2, 128], strides = [1, 1]} : vector<2x384xf32> to vector<2x128xf32>
    %87 = arith.addf %85, %86 : vector<2x128xf32>
    %88 = arith.negf %87 : vector<2x128xf32>
    %89 = math.exp %88 : vector<2x128xf32>
    %cst_29 = arith.constant 1.000000e+00 : f32
    %90 = vector.broadcast %cst_29 : f32 to vector<2x128xf32>
    %91 = arith.addf %90, %89 : vector<2x128xf32>
    %92 = arith.divf %90, %91 : vector<2x128xf32>
    %93 = vector.extract_strided_slice %81 {offsets = [0, 128], sizes = [2, 128], strides = [1, 1]} : vector<2x384xf32> to vector<2x128xf32>
    %94 = vector.extract_strided_slice %84 {offsets = [0, 128], sizes = [2, 128], strides = [1, 1]} : vector<2x384xf32> to vector<2x128xf32>
    %95 = arith.addf %93, %94 : vector<2x128xf32>
    %96 = arith.negf %95 : vector<2x128xf32>
    %97 = math.exp %96 : vector<2x128xf32>
    %cst_30 = arith.constant 1.000000e+00 : f32
    %98 = vector.broadcast %cst_30 : f32 to vector<2x128xf32>
    %99 = arith.addf %98, %97 : vector<2x128xf32>
    %100 = arith.divf %98, %99 : vector<2x128xf32>
    %101 = vector.extract_strided_slice %81 {offsets = [0, 256], sizes = [2, 128], strides = [1, 1]} : vector<2x384xf32> to vector<2x128xf32>
    %102 = vector.extract_strided_slice %84 {offsets = [0, 256], sizes = [2, 128], strides = [1, 1]} : vector<2x384xf32> to vector<2x128xf32>
    %103 = arith.mulf %92, %102 : vector<2x128xf32>
    %104 = arith.addf %101, %103 : vector<2x128xf32>
    %105 = math.tanh %104 : vector<2x128xf32>
    %cst_31 = arith.constant 1.000000e+00 : f32
    %106 = vector.broadcast %cst_31 : f32 to vector<2x128xf32>
    %107 = arith.subf %106, %100 : vector<2x128xf32>
    %108 = arith.mulf %107, %105 : vector<2x128xf32>
    %109 = arith.mulf %100, %74 : vector<2x128xf32>
    %110 = arith.addf %108, %109 : vector<2x128xf32>
    %111 = arith.index_cast %c2_i32 : i32 to index
    %c0_32 = arith.constant 0 : index
    %c0_33 = arith.constant 0 : index
    %112 = vector.load %arg6[%111, %c0_32, %c0_33] : memref<8x2x128xf32, #tpu.memory_space<vmem>>, vector<1x2x128xf32>
    %113 = vector.shape_cast %112 : vector<1x2x128xf32> to vector<2x128xf32>
    %114 = vector.shape_cast %110 : vector<2x128xf32> to vector<1x2x128xf32>
    tpu.vector_store %arg6[%111, %c0_32, %c0_33], %114 {strides = array<i32>} : memref<8x2x128xf32, #tpu.memory_space<vmem>>, vector<1x2x128xf32>,
    %c3_i32 = arith.constant 3 : i32
    %115 = arith.index_cast %c3_i32 : i32 to index
    %c0_34 = arith.constant 0 : index
    %c0_35 = arith.constant 0 : index
    %116 = vector.load %arg2[%115, %c0_34, %c0_35] : memref<8x2x384xf32, #tpu.memory_space<vmem>>, vector<1x2x384xf32>
    %117 = vector.shape_cast %116 : vector<1x2x384xf32> to vector<2x384xf32>
    %c0_36 = arith.constant 0 : index
    %c0_37 = arith.constant 0 : index
    %118 = vector.load %arg3[%c0_36, %c0_37] : memref<128x384xf32, #tpu.memory_space<vmem>>, vector<128x384xf32>
    %cst_38 = arith.constant dense<0.000000e+00> : vector<2x384xf32>
    %119 = tpu.matmul %110, %118, %cst_38 {dimension_numbers = #tpu.dot_dimension_numbers<[1], [0], [0], [1], [0, 0, 1, 1], [], []>} : vector<2x128xf32>, vector<128x384xf32>, vector<2x384xf32> -> vector<2x384xf32>
    %120 = arith.addf %119, %5 : vector<2x384xf32>
    %121 = vector.extract_strided_slice %117 {offsets = [0, 0], sizes = [2, 128], strides = [1, 1]} : vector<2x384xf32> to vector<2x128xf32>
    %122 = vector.extract_strided_slice %120 {offsets = [0, 0], sizes = [2, 128], strides = [1, 1]} : vector<2x384xf32> to vector<2x128xf32>
    %123 = arith.addf %121, %122 : vector<2x128xf32>
    %124 = arith.negf %123 : vector<2x128xf32>
    %125 = math.exp %124 : vector<2x128xf32>
    %cst_39 = arith.constant 1.000000e+00 : f32
    %126 = vector.broadcast %cst_39 : f32 to vector<2x128xf32>
    %127 = arith.addf %126, %125 : vector<2x128xf32>
    %128 = arith.divf %126, %127 : vector<2x128xf32>
    %129 = vector.extract_strided_slice %117 {offsets = [0, 128], sizes = [2, 128], strides = [1, 1]} : vector<2x384xf32> to vector<2x128xf32>
    %130 = vector.extract_strided_slice %120 {offsets = [0, 128], sizes = [2, 128], strides = [1, 1]} : vector<2x384xf32> to vector<2x128xf32>
    %131 = arith.addf %129, %130 : vector<2x128xf32>
    %132 = arith.negf %131 : vector<2x128xf32>
    %133 = math.exp %132 : vector<2x128xf32>
    %cst_40 = arith.constant 1.000000e+00 : f32
    %134 = vector.broadcast %cst_40 : f32 to vector<2x128xf32>
    %135 = arith.addf %134, %133 : vector<2x128xf32>
    %136 = arith.divf %134, %135 : vector<2x128xf32>
    %137 = vector.extract_strided_slice %117 {offsets = [0, 256], sizes = [2, 128], strides = [1, 1]} : vector<2x384xf32> to vector<2x128xf32>
    %138 = vector.extract_strided_slice %120 {offsets = [0, 256], sizes = [2, 128], strides = [1, 1]} : vector<2x384xf32> to vector<2x128xf32>
    %139 = arith.mulf %128, %138 : vector<2x128xf32>
    %140 = arith.addf %137, %139 : vector<2x128xf32>
    %141 = math.tanh %140 : vector<2x128xf32>
    %cst_41 = arith.constant 1.000000e+00 : f32
    %142 = vector.broadcast %cst_41 : f32 to vector<2x128xf32>
    %143 = arith.subf %142, %136 : vector<2x128xf32>
    %144 = arith.mulf %143, %141 : vector<2x128xf32>
    %145 = arith.mulf %136, %110 : vector<2x128xf32>
    %146 = arith.addf %144, %145 : vector<2x128xf32>
    %147 = arith.index_cast %c3_i32 : i32 to index
    %c0_42 = arith.constant 0 : index
    %c0_43 = arith.constant 0 : index
    %148 = vector.load %arg6[%147, %c0_42, %c0_43] : memref<8x2x128xf32, #tpu.memory_space<vmem>>, vector<1x2x128xf32>
    %149 = vector.shape_cast %148 : vector<1x2x128xf32> to vector<2x128xf32>
    %150 = vector.shape_cast %146 : vector<2x128xf32> to vector<1x2x128xf32>
    tpu.vector_store %arg6[%147, %c0_42, %c0_43], %150 {strides = array<i32>} : memref<8x2x128xf32, #tpu.memory_space<vmem>>, vector<1x2x128xf32>,
    %c4_i32 = arith.constant 4 : i32
    %151 = arith.index_cast %c4_i32 : i32 to index
    %c0_44 = arith.constant 0 : index
    %c0_45 = arith.constant 0 : index
    %152 = vector.load %arg2[%151, %c0_44, %c0_45] : memref<8x2x384xf32, #tpu.memory_space<vmem>>, vector<1x2x384xf32>
    %153 = vector.shape_cast %152 : vector<1x2x384xf32> to vector<2x384xf32>
    %c0_46 = arith.constant 0 : index
    %c0_47 = arith.constant 0 : index
    %154 = vector.load %arg3[%c0_46, %c0_47] : memref<128x384xf32, #tpu.memory_space<vmem>>, vector<128x384xf32>
    %cst_48 = arith.constant dense<0.000000e+00> : vector<2x384xf32>
    %155 = tpu.matmul %146, %154, %cst_48 {dimension_numbers = #tpu.dot_dimension_numbers<[1], [0], [0], [1], [0, 0, 1, 1], [], []>} : vector<2x128xf32>, vector<128x384xf32>, vector<2x384xf32> -> vector<2x384xf32>
    %156 = arith.addf %155, %5 : vector<2x384xf32>
    %157 = vector.extract_strided_slice %153 {offsets = [0, 0], sizes = [2, 128], strides = [1, 1]} : vector<2x384xf32> to vector<2x128xf32>
    %158 = vector.extract_strided_slice %156 {offsets = [0, 0], sizes = [2, 128], strides = [1, 1]} : vector<2x384xf32> to vector<2x128xf32>
    %159 = arith.addf %157, %158 : vector<2x128xf32>
    %160 = arith.negf %159 : vector<2x128xf32>
    %161 = math.exp %160 : vector<2x128xf32>
    %cst_49 = arith.constant 1.000000e+00 : f32
    %162 = vector.broadcast %cst_49 : f32 to vector<2x128xf32>
    %163 = arith.addf %162, %161 : vector<2x128xf32>
    %164 = arith.divf %162, %163 : vector<2x128xf32>
    %165 = vector.extract_strided_slice %153 {offsets = [0, 128], sizes = [2, 128], strides = [1, 1]} : vector<2x384xf32> to vector<2x128xf32>
    %166 = vector.extract_strided_slice %156 {offsets = [0, 128], sizes = [2, 128], strides = [1, 1]} : vector<2x384xf32> to vector<2x128xf32>
    %167 = arith.addf %165, %166 : vector<2x128xf32>
    %168 = arith.negf %167 : vector<2x128xf32>
    %169 = math.exp %168 : vector<2x128xf32>
    %cst_50 = arith.constant 1.000000e+00 : f32
    %170 = vector.broadcast %cst_50 : f32 to vector<2x128xf32>
    %171 = arith.addf %170, %169 : vector<2x128xf32>
    %172 = arith.divf %170, %171 : vector<2x128xf32>
    %173 = vector.extract_strided_slice %153 {offsets = [0, 256], sizes = [2, 128], strides = [1, 1]} : vector<2x384xf32> to vector<2x128xf32>
    %174 = vector.extract_strided_slice %156 {offsets = [0, 256], sizes = [2, 128], strides = [1, 1]} : vector<2x384xf32> to vector<2x128xf32>
    %175 = arith.mulf %164, %174 : vector<2x128xf32>
    %176 = arith.addf %173, %175 : vector<2x128xf32>
    %177 = math.tanh %176 : vector<2x128xf32>
    %cst_51 = arith.constant 1.000000e+00 : f32
    %178 = vector.broadcast %cst_51 : f32 to vector<2x128xf32>
    %179 = arith.subf %178, %172 : vector<2x128xf32>
    %180 = arith.mulf %179, %177 : vector<2x128xf32>
    %181 = arith.mulf %172, %146 : vector<2x128xf32>
    %182 = arith.addf %180, %181 : vector<2x128xf32>
    %183 = arith.index_cast %c4_i32 : i32 to index
    %c0_52 = arith.constant 0 : index
    %c0_53 = arith.constant 0 : index
    %184 = vector.load %arg6[%183, %c0_52, %c0_53] : memref<8x2x128xf32, #tpu.memory_space<vmem>>, vector<1x2x128xf32>
    %185 = vector.shape_cast %184 : vector<1x2x128xf32> to vector<2x128xf32>
    %186 = vector.shape_cast %182 : vector<2x128xf32> to vector<1x2x128xf32>
    tpu.vector_store %arg6[%183, %c0_52, %c0_53], %186 {strides = array<i32>} : memref<8x2x128xf32, #tpu.memory_space<vmem>>, vector<1x2x128xf32>,
    %c5_i32 = arith.constant 5 : i32
    %187 = arith.index_cast %c5_i32 : i32 to index
    %c0_54 = arith.constant 0 : index
    %c0_55 = arith.constant 0 : index
    %188 = vector.load %arg2[%187, %c0_54, %c0_55] : memref<8x2x384xf32, #tpu.memory_space<vmem>>, vector<1x2x384xf32>
    %189 = vector.shape_cast %188 : vector<1x2x384xf32> to vector<2x384xf32>
    %c0_56 = arith.constant 0 : index
    %c0_57 = arith.constant 0 : index
    %190 = vector.load %arg3[%c0_56, %c0_57] : memref<128x384xf32, #tpu.memory_space<vmem>>, vector<128x384xf32>
    %cst_58 = arith.constant dense<0.000000e+00> : vector<2x384xf32>
    %191 = tpu.matmul %182, %190, %cst_58 {dimension_numbers = #tpu.dot_dimension_numbers<[1], [0], [0], [1], [0, 0, 1, 1], [], []>} : vector<2x128xf32>, vector<128x384xf32>, vector<2x384xf32> -> vector<2x384xf32>
    %192 = arith.addf %191, %5 : vector<2x384xf32>
    %193 = vector.extract_strided_slice %189 {offsets = [0, 0], sizes = [2, 128], strides = [1, 1]} : vector<2x384xf32> to vector<2x128xf32>
    %194 = vector.extract_strided_slice %192 {offsets = [0, 0], sizes = [2, 128], strides = [1, 1]} : vector<2x384xf32> to vector<2x128xf32>
    %195 = arith.addf %193, %194 : vector<2x128xf32>
    %196 = arith.negf %195 : vector<2x128xf32>
    %197 = math.exp %196 : vector<2x128xf32>
    %cst_59 = arith.constant 1.000000e+00 : f32
    %198 = vector.broadcast %cst_59 : f32 to vector<2x128xf32>
    %199 = arith.addf %198, %197 : vector<2x128xf32>
    %200 = arith.divf %198, %199 : vector<2x128xf32>
    %201 = vector.extract_strided_slice %189 {offsets = [0, 128], sizes = [2, 128], strides = [1, 1]} : vector<2x384xf32> to vector<2x128xf32>
    %202 = vector.extract_strided_slice %192 {offsets = [0, 128], sizes = [2, 128], strides = [1, 1]} : vector<2x384xf32> to vector<2x128xf32>
    %203 = arith.addf %201, %202 : vector<2x128xf32>
    %204 = arith.negf %203 : vector<2x128xf32>
    %205 = math.exp %204 : vector<2x128xf32>
    %cst_60 = arith.constant 1.000000e+00 : f32
    %206 = vector.broadcast %cst_60 : f32 to vector<2x128xf32>
    %207 = arith.addf %206, %205 : vector<2x128xf32>
    %208 = arith.divf %206, %207 : vector<2x128xf32>
    %209 = vector.extract_strided_slice %189 {offsets = [0, 256], sizes = [2, 128], strides = [1, 1]} : vector<2x384xf32> to vector<2x128xf32>
    %210 = vector.extract_strided_slice %192 {offsets = [0, 256], sizes = [2, 128], strides = [1, 1]} : vector<2x384xf32> to vector<2x128xf32>
    %211 = arith.mulf %200, %210 : vector<2x128xf32>
    %212 = arith.addf %209, %211 : vector<2x128xf32>
    %213 = math.tanh %212 : vector<2x128xf32>
    %cst_61 = arith.constant 1.000000e+00 : f32
    %214 = vector.broadcast %cst_61 : f32 to vector<2x128xf32>
    %215 = arith.subf %214, %208 : vector<2x128xf32>
    %216 = arith.mulf %215, %213 : vector<2x128xf32>
    %217 = arith.mulf %208, %182 : vector<2x128xf32>
    %218 = arith.addf %216, %217 : vector<2x128xf32>
    %219 = arith.index_cast %c5_i32 : i32 to index
    %c0_62 = arith.constant 0 : index
    %c0_63 = arith.constant 0 : index
    %220 = vector.load %arg6[%219, %c0_62, %c0_63] : memref<8x2x128xf32, #tpu.memory_space<vmem>>, vector<1x2x128xf32>
    %221 = vector.shape_cast %220 : vector<1x2x128xf32> to vector<2x128xf32>
    %222 = vector.shape_cast %218 : vector<2x128xf32> to vector<1x2x128xf32>
    tpu.vector_store %arg6[%219, %c0_62, %c0_63], %222 {strides = array<i32>} : memref<8x2x128xf32, #tpu.memory_space<vmem>>, vector<1x2x128xf32>,
    %c6_i32 = arith.constant 6 : i32
    %223 = arith.index_cast %c6_i32 : i32 to index
    %c0_64 = arith.constant 0 : index
    %c0_65 = arith.constant 0 : index
    %224 = vector.load %arg2[%223, %c0_64, %c0_65] : memref<8x2x384xf32, #tpu.memory_space<vmem>>, vector<1x2x384xf32>
    %225 = vector.shape_cast %224 : vector<1x2x384xf32> to vector<2x384xf32>
    %c0_66 = arith.constant 0 : index
    %c0_67 = arith.constant 0 : index
    %226 = vector.load %arg3[%c0_66, %c0_67] : memref<128x384xf32, #tpu.memory_space<vmem>>, vector<128x384xf32>
    %cst_68 = arith.constant dense<0.000000e+00> : vector<2x384xf32>
    %227 = tpu.matmul %218, %226, %cst_68 {dimension_numbers = #tpu.dot_dimension_numbers<[1], [0], [0], [1], [0, 0, 1, 1], [], []>} : vector<2x128xf32>, vector<128x384xf32>, vector<2x384xf32> -> vector<2x384xf32>
    %228 = arith.addf %227, %5 : vector<2x384xf32>
    %229 = vector.extract_strided_slice %225 {offsets = [0, 0], sizes = [2, 128], strides = [1, 1]} : vector<2x384xf32> to vector<2x128xf32>
    %230 = vector.extract_strided_slice %228 {offsets = [0, 0], sizes = [2, 128], strides = [1, 1]} : vector<2x384xf32> to vector<2x128xf32>
    %231 = arith.addf %229, %230 : vector<2x128xf32>
    %232 = arith.negf %231 : vector<2x128xf32>
    %233 = math.exp %232 : vector<2x128xf32>
    %cst_69 = arith.constant 1.000000e+00 : f32
    %234 = vector.broadcast %cst_69 : f32 to vector<2x128xf32>
    %235 = arith.addf %234, %233 : vector<2x128xf32>
    %236 = arith.divf %234, %235 : vector<2x128xf32>
    %237 = vector.extract_strided_slice %225 {offsets = [0, 128], sizes = [2, 128], strides = [1, 1]} : vector<2x384xf32> to vector<2x128xf32>
    %238 = vector.extract_strided_slice %228 {offsets = [0, 128], sizes = [2, 128], strides = [1, 1]} : vector<2x384xf32> to vector<2x128xf32>
    %239 = arith.addf %237, %238 : vector<2x128xf32>
    %240 = arith.negf %239 : vector<2x128xf32>
    %241 = math.exp %240 : vector<2x128xf32>
    %cst_70 = arith.constant 1.000000e+00 : f32
    %242 = vector.broadcast %cst_70 : f32 to vector<2x128xf32>
    %243 = arith.addf %242, %241 : vector<2x128xf32>
    %244 = arith.divf %242, %243 : vector<2x128xf32>
    %245 = vector.extract_strided_slice %225 {offsets = [0, 256], sizes = [2, 128], strides = [1, 1]} : vector<2x384xf32> to vector<2x128xf32>
    %246 = vector.extract_strided_slice %228 {offsets = [0, 256], sizes = [2, 128], strides = [1, 1]} : vector<2x384xf32> to vector<2x128xf32>
    %247 = arith.mulf %236, %246 : vector<2x128xf32>
    %248 = arith.addf %245, %247 : vector<2x128xf32>
    %249 = math.tanh %248 : vector<2x128xf32>
    %cst_71 = arith.constant 1.000000e+00 : f32
    %250 = vector.broadcast %cst_71 : f32 to vector<2x128xf32>
    %251 = arith.subf %250, %244 : vector<2x128xf32>
    %252 = arith.mulf %251, %249 : vector<2x128xf32>
    %253 = arith.mulf %244, %218 : vector<2x128xf32>
    %254 = arith.addf %252, %253 : vector<2x128xf32>
    %255 = arith.index_cast %c6_i32 : i32 to index
    %c0_72 = arith.constant 0 : index
    %c0_73 = arith.constant 0 : index
    %256 = vector.load %arg6[%255, %c0_72, %c0_73] : memref<8x2x128xf32, #tpu.memory_space<vmem>>, vector<1x2x128xf32>
    %257 = vector.shape_cast %256 : vector<1x2x128xf32> to vector<2x128xf32>
    %258 = vector.shape_cast %254 : vector<2x128xf32> to vector<1x2x128xf32>
    tpu.vector_store %arg6[%255, %c0_72, %c0_73], %258 {strides = array<i32>} : memref<8x2x128xf32, #tpu.memory_space<vmem>>, vector<1x2x128xf32>,
    %c7_i32 = arith.constant 7 : i32
    %259 = arith.index_cast %c7_i32 : i32 to index
    %c0_74 = arith.constant 0 : index
    %c0_75 = arith.constant 0 : index
    %260 = vector.load %arg2[%259, %c0_74, %c0_75] : memref<8x2x384xf32, #tpu.memory_space<vmem>>, vector<1x2x384xf32>
    %261 = vector.shape_cast %260 : vector<1x2x384xf32> to vector<2x384xf32>
    %c0_76 = arith.constant 0 : index
    %c0_77 = arith.constant 0 : index
    %262 = vector.load %arg3[%c0_76, %c0_77] : memref<128x384xf32, #tpu.memory_space<vmem>>, vector<128x384xf32>
    %cst_78 = arith.constant dense<0.000000e+00> : vector<2x384xf32>
    %263 = tpu.matmul %254, %262, %cst_78 {dimension_numbers = #tpu.dot_dimension_numbers<[1], [0], [0], [1], [0, 0, 1, 1], [], []>} : vector<2x128xf32>, vector<128x384xf32>, vector<2x384xf32> -> vector<2x384xf32>
    %264 = arith.addf %263, %5 : vector<2x384xf32>
    %265 = vector.extract_strided_slice %261 {offsets = [0, 0], sizes = [2, 128], strides = [1, 1]} : vector<2x384xf32> to vector<2x128xf32>
    %266 = vector.extract_strided_slice %264 {offsets = [0, 0], sizes = [2, 128], strides = [1, 1]} : vector<2x384xf32> to vector<2x128xf32>
    %267 = arith.addf %265, %266 : vector<2x128xf32>
    %268 = arith.negf %267 : vector<2x128xf32>
    %269 = math.exp %268 : vector<2x128xf32>
    %cst_79 = arith.constant 1.000000e+00 : f32
    %270 = vector.broadcast %cst_79 : f32 to vector<2x128xf32>
    %271 = arith.addf %270, %269 : vector<2x128xf32>
    %272 = arith.divf %270, %271 : vector<2x128xf32>
    %273 = vector.extract_strided_slice %261 {offsets = [0, 128], sizes = [2, 128], strides = [1, 1]} : vector<2x384xf32> to vector<2x128xf32>
    %274 = vector.extract_strided_slice %264 {offsets = [0, 128], sizes = [2, 128], strides = [1, 1]} : vector<2x384xf32> to vector<2x128xf32>
    %275 = arith.addf %273, %274 : vector<2x128xf32>
    %276 = arith.negf %275 : vector<2x128xf32>
    %277 = math.exp %276 : vector<2x128xf32>
    %cst_80 = arith.constant 1.000000e+00 : f32
    %278 = vector.broadcast %cst_80 : f32 to vector<2x128xf32>
    %279 = arith.addf %278, %277 : vector<2x128xf32>
    %280 = arith.divf %278, %279 : vector<2x128xf32>
    %281 = vector.extract_strided_slice %261 {offsets = [0, 256], sizes = [2, 128], strides = [1, 1]} : vector<2x384xf32> to vector<2x128xf32>
    %282 = vector.extract_strided_slice %264 {offsets = [0, 256], sizes = [2, 128], strides = [1, 1]} : vector<2x384xf32> to vector<2x128xf32>
    %283 = arith.mulf %272, %282 : vector<2x128xf32>
    %284 = arith.addf %281, %283 : vector<2x128xf32>
    %285 = math.tanh %284 : vector<2x128xf32>
    %cst_81 = arith.constant 1.000000e+00 : f32
    %286 = vector.broadcast %cst_81 : f32 to vector<2x128xf32>
    %287 = arith.subf %286, %280 : vector<2x128xf32>
    %288 = arith.mulf %287, %285 : vector<2x128xf32>
    %289 = arith.mulf %280, %254 : vector<2x128xf32>
    %290 = arith.addf %288, %289 : vector<2x128xf32>
    %291 = arith.index_cast %c7_i32 : i32 to index
    %c0_82 = arith.constant 0 : index
    %c0_83 = arith.constant 0 : index
    %292 = vector.load %arg6[%291, %c0_82, %c0_83] : memref<8x2x128xf32, #tpu.memory_space<vmem>>, vector<1x2x128xf32>
    %293 = vector.shape_cast %292 : vector<1x2x128xf32> to vector<2x128xf32>
    %294 = vector.shape_cast %290 : vector<2x128xf32> to vector<1x2x128xf32>
    tpu.vector_store %arg6[%291, %c0_82, %c0_83], %294 {strides = array<i32>} : memref<8x2x128xf32, #tpu.memory_space<vmem>>, vector<1x2x128xf32>,
    %c8_i32 = arith.constant 8 : i32
    %c0_84 = arith.constant 0 : index
    %c0_85 = arith.constant 0 : index
    %295 = vector.load %arg8[%c0_84, %c0_85] : memref<2x128xf32, #tpu.memory_space<vmem>>, vector<2x128xf32>
    tpu.vector_store %arg8[%c0_84, %c0_85], %290 {strides = array<i32>} : memref<2x128xf32, #tpu.memory_space<vmem>>, vector<2x128xf32>,
    %c0_i32_86 = arith.constant 0 : i32
    %296 = arith.cmpi eq, %arg1, %c0_i32_86 : i32
    %297 = arith.extui %296 : i1 to i32
    %c0_i32_87 = arith.constant 0 : i32
    %298 = arith.cmpi ne, %297, %c0_i32_87 : i32
    scf.if %298 {
      %c0_88 = arith.constant 0 : index
      %c0_89 = arith.constant 0 : index
      %299 = vector.load %arg7[%c0_88, %c0_89] : memref<2x128xf32, #tpu.memory_space<vmem>>, vector<2x128xf32>
      tpu.vector_store %arg7[%c0_88, %c0_89], %290 {strides = array<i32>} : memref<2x128xf32, #tpu.memory_space<vmem>>, vector<2x128xf32>,
    } else {
    }
    return
  }
  func.func @transform_0(%arg0: i32, %arg1: i32) -> (i32, i32, i32) {
    %c0_i32 = arith.constant 0 : i32
    %c0_i32_0 = arith.constant 0 : i32
    return %arg1, %arg0, %c0_i32 : i32, i32, i32
  }
  func.func @transform_1(%arg0: i32, %arg1: i32) -> (i32, i32) {
    %c0_i32 = arith.constant 0 : i32
    %c0_i32_0 = arith.constant 0 : i32
    %c0_i32_1 = arith.constant 0 : i32
    return %c0_i32, %c0_i32_0 : i32, i32
  }
  func.func @transform_2(%arg0: i32, %arg1: i32) -> (i32, i32) {
    %c0_i32 = arith.constant 0 : i32
    %c0_i32_0 = arith.constant 0 : i32
    %c0_i32_1 = arith.constant 0 : i32
    return %c0_i32, %c0_i32_0 : i32, i32
  }
  func.func @transform_3(%arg0: i32, %arg1: i32) -> (i32, i32) {
    %c0_i32 = arith.constant 0 : i32
    %c0_i32_0 = arith.constant 0 : i32
    return %arg0, %c0_i32 : i32, i32
  }
  func.func @transform_4(%arg0: i32, %arg1: i32) -> (i32, i32, i32) {
    %c0_i32 = arith.constant 0 : i32
    %c0_i32_0 = arith.constant 0 : i32
    return %arg1, %arg0, %c0_i32 : i32, i32, i32
  }
  func.func @transform_5(%arg0: i32, %arg1: i32) -> (i32, i32) {
    %c0_i32 = arith.constant 0 : i32
    %c0_i32_0 = arith.constant 0 : i32
    return %arg0, %c0_i32 : i32, i32
  }
}

module attributes {stable_mosaic.version = 11 : i64} {
  func.func @gru_rec_kernel(%arg0: i32, %arg1: i32, %arg2: memref<8x2x384xf32, #tpu.memory_space<vmem>>, %arg3: memref<128x384xf32, #tpu.memory_space<vmem>>, %arg4: memref<1x384xf32, #tpu.memory_space<vmem>>, %arg5: memref<2x128xf32, #tpu.memory_space<vmem>>, %arg6: memref<8x2x128xf32, #tpu.memory_space<vmem>>, %arg7: memref<2x128xf32, #tpu.memory_space<vmem>>, %arg8: memref<2x128xf32, #tpu.memory_space<vmem>>) attributes {dimension_semantics = [#tpu.dimension_semantics<parallel>, #tpu.dimension_semantics<arbitrary>], iteration_bounds = array<i64: 1, 1>, scalar_prefetch = 0 : i64, scratch_operands = 1 : i64, tpu.core_type = #tpu.core_type<tc>, window_params = [{transform_indices = @transform_0, window_bounds = array<i64: 8, 2, 384>}, {pipeline_mode = #tpu.pipeline_mode<synchronous>, transform_indices = @transform_1, window_bounds = array<i64: 128, 384>}, {pipeline_mode = #tpu.pipeline_mode<synchronous>, transform_indices = @transform_2, window_bounds = array<i64: 1, 384>}, {transform_indices = @transform_3, window_bounds = array<i64: 2, 128>}, {transform_indices = @transform_4, window_bounds = array<i64: 8, 2, 128>}, {transform_indices = @transform_5, window_bounds = array<i64: 2, 128>}]} {
    %c0_i32 = arith.constant 0 : i32
    %0 = arith.cmpi eq, %arg1, %c0_i32 : i32
    %1 = arith.extui %0 : i1 to i32
    %c0_i32_0 = arith.constant 0 : i32
    %2 = arith.cmpi ne, %1, %c0_i32_0 : i32
    scf.if %2 {
      %c0_88 = arith.constant 0 : index
      %c0_89 = arith.constant 0 : index
      %299 = vector.load %arg5[%c0_88, %c0_89] : memref<2x128xf32, #tpu.memory_space<vmem>>, vector<2x128xf32>
      %c0_90 = arith.constant 0 : index
      %c0_91 = arith.constant 0 : index
      %300 = vector.load %arg8[%c0_90, %c0_91] : memref<2x128xf32, #tpu.memory_space<vmem>>, vector<2x128xf32>
      tpu.vector_store %arg8[%c0_90, %c0_91], %299 {strides = array<i32>} : memref<2x128xf32, #tpu.memory_space<vmem>>, vector<2x128xf32>,
    } else {
    }
    %c0 = arith.constant 0 : index
    %c0_1 = arith.constant 0 : index
    %3 = vector.load %arg4[%c0, %c0_1] : memref<1x384xf32, #tpu.memory_space<vmem>>, vector<1x384xf32>
    %4 = vector.shape_cast %3 : vector<1x384xf32> to vector<1x384xf32>
    %5 = vector.broadcast %4 : vector<1x384xf32> to vector<2x384xf32>
    %c0_2 = arith.constant 0 : index
    %c0_3 = arith.constant 0 : index
    %6 = vector.load %arg8[%c0_2, %c0_3] : memref<2x128xf32, #tpu.memory_space<vmem>>, vector<2x128xf32>
    %c0_i32_4 = arith.constant 0 : i32
    %7 = arith.index_cast %c0_i32_4 : i32 to index
    %c0_5 = arith.constant 0 : index
    %c0_6 = arith.constant 0 : index
    %8 = vector.load %arg2[%7, %c0_5, %c0_6] : memref<8x2x384xf32, #tpu.memory_space<vmem>>, vector<1x2x384xf32>
    %9 = vector.shape_cast %8 : vector<1x2x384xf32> to vector<2x384xf32>
    %c0_7 = arith.constant 0 : index
    %c0_8 = arith.constant 0 : index
    %10 = vector.load %arg3[%c0_7, %c0_8] : memref<128x384xf32, #tpu.memory_space<vmem>>, vector<128x384xf32>
    %cst = arith.constant dense<0.000000e+00> : vector<2x384xf32>
    %11 = tpu.matmul %6, %10, %cst {dimension_numbers = #tpu.dot_dimension_numbers<[1], [0], [0], [1], [0, 0, 1, 1], [], []>} : vector<2x128xf32>, vector<128x384xf32>, vector<2x384xf32> -> vector<2x384xf32>
    %12 = arith.addf %11, %5 : vector<2x384xf32>
    %13 = vector.extract_strided_slice %9 {offsets = [0, 0], sizes = [2, 128], strides = [1, 1]} : vector<2x384xf32> to vector<2x128xf32>
    %14 = vector.extract_strided_slice %12 {offsets = [0, 0], sizes = [2, 128], strides = [1, 1]} : vector<2x384xf32> to vector<2x128xf32>
    %15 = arith.addf %13, %14 : vector<2x128xf32>
    %16 = arith.negf %15 : vector<2x128xf32>
    %17 = math.exp %16 : vector<2x128xf32>
    %cst_9 = arith.constant 1.000000e+00 : f32
    %18 = vector.broadcast %cst_9 : f32 to vector<2x128xf32>
    %19 = arith.addf %18, %17 : vector<2x128xf32>
    %20 = arith.divf %18, %19 : vector<2x128xf32>
    %21 = vector.extract_strided_slice %9 {offsets = [0, 128], sizes = [2, 128], strides = [1, 1]} : vector<2x384xf32> to vector<2x128xf32>
    %22 = vector.extract_strided_slice %12 {offsets = [0, 128], sizes = [2, 128], strides = [1, 1]} : vector<2x384xf32> to vector<2x128xf32>
    %23 = arith.addf %21, %22 : vector<2x128xf32>
    %24 = arith.negf %23 : vector<2x128xf32>
    %25 = math.exp %24 : vector<2x128xf32>
    %cst_10 = arith.constant 1.000000e+00 : f32
    %26 = vector.broadcast %cst_10 : f32 to vector<2x128xf32>
    %27 = arith.addf %26, %25 : vector<2x128xf32>
    %28 = arith.divf %26, %27 : vector<2x128xf32>
    %29 = vector.extract_strided_slice %9 {offsets = [0, 256], sizes = [2, 128], strides = [1, 1]} : vector<2x384xf32> to vector<2x128xf32>
    %30 = vector.extract_strided_slice %12 {offsets = [0, 256], sizes = [2, 128], strides = [1, 1]} : vector<2x384xf32> to vector<2x128xf32>
    %31 = arith.mulf %20, %30 : vector<2x128xf32>
    %32 = arith.addf %29, %31 : vector<2x128xf32>
    %33 = math.tanh %32 : vector<2x128xf32>
    %cst_11 = arith.constant 1.000000e+00 : f32
    %34 = vector.broadcast %cst_11 : f32 to vector<2x128xf32>
    %35 = arith.subf %34, %28 : vector<2x128xf32>
    %36 = arith.mulf %35, %33 : vector<2x128xf32>
    %37 = arith.mulf %28, %6 : vector<2x128xf32>
    %38 = arith.addf %36, %37 : vector<2x128xf32>
    %39 = arith.index_cast %c0_i32_4 : i32 to index
    %c0_12 = arith.constant 0 : index
    %c0_13 = arith.constant 0 : index
    %40 = vector.load %arg6[%39, %c0_12, %c0_13] : memref<8x2x128xf32, #tpu.memory_space<vmem>>, vector<1x2x128xf32>
    %41 = vector.shape_cast %40 : vector<1x2x128xf32> to vector<2x128xf32>
    %42 = vector.shape_cast %38 : vector<2x128xf32> to vector<1x2x128xf32>
    tpu.vector_store %arg6[%39, %c0_12, %c0_13], %42 {strides = array<i32>} : memref<8x2x128xf32, #tpu.memory_space<vmem>>, vector<1x2x128xf32>,
    %c1_i32 = arith.constant 1 : i32
    %43 = arith.index_cast %c1_i32 : i32 to index
    %c0_14 = arith.constant 0 : index
    %c0_15 = arith.constant 0 : index
    %44 = vector.load %arg2[%43, %c0_14, %c0_15] : memref<8x2x384xf32, #tpu.memory_space<vmem>>, vector<1x2x384xf32>
    %45 = vector.shape_cast %44 : vector<1x2x384xf32> to vector<2x384xf32>
    %c0_16 = arith.constant 0 : index
    %c0_17 = arith.constant 0 : index
    %46 = vector.load %arg3[%c0_16, %c0_17] : memref<128x384xf32, #tpu.memory_space<vmem>>, vector<128x384xf32>
    %cst_18 = arith.constant dense<0.000000e+00> : vector<2x384xf32>
    %47 = tpu.matmul %38, %46, %cst_18 {dimension_numbers = #tpu.dot_dimension_numbers<[1], [0], [0], [1], [0, 0, 1, 1], [], []>} : vector<2x128xf32>, vector<128x384xf32>, vector<2x384xf32> -> vector<2x384xf32>
    %48 = arith.addf %47, %5 : vector<2x384xf32>
    %49 = vector.extract_strided_slice %45 {offsets = [0, 0], sizes = [2, 128], strides = [1, 1]} : vector<2x384xf32> to vector<2x128xf32>
    %50 = vector.extract_strided_slice %48 {offsets = [0, 0], sizes = [2, 128], strides = [1, 1]} : vector<2x384xf32> to vector<2x128xf32>
    %51 = arith.addf %49, %50 : vector<2x128xf32>
    %52 = arith.negf %51 : vector<2x128xf32>
    %53 = math.exp %52 : vector<2x128xf32>
    %cst_19 = arith.constant 1.000000e+00 : f32
    %54 = vector.broadcast %cst_19 : f32 to vector<2x128xf32>
    %55 = arith.addf %54, %53 : vector<2x128xf32>
    %56 = arith.divf %54, %55 : vector<2x128xf32>
    %57 = vector.extract_strided_slice %45 {offsets = [0, 128], sizes = [2, 128], strides = [1, 1]} : vector<2x384xf32> to vector<2x128xf32>
    %58 = vector.extract_strided_slice %48 {offsets = [0, 128], sizes = [2, 128], strides = [1, 1]} : vector<2x384xf32> to vector<2x128xf32>
    %59 = arith.addf %57, %58 : vector<2x128xf32>
    %60 = arith.negf %59 : vector<2x128xf32>
    %61 = math.exp %60 : vector<2x128xf32>
    %cst_20 = arith.constant 1.000000e+00 : f32
    %62 = vector.broadcast %cst_20 : f32 to vector<2x128xf32>
    %63 = arith.addf %62, %61 : vector<2x128xf32>
    %64 = arith.divf %62, %63 : vector<2x128xf32>
    %65 = vector.extract_strided_slice %45 {offsets = [0, 256], sizes = [2, 128], strides = [1, 1]} : vector<2x384xf32> to vector<2x128xf32>
    %66 = vector.extract_strided_slice %48 {offsets = [0, 256], sizes = [2, 128], strides = [1, 1]} : vector<2x384xf32> to vector<2x128xf32>
    %67 = arith.mulf %56, %66 : vector<2x128xf32>
    %68 = arith.addf %65, %67 : vector<2x128xf32>
    %69 = math.tanh %68 : vector<2x128xf32>
    %cst_21 = arith.constant 1.000000e+00 : f32
    %70 = vector.broadcast %cst_21 : f32 to vector<2x128xf32>
    %71 = arith.subf %70, %64 : vector<2x128xf32>
    %72 = arith.mulf %71, %69 : vector<2x128xf32>
    %73 = arith.mulf %64, %38 : vector<2x128xf32>
    %74 = arith.addf %72, %73 : vector<2x128xf32>
    %75 = arith.index_cast %c1_i32 : i32 to index
    %c0_22 = arith.constant 0 : index
    %c0_23 = arith.constant 0 : index
    %76 = vector.load %arg6[%75, %c0_22, %c0_23] : memref<8x2x128xf32, #tpu.memory_space<vmem>>, vector<1x2x128xf32>
    %77 = vector.shape_cast %76 : vector<1x2x128xf32> to vector<2x128xf32>
    %78 = vector.shape_cast %74 : vector<2x128xf32> to vector<1x2x128xf32>
    tpu.vector_store %arg6[%75, %c0_22, %c0_23], %78 {strides = array<i32>} : memref<8x2x128xf32, #tpu.memory_space<vmem>>, vector<1x2x128xf32>,
    %c2_i32 = arith.constant 2 : i32
    %79 = arith.index_cast %c2_i32 : i32 to index
    %c0_24 = arith.constant 0 : index
    %c0_25 = arith.constant 0 : index
    %80 = vector.load %arg2[%79, %c0_24, %c0_25] : memref<8x2x384xf32, #tpu.memory_space<vmem>>, vector<1x2x384xf32>
    %81 = vector.shape_cast %80 : vector<1x2x384xf32> to vector<2x384xf32>
    %c0_26 = arith.constant 0 : index
    %c0_27 = arith.constant 0 : index
    %82 = vector.load %arg3[%c0_26, %c0_27] : memref<128x384xf32, #tpu.memory_space<vmem>>, vector<128x384xf32>
    %cst_28 = arith.constant dense<0.000000e+00> : vector<2x384xf32>
    %83 = tpu.matmul %74, %82, %cst_28 {dimension_numbers = #tpu.dot_dimension_numbers<[1], [0], [0], [1], [0, 0, 1, 1], [], []>} : vector<2x128xf32>, vector<128x384xf32>, vector<2x384xf32> -> vector<2x384xf32>
    %84 = arith.addf %83, %5 : vector<2x384xf32>
    %85 = vector.extract_strided_slice %81 {offsets = [0, 0], sizes = [2, 128], strides = [1, 1]} : vector<2x384xf32> to vector<2x128xf32>
    %86 = vector.extract_strided_slice %84 {offsets = [0, 0], sizes = [2, 128], strides = [1, 1]} : vector<2x384xf32> to vector<2x128xf32>
    %87 = arith.addf %85, %86 : vector<2x128xf32>
    %88 = arith.negf %87 : vector<2x128xf32>
    %89 = math.exp %88 : vector<2x128xf32>
    %cst_29 = arith.constant 1.000000e+00 : f32
    %90 = vector.broadcast %cst_29 : f32 to vector<2x128xf32>
    %91 = arith.addf %90, %89 : vector<2x128xf32>
    %92 = arith.divf %90, %91 : vector<2x128xf32>
    %93 = vector.extract_strided_slice %81 {offsets = [0, 128], sizes = [2, 128], strides = [1, 1]} : vector<2x384xf32> to vector<2x128xf32>
    %94 = vector.extract_strided_slice %84 {offsets = [0, 128], sizes = [2, 128], strides = [1, 1]} : vector<2x384xf32> to vector<2x128xf32>
    %95 = arith.addf %93, %94 : vector<2x128xf32>
    %96 = arith.negf %95 : vector<2x128xf32>
    %97 = math.exp %96 : vector<2x128xf32>
    %cst_30 = arith.constant 1.000000e+00 : f32
    %98 = vector.broadcast %cst_30 : f32 to vector<2x128xf32>
    %99 = arith.addf %98, %97 : vector<2x128xf32>
    %100 = arith.divf %98, %99 : vector<2x128xf32>
    %101 = vector.extract_strided_slice %81 {offsets = [0, 256], sizes = [2, 128], strides = [1, 1]} : vector<2x384xf32> to vector<2x128xf32>
    %102 = vector.extract_strided_slice %84 {offsets = [0, 256], sizes = [2, 128], strides = [1, 1]} : vector<2x384xf32> to vector<2x128xf32>
    %103 = arith.mulf %92, %102 : vector<2x128xf32>
    %104 = arith.addf %101, %103 : vector<2x128xf32>
    %105 = math.tanh %104 : vector<2x128xf32>
    %cst_31 = arith.constant 1.000000e+00 : f32
    %106 = vector.broadcast %cst_31 : f32 to vector<2x128xf32>
    %107 = arith.subf %106, %100 : vector<2x128xf32>
    %108 = arith.mulf %107, %105 : vector<2x128xf32>
    %109 = arith.mulf %100, %74 : vector<2x128xf32>
    %110 = arith.addf %108, %109 : vector<2x128xf32>
    %111 = arith.index_cast %c2_i32 : i32 to index
    %c0_32 = arith.constant 0 : index
    %c0_33 = arith.constant 0 : index
    %112 = vector.load %arg6[%111, %c0_32, %c0_33] : memref<8x2x128xf32, #tpu.memory_space<vmem>>, vector<1x2x128xf32>
    %113 = vector.shape_cast %112 : vector<1x2x128xf32> to vector<2x128xf32>
    %114 = vector.shape_cast %110 : vector<2x128xf32> to vector<1x2x128xf32>
    tpu.vector_store %arg6[%111, %c0_32, %c0_33], %114 {strides = array<i32>} : memref<8x2x128xf32, #tpu.memory_space<vmem>>, vector<1x2x128xf32>,
    %c3_i32 = arith.constant 3 : i32
    %115 = arith.index_cast %c3_i32 : i32 to index
    %c0_34 = arith.constant 0 : index
    %c0_35 = arith.constant 0 : index
    %116 = vector.load %arg2[%115, %c0_34, %c0_35] : memref<8x2x384xf32, #tpu.memory_space<vmem>>, vector<1x2x384xf32>
    %117 = vector.shape_cast %116 : vector<1x2x384xf32> to vector<2x384xf32>
    %c0_36 = arith.constant 0 : index
    %c0_37 = arith.constant 0 : index
    %118 = vector.load %arg3[%c0_36, %c0_37] : memref<128x384xf32, #tpu.memory_space<vmem>>, vector<128x384xf32>
    %cst_38 = arith.constant dense<0.000000e+00> : vector<2x384xf32>
    %119 = tpu.matmul %110, %118, %cst_38 {dimension_numbers = #tpu.dot_dimension_numbers<[1], [0], [0], [1], [0, 0, 1, 1], [], []>} : vector<2x128xf32>, vector<128x384xf32>, vector<2x384xf32> -> vector<2x384xf32>
    %120 = arith.addf %119, %5 : vector<2x384xf32>
    %121 = vector.extract_strided_slice %117 {offsets = [0, 0], sizes = [2, 128], strides = [1, 1]} : vector<2x384xf32> to vector<2x128xf32>
    %122 = vector.extract_strided_slice %120 {offsets = [0, 0], sizes = [2, 128], strides = [1, 1]} : vector<2x384xf32> to vector<2x128xf32>
    %123 = arith.addf %121, %122 : vector<2x128xf32>
    %124 = arith.negf %123 : vector<2x128xf32>
    %125 = math.exp %124 : vector<2x128xf32>
    %cst_39 = arith.constant 1.000000e+00 : f32
    %126 = vector.broadcast %cst_39 : f32 to vector<2x128xf32>
    %127 = arith.addf %126, %125 : vector<2x128xf32>
    %128 = arith.divf %126, %127 : vector<2x128xf32>
    %129 = vector.extract_strided_slice %117 {offsets = [0, 128], sizes = [2, 128], strides = [1, 1]} : vector<2x384xf32> to vector<2x128xf32>
    %130 = vector.extract_strided_slice %120 {offsets = [0, 128], sizes = [2, 128], strides = [1, 1]} : vector<2x384xf32> to vector<2x128xf32>
    %131 = arith.addf %129, %130 : vector<2x128xf32>
    %132 = arith.negf %131 : vector<2x128xf32>
    %133 = math.exp %132 : vector<2x128xf32>
    %cst_40 = arith.constant 1.000000e+00 : f32
    %134 = vector.broadcast %cst_40 : f32 to vector<2x128xf32>
    %135 = arith.addf %134, %133 : vector<2x128xf32>
    %136 = arith.divf %134, %135 : vector<2x128xf32>
    %137 = vector.extract_strided_slice %117 {offsets = [0, 256], sizes = [2, 128], strides = [1, 1]} : vector<2x384xf32> to vector<2x128xf32>
    %138 = vector.extract_strided_slice %120 {offsets = [0, 256], sizes = [2, 128], strides = [1, 1]} : vector<2x384xf32> to vector<2x128xf32>
    %139 = arith.mulf %128, %138 : vector<2x128xf32>
    %140 = arith.addf %137, %139 : vector<2x128xf32>
    %141 = math.tanh %140 : vector<2x128xf32>
    %cst_41 = arith.constant 1.000000e+00 : f32
    %142 = vector.broadcast %cst_41 : f32 to vector<2x128xf32>
    %143 = arith.subf %142, %136 : vector<2x128xf32>
    %144 = arith.mulf %143, %141 : vector<2x128xf32>
    %145 = arith.mulf %136, %110 : vector<2x128xf32>
    %146 = arith.addf %144, %145 : vector<2x128xf32>
    %147 = arith.index_cast %c3_i32 : i32 to index
    %c0_42 = arith.constant 0 : index
    %c0_43 = arith.constant 0 : index
    %148 = vector.load %arg6[%147, %c0_42, %c0_43] : memref<8x2x128xf32, #tpu.memory_space<vmem>>, vector<1x2x128xf32>
    %149 = vector.shape_cast %148 : vector<1x2x128xf32> to vector<2x128xf32>
    %150 = vector.shape_cast %146 : vector<2x128xf32> to vector<1x2x128xf32>
    tpu.vector_store %arg6[%147, %c0_42, %c0_43], %150 {strides = array<i32>} : memref<8x2x128xf32, #tpu.memory_space<vmem>>, vector<1x2x128xf32>,
    %c4_i32 = arith.constant 4 : i32
    %151 = arith.index_cast %c4_i32 : i32 to index
    %c0_44 = arith.constant 0 : index
    %c0_45 = arith.constant 0 : index
    %152 = vector.load %arg2[%151, %c0_44, %c0_45] : memref<8x2x384xf32, #tpu.memory_space<vmem>>, vector<1x2x384xf32>
    %153 = vector.shape_cast %152 : vector<1x2x384xf32> to vector<2x384xf32>
    %c0_46 = arith.constant 0 : index
    %c0_47 = arith.constant 0 : index
    %154 = vector.load %arg3[%c0_46, %c0_47] : memref<128x384xf32, #tpu.memory_space<vmem>>, vector<128x384xf32>
    %cst_48 = arith.constant dense<0.000000e+00> : vector<2x384xf32>
    %155 = tpu.matmul %146, %154, %cst_48 {dimension_numbers = #tpu.dot_dimension_numbers<[1], [0], [0], [1], [0, 0, 1, 1], [], []>} : vector<2x128xf32>, vector<128x384xf32>, vector<2x384xf32> -> vector<2x384xf32>
    %156 = arith.addf %155, %5 : vector<2x384xf32>
    %157 = vector.extract_strided_slice %153 {offsets = [0, 0], sizes = [2, 128], strides = [1, 1]} : vector<2x384xf32> to vector<2x128xf32>
    %158 = vector.extract_strided_slice %156 {offsets = [0, 0], sizes = [2, 128], strides = [1, 1]} : vector<2x384xf32> to vector<2x128xf32>
    %159 = arith.addf %157, %158 : vector<2x128xf32>
    %160 = arith.negf %159 : vector<2x128xf32>
    %161 = math.exp %160 : vector<2x128xf32>
    %cst_49 = arith.constant 1.000000e+00 : f32
    %162 = vector.broadcast %cst_49 : f32 to vector<2x128xf32>
    %163 = arith.addf %162, %161 : vector<2x128xf32>
    %164 = arith.divf %162, %163 : vector<2x128xf32>
    %165 = vector.extract_strided_slice %153 {offsets = [0, 128], sizes = [2, 128], strides = [1, 1]} : vector<2x384xf32> to vector<2x128xf32>
    %166 = vector.extract_strided_slice %156 {offsets = [0, 128], sizes = [2, 128], strides = [1, 1]} : vector<2x384xf32> to vector<2x128xf32>
    %167 = arith.addf %165, %166 : vector<2x128xf32>
    %168 = arith.negf %167 : vector<2x128xf32>
    %169 = math.exp %168 : vector<2x128xf32>
    %cst_50 = arith.constant 1.000000e+00 : f32
    %170 = vector.broadcast %cst_50 : f32 to vector<2x128xf32>
    %171 = arith.addf %170, %169 : vector<2x128xf32>
    %172 = arith.divf %170, %171 : vector<2x128xf32>
    %173 = vector.extract_strided_slice %153 {offsets = [0, 256], sizes = [2, 128], strides = [1, 1]} : vector<2x384xf32> to vector<2x128xf32>
    %174 = vector.extract_strided_slice %156 {offsets = [0, 256], sizes = [2, 128], strides = [1, 1]} : vector<2x384xf32> to vector<2x128xf32>
    %175 = arith.mulf %164, %174 : vector<2x128xf32>
    %176 = arith.addf %173, %175 : vector<2x128xf32>
    %177 = math.tanh %176 : vector<2x128xf32>
    %cst_51 = arith.constant 1.000000e+00 : f32
    %178 = vector.broadcast %cst_51 : f32 to vector<2x128xf32>
    %179 = arith.subf %178, %172 : vector<2x128xf32>
    %180 = arith.mulf %179, %177 : vector<2x128xf32>
    %181 = arith.mulf %172, %146 : vector<2x128xf32>
    %182 = arith.addf %180, %181 : vector<2x128xf32>
    %183 = arith.index_cast %c4_i32 : i32 to index
    %c0_52 = arith.constant 0 : index
    %c0_53 = arith.constant 0 : index
    %184 = vector.load %arg6[%183, %c0_52, %c0_53] : memref<8x2x128xf32, #tpu.memory_space<vmem>>, vector<1x2x128xf32>
    %185 = vector.shape_cast %184 : vector<1x2x128xf32> to vector<2x128xf32>
    %186 = vector.shape_cast %182 : vector<2x128xf32> to vector<1x2x128xf32>
    tpu.vector_store %arg6[%183, %c0_52, %c0_53], %186 {strides = array<i32>} : memref<8x2x128xf32, #tpu.memory_space<vmem>>, vector<1x2x128xf32>,
    %c5_i32 = arith.constant 5 : i32
    %187 = arith.index_cast %c5_i32 : i32 to index
    %c0_54 = arith.constant 0 : index
    %c0_55 = arith.constant 0 : index
    %188 = vector.load %arg2[%187, %c0_54, %c0_55] : memref<8x2x384xf32, #tpu.memory_space<vmem>>, vector<1x2x384xf32>
    %189 = vector.shape_cast %188 : vector<1x2x384xf32> to vector<2x384xf32>
    %c0_56 = arith.constant 0 : index
    %c0_57 = arith.constant 0 : index
    %190 = vector.load %arg3[%c0_56, %c0_57] : memref<128x384xf32, #tpu.memory_space<vmem>>, vector<128x384xf32>
    %cst_58 = arith.constant dense<0.000000e+00> : vector<2x384xf32>
    %191 = tpu.matmul %182, %190, %cst_58 {dimension_numbers = #tpu.dot_dimension_numbers<[1], [0], [0], [1], [0, 0, 1, 1], [], []>} : vector<2x128xf32>, vector<128x384xf32>, vector<2x384xf32> -> vector<2x384xf32>
    %192 = arith.addf %191, %5 : vector<2x384xf32>
    %193 = vector.extract_strided_slice %189 {offsets = [0, 0], sizes = [2, 128], strides = [1, 1]} : vector<2x384xf32> to vector<2x128xf32>
    %194 = vector.extract_strided_slice %192 {offsets = [0, 0], sizes = [2, 128], strides = [1, 1]} : vector<2x384xf32> to vector<2x128xf32>
    %195 = arith.addf %193, %194 : vector<2x128xf32>
    %196 = arith.negf %195 : vector<2x128xf32>
    %197 = math.exp %196 : vector<2x128xf32>
    %cst_59 = arith.constant 1.000000e+00 : f32
    %198 = vector.broadcast %cst_59 : f32 to vector<2x128xf32>
    %199 = arith.addf %198, %197 : vector<2x128xf32>
    %200 = arith.divf %198, %199 : vector<2x128xf32>
    %201 = vector.extract_strided_slice %189 {offsets = [0, 128], sizes = [2, 128], strides = [1, 1]} : vector<2x384xf32> to vector<2x128xf32>
    %202 = vector.extract_strided_slice %192 {offsets = [0, 128], sizes = [2, 128], strides = [1, 1]} : vector<2x384xf32> to vector<2x128xf32>
    %203 = arith.addf %201, %202 : vector<2x128xf32>
    %204 = arith.negf %203 : vector<2x128xf32>
    %205 = math.exp %204 : vector<2x128xf32>
    %cst_60 = arith.constant 1.000000e+00 : f32
    %206 = vector.broadcast %cst_60 : f32 to vector<2x128xf32>
    %207 = arith.addf %206, %205 : vector<2x128xf32>
    %208 = arith.divf %206, %207 : vector<2x128xf32>
    %209 = vector.extract_strided_slice %189 {offsets = [0, 256], sizes = [2, 128], strides = [1, 1]} : vector<2x384xf32> to vector<2x128xf32>
    %210 = vector.extract_strided_slice %192 {offsets = [0, 256], sizes = [2, 128], strides = [1, 1]} : vector<2x384xf32> to vector<2x128xf32>
    %211 = arith.mulf %200, %210 : vector<2x128xf32>
    %212 = arith.addf %209, %211 : vector<2x128xf32>
    %213 = math.tanh %212 : vector<2x128xf32>
    %cst_61 = arith.constant 1.000000e+00 : f32
    %214 = vector.broadcast %cst_61 : f32 to vector<2x128xf32>
    %215 = arith.subf %214, %208 : vector<2x128xf32>
    %216 = arith.mulf %215, %213 : vector<2x128xf32>
    %217 = arith.mulf %208, %182 : vector<2x128xf32>
    %218 = arith.addf %216, %217 : vector<2x128xf32>
    %219 = arith.index_cast %c5_i32 : i32 to index
    %c0_62 = arith.constant 0 : index
    %c0_63 = arith.constant 0 : index
    %220 = vector.load %arg6[%219, %c0_62, %c0_63] : memref<8x2x128xf32, #tpu.memory_space<vmem>>, vector<1x2x128xf32>
    %221 = vector.shape_cast %220 : vector<1x2x128xf32> to vector<2x128xf32>
    %222 = vector.shape_cast %218 : vector<2x128xf32> to vector<1x2x128xf32>
    tpu.vector_store %arg6[%219, %c0_62, %c0_63], %222 {strides = array<i32>} : memref<8x2x128xf32, #tpu.memory_space<vmem>>, vector<1x2x128xf32>,
    %c6_i32 = arith.constant 6 : i32
    %223 = arith.index_cast %c6_i32 : i32 to index
    %c0_64 = arith.constant 0 : index
    %c0_65 = arith.constant 0 : index
    %224 = vector.load %arg2[%223, %c0_64, %c0_65] : memref<8x2x384xf32, #tpu.memory_space<vmem>>, vector<1x2x384xf32>
    %225 = vector.shape_cast %224 : vector<1x2x384xf32> to vector<2x384xf32>
    %c0_66 = arith.constant 0 : index
    %c0_67 = arith.constant 0 : index
    %226 = vector.load %arg3[%c0_66, %c0_67] : memref<128x384xf32, #tpu.memory_space<vmem>>, vector<128x384xf32>
    %cst_68 = arith.constant dense<0.000000e+00> : vector<2x384xf32>
    %227 = tpu.matmul %218, %226, %cst_68 {dimension_numbers = #tpu.dot_dimension_numbers<[1], [0], [0], [1], [0, 0, 1, 1], [], []>} : vector<2x128xf32>, vector<128x384xf32>, vector<2x384xf32> -> vector<2x384xf32>
    %228 = arith.addf %227, %5 : vector<2x384xf32>
    %229 = vector.extract_strided_slice %225 {offsets = [0, 0], sizes = [2, 128], strides = [1, 1]} : vector<2x384xf32> to vector<2x128xf32>
    %230 = vector.extract_strided_slice %228 {offsets = [0, 0], sizes = [2, 128], strides = [1, 1]} : vector<2x384xf32> to vector<2x128xf32>
    %231 = arith.addf %229, %230 : vector<2x128xf32>
    %232 = arith.negf %231 : vector<2x128xf32>
    %233 = math.exp %232 : vector<2x128xf32>
    %cst_69 = arith.constant 1.000000e+00 : f32
    %234 = vector.broadcast %cst_69 : f32 to vector<2x128xf32>
    %235 = arith.addf %234, %233 : vector<2x128xf32>
    %236 = arith.divf %234, %235 : vector<2x128xf32>
    %237 = vector.extract_strided_slice %225 {offsets = [0, 128], sizes = [2, 128], strides = [1, 1]} : vector<2x384xf32> to vector<2x128xf32>
    %238 = vector.extract_strided_slice %228 {offsets = [0, 128], sizes = [2, 128], strides = [1, 1]} : vector<2x384xf32> to vector<2x128xf32>
    %239 = arith.addf %237, %238 : vector<2x128xf32>
    %240 = arith.negf %239 : vector<2x128xf32>
    %241 = math.exp %240 : vector<2x128xf32>
    %cst_70 = arith.constant 1.000000e+00 : f32
    %242 = vector.broadcast %cst_70 : f32 to vector<2x128xf32>
    %243 = arith.addf %242, %241 : vector<2x128xf32>
    %244 = arith.divf %242, %243 : vector<2x128xf32>
    %245 = vector.extract_strided_slice %225 {offsets = [0, 256], sizes = [2, 128], strides = [1, 1]} : vector<2x384xf32> to vector<2x128xf32>
    %246 = vector.extract_strided_slice %228 {offsets = [0, 256], sizes = [2, 128], strides = [1, 1]} : vector<2x384xf32> to vector<2x128xf32>
    %247 = arith.mulf %236, %246 : vector<2x128xf32>
    %248 = arith.addf %245, %247 : vector<2x128xf32>
    %249 = math.tanh %248 : vector<2x128xf32>
    %cst_71 = arith.constant 1.000000e+00 : f32
    %250 = vector.broadcast %cst_71 : f32 to vector<2x128xf32>
    %251 = arith.subf %250, %244 : vector<2x128xf32>
    %252 = arith.mulf %251, %249 : vector<2x128xf32>
    %253 = arith.mulf %244, %218 : vector<2x128xf32>
    %254 = arith.addf %252, %253 : vector<2x128xf32>
    %255 = arith.index_cast %c6_i32 : i32 to index
    %c0_72 = arith.constant 0 : index
    %c0_73 = arith.constant 0 : index
    %256 = vector.load %arg6[%255, %c0_72, %c0_73] : memref<8x2x128xf32, #tpu.memory_space<vmem>>, vector<1x2x128xf32>
    %257 = vector.shape_cast %256 : vector<1x2x128xf32> to vector<2x128xf32>
    %258 = vector.shape_cast %254 : vector<2x128xf32> to vector<1x2x128xf32>
    tpu.vector_store %arg6[%255, %c0_72, %c0_73], %258 {strides = array<i32>} : memref<8x2x128xf32, #tpu.memory_space<vmem>>, vector<1x2x128xf32>,
    %c7_i32 = arith.constant 7 : i32
    %259 = arith.index_cast %c7_i32 : i32 to index
    %c0_74 = arith.constant 0 : index
    %c0_75 = arith.constant 0 : index
    %260 = vector.load %arg2[%259, %c0_74, %c0_75] : memref<8x2x384xf32, #tpu.memory_space<vmem>>, vector<1x2x384xf32>
    %261 = vector.shape_cast %260 : vector<1x2x384xf32> to vector<2x384xf32>
    %c0_76 = arith.constant 0 : index
    %c0_77 = arith.constant 0 : index
    %262 = vector.load %arg3[%c0_76, %c0_77] : memref<128x384xf32, #tpu.memory_space<vmem>>, vector<128x384xf32>
    %cst_78 = arith.constant dense<0.000000e+00> : vector<2x384xf32>
    %263 = tpu.matmul %254, %262, %cst_78 {dimension_numbers = #tpu.dot_dimension_numbers<[1], [0], [0], [1], [0, 0, 1, 1], [], []>} : vector<2x128xf32>, vector<128x384xf32>, vector<2x384xf32> -> vector<2x384xf32>
    %264 = arith.addf %263, %5 : vector<2x384xf32>
    %265 = vector.extract_strided_slice %261 {offsets = [0, 0], sizes = [2, 128], strides = [1, 1]} : vector<2x384xf32> to vector<2x128xf32>
    %266 = vector.extract_strided_slice %264 {offsets = [0, 0], sizes = [2, 128], strides = [1, 1]} : vector<2x384xf32> to vector<2x128xf32>
    %267 = arith.addf %265, %266 : vector<2x128xf32>
    %268 = arith.negf %267 : vector<2x128xf32>
    %269 = math.exp %268 : vector<2x128xf32>
    %cst_79 = arith.constant 1.000000e+00 : f32
    %270 = vector.broadcast %cst_79 : f32 to vector<2x128xf32>
    %271 = arith.addf %270, %269 : vector<2x128xf32>
    %272 = arith.divf %270, %271 : vector<2x128xf32>
    %273 = vector.extract_strided_slice %261 {offsets = [0, 128], sizes = [2, 128], strides = [1, 1]} : vector<2x384xf32> to vector<2x128xf32>
    %274 = vector.extract_strided_slice %264 {offsets = [0, 128], sizes = [2, 128], strides = [1, 1]} : vector<2x384xf32> to vector<2x128xf32>
    %275 = arith.addf %273, %274 : vector<2x128xf32>
    %276 = arith.negf %275 : vector<2x128xf32>
    %277 = math.exp %276 : vector<2x128xf32>
    %cst_80 = arith.constant 1.000000e+00 : f32
    %278 = vector.broadcast %cst_80 : f32 to vector<2x128xf32>
    %279 = arith.addf %278, %277 : vector<2x128xf32>
    %280 = arith.divf %278, %279 : vector<2x128xf32>
    %281 = vector.extract_strided_slice %261 {offsets = [0, 256], sizes = [2, 128], strides = [1, 1]} : vector<2x384xf32> to vector<2x128xf32>
    %282 = vector.extract_strided_slice %264 {offsets = [0, 256], sizes = [2, 128], strides = [1, 1]} : vector<2x384xf32> to vector<2x128xf32>
    %283 = arith.mulf %272, %282 : vector<2x128xf32>
    %284 = arith.addf %281, %283 : vector<2x128xf32>
    %285 = math.tanh %284 : vector<2x128xf32>
    %cst_81 = arith.constant 1.000000e+00 : f32
    %286 = vector.broadcast %cst_81 : f32 to vector<2x128xf32>
    %287 = arith.subf %286, %280 : vector<2x128xf32>
    %288 = arith.mulf %287, %285 : vector<2x128xf32>
    %289 = arith.mulf %280, %254 : vector<2x128xf32>
    %290 = arith.addf %288, %289 : vector<2x128xf32>
    %291 = arith.index_cast %c7_i32 : i32 to index
    %c0_82 = arith.constant 0 : index
    %c0_83 = arith.constant 0 : index
    %292 = vector.load %arg6[%291, %c0_82, %c0_83] : memref<8x2x128xf32, #tpu.memory_space<vmem>>, vector<1x2x128xf32>
    %293 = vector.shape_cast %292 : vector<1x2x128xf32> to vector<2x128xf32>
    %294 = vector.shape_cast %290 : vector<2x128xf32> to vector<1x2x128xf32>
    tpu.vector_store %arg6[%291, %c0_82, %c0_83], %294 {strides = array<i32>} : memref<8x2x128xf32, #tpu.memory_space<vmem>>, vector<1x2x128xf32>,
    %c8_i32 = arith.constant 8 : i32
    %c0_84 = arith.constant 0 : index
    %c0_85 = arith.constant 0 : index
    %295 = vector.load %arg8[%c0_84, %c0_85] : memref<2x128xf32, #tpu.memory_space<vmem>>, vector<2x128xf32>
    tpu.vector_store %arg8[%c0_84, %c0_85], %290 {strides = array<i32>} : memref<2x128xf32, #tpu.memory_space<vmem>>, vector<2x128xf32>,
    %c0_i32_86 = arith.constant 0 : i32
    %296 = arith.cmpi eq, %arg1, %c0_i32_86 : i32
    %297 = arith.extui %296 : i1 to i32
    %c0_i32_87 = arith.constant 0 : i32
    %298 = arith.cmpi ne, %297, %c0_i32_87 : i32
    scf.if %298 {
      %c0_88 = arith.constant 0 : index
      %c0_89 = arith.constant 0 : index
      %299 = vector.load %arg7[%c0_88, %c0_89] : memref<2x128xf32, #tpu.memory_space<vmem>>, vector<2x128xf32>
      tpu.vector_store %arg7[%c0_88, %c0_89], %290 {strides = array<i32>} : memref<2x128xf32, #tpu.memory_space<vmem>>, vector<2x128xf32>,
    } else {
    }
    return
  }
  func.func @transform_0(%arg0: i32, %arg1: i32) -> (i32, i32, i32) {
    %c0_i32 = arith.constant 0 : i32
    %c0_i32_0 = arith.constant 0 : i32
    return %arg1, %arg0, %c0_i32 : i32, i32, i32
  }
  func.func @transform_1(%arg0: i32, %arg1: i32) -> (i32, i32) {
    %c0_i32 = arith.constant 0 : i32
    %c0_i32_0 = arith.constant 0 : i32
    %c0_i32_1 = arith.constant 0 : i32
    return %c0_i32, %c0_i32_0 : i32, i32
  }
  func.func @transform_2(%arg0: i32, %arg1: i32) -> (i32, i32) {
    %c0_i32 = arith.constant 0 : i32
    %c0_i32_0 = arith.constant 0 : i32
    %c0_i32_1 = arith.constant 0 : i32
    return %c0_i32, %c0_i32_0 : i32, i32
  }
  func.func @transform_3(%arg0: i32, %arg1: i32) -> (i32, i32) {
    %c0_i32 = arith.constant 0 : i32
    %c0_i32_0 = arith.constant 0 : i32
    return %arg0, %c0_i32 : i32, i32
  }
  func.func @transform_4(%arg0: i32, %arg1: i32) -> (i32, i32, i32) {
    %c0_i32 = arith.constant 0 : i32
    %c0_i32_0 = arith.constant 0 : i32
    return %arg1, %arg0, %c0_i32 : i32, i32, i32
  }
  func.func @transform_5(%arg0: i32, %arg1: i32) -> (i32, i32) {
    %c0_i32 = arith.constant 0 : i32
    %c0_i32_0 = arith.constant 0 : i32
    return %arg0, %c0_i32 : i32, i32
  }
}

module attributes {stable_mosaic.version = 11 : i64} {
  func.func @matmul_bias_kernel(%arg0: i32, %arg1: memref<6x128xf32, #tpu.memory_space<vmem>>, %arg2: memref<128x128xf32, #tpu.memory_space<vmem>>, %arg3: memref<1x128xf32, #tpu.memory_space<vmem>>, %arg4: memref<6x128xf32, #tpu.memory_space<vmem>>) attributes {dimension_semantics = [#tpu.dimension_semantics<parallel>], iteration_bounds = array<i64: 1>, scalar_prefetch = 0 : i64, scratch_operands = 0 : i64, tpu.core_type = #tpu.core_type<tc>, window_params = [{transform_indices = @transform_0, window_bounds = array<i64: 6, 128>}, {pipeline_mode = #tpu.pipeline_mode<synchronous>, transform_indices = @transform_1, window_bounds = array<i64: 128, 128>}, {pipeline_mode = #tpu.pipeline_mode<synchronous>, transform_indices = @transform_2, window_bounds = array<i64: 1, 128>}, {transform_indices = @transform_3, window_bounds = array<i64: 6, 128>}]} {
    %c0 = arith.constant 0 : index
    %c0_0 = arith.constant 0 : index
    %0 = vector.load %arg1[%c0, %c0_0] : memref<6x128xf32, #tpu.memory_space<vmem>>, vector<6x128xf32>
    %cst = arith.constant 0.000000e+00 : f32
    %1 = vector.broadcast %cst : f32 to vector<6x128xf32>
    %2 = arith.maximumf %0, %1 : vector<6x128xf32>
    %c0_1 = arith.constant 0 : index
    %c0_2 = arith.constant 0 : index
    %3 = vector.load %arg2[%c0_1, %c0_2] : memref<128x128xf32, #tpu.memory_space<vmem>>, vector<128x128xf32>
    %cst_3 = arith.constant dense<0.000000e+00> : vector<6x128xf32>
    %4 = tpu.matmul %2, %3, %cst_3 {dimension_numbers = #tpu.dot_dimension_numbers<[1], [0], [0], [1], [0, 0, 1, 1], [], []>} : vector<6x128xf32>, vector<128x128xf32>, vector<6x128xf32> -> vector<6x128xf32>
    %c0_4 = arith.constant 0 : index
    %c0_5 = arith.constant 0 : index
    %5 = vector.load %arg3[%c0_4, %c0_5] : memref<1x128xf32, #tpu.memory_space<vmem>>, vector<1x128xf32>
    %6 = vector.broadcast %5 : vector<1x128xf32> to vector<6x128xf32>
    %7 = arith.addf %4, %6 : vector<6x128xf32>
    %c0_6 = arith.constant 0 : index
    %c0_7 = arith.constant 0 : index
    %8 = vector.load %arg4[%c0_6, %c0_7] : memref<6x128xf32, #tpu.memory_space<vmem>>, vector<6x128xf32>
    tpu.vector_store %arg4[%c0_6, %c0_7], %7 {strides = array<i32>} : memref<6x128xf32, #tpu.memory_space<vmem>>, vector<6x128xf32>,
    return
  }
  func.func @transform_0(%arg0: i32) -> (i32, i32) {
    %c0_i32 = arith.constant 0 : i32
    %c0_i32_0 = arith.constant 0 : i32
    return %arg0, %c0_i32 : i32, i32
  }
  func.func @transform_1(%arg0: i32) -> (i32, i32) {
    %c0_i32 = arith.constant 0 : i32
    %c0_i32_0 = arith.constant 0 : i32
    %c0_i32_1 = arith.constant 0 : i32
    return %c0_i32, %c0_i32_0 : i32, i32
  }
  func.func @transform_2(%arg0: i32) -> (i32, i32) {
    %c0_i32 = arith.constant 0 : i32
    %c0_i32_0 = arith.constant 0 : i32
    %c0_i32_1 = arith.constant 0 : i32
    return %c0_i32, %c0_i32_0 : i32, i32
  }
  func.func @transform_3(%arg0: i32) -> (i32, i32) {
    %c0_i32 = arith.constant 0 : i32
    %c0_i32_0 = arith.constant 0 : i32
    return %arg0, %c0_i32 : i32, i32
  }
}

</mosaic_0001>

<llo_original>
// kernel: recnet_forward.5
$region0: #{recnet_forward.5}
  #allocation0 [shape = 'u32[]', space=smem, size = 0x4, offset = 0x4, fixed_abs, tag = 'smem constant byte address 0x4 - core index']
  #allocation1 [shape = 'u32[144,128]{1,0:T(1,128)}', space=vmem, size = 0x12000, scoped, tag = 'internal scratch']
  %s0 = inlined_call_operand.vmem [shape: f32[16,4], index: 0, kind: input, shape index: {}]
  %s1 = inlined_call_operand.hbm [shape: f32[4,384], index: 1, kind: input, shape index: {}]
  %s2 = inlined_call_operand.hbm [shape: f32[1,384], index: 2, kind: input, shape index: {}]
  %s3 = inlined_call_operand.vmem [shape: f32[16,384], index: 3, kind: output, shape index: {}]
  %s4 = sld [smem:[#allocation0]]
  $region30: #{recnet_forward.5} parent=0
    _
  %s6 = ssub.s32 1, %s4
  %s7 = scalar_select 0, %s6, %s4
  $region1: #{recnet_forward.5} parent=0
    #allocation2 [shape = 'u8[6144]{0}', space=vmem, size = 0x1800, scoped, tag = 'input window, operand 1, single buffered']
    #allocation3 [shape = 's32[1]{0}', space=sflag, size = 0x4, scoped, tag = 'scoped memory for recnet_forward.5']
    #allocation4 [shape = 'u8[1536]{0}', space=vmem, size = 0x800, scoped, tag = 'input window, operand 2, single buffered']
    #allocation5 [shape = 's32[1]{0}', space=sflag, size = 0x4, scoped, tag = 'scoped memory for recnet_forward.5']
    %8 = vsyncpa [#allocation3], 0
    %9 = vsyncpa [#allocation5], 0
    // Predicated region
    $region2: #{recnet_forward.5} parent=1 // pred_check
      _
    $region3: #{recnet_forward.5} parent=1 // pred_check_branch
      %11 = sbr.rel (0) target = $region5
    $region4: #{recnet_forward.5} parent=1 // pred_region
      _
    $region5: #{recnet_forward.5} parent=1 // pred_fallthru
      _
    // Predicated region
    $region6: #{recnet_forward.5} parent=1 // pred_check
      _
    $region7: #{recnet_forward.5} parent=1 // pred_check_branch
      %13 = sbr.rel (0) target = $region9
    $region8: #{recnet_forward.5} parent=1 // pred_region
      %s15 = ssub.s32 192, 192
      %16 = vsyncadd [#allocation3], %s15
      %s18 = sshll.u32 [#allocation2], 4
      %s19 = int_to_ptr.vmem [resolvable:$true] %s18
      %21 = dma.hbm_to_vmem [thread:$0]  %s1, 192, %s19, [#allocation3]
    $region9: #{recnet_forward.5} parent=1 // pred_fallthru
      _
    // Predicated region
    $region10: #{recnet_forward.5} parent=1 // pred_check
      _
    $region11: #{recnet_forward.5} parent=1 // pred_check_branch
      %23 = sbr.rel (0) target = $region13
    $region12: #{recnet_forward.5} parent=1 // pred_region
      %s25 = ssub.s32 48, 48
      %26 = vsyncadd [#allocation5], %s25
      %s28 = sshll.u32 [#allocation4], 4
      %s29 = int_to_ptr.vmem [resolvable:$true] %s28
      %31 = dma.hbm_to_vmem [thread:$0]  %s2, 48, %s29, [#allocation5]
    $region13: #{recnet_forward.5} parent=1 // pred_fallthru
      _
    // Predicated region
    $region14: #{recnet_forward.5} parent=1 // pred_check
      _
    $region15: #{recnet_forward.5} parent=1 // pred_check_branch
      %33 = sbr.rel (0) target = $region17
    $region16: #{recnet_forward.5} parent=1 // pred_region
      %34 = dma.done [#allocation3], 192
    $region17: #{recnet_forward.5} parent=1 // pred_fallthru
      _
    // Predicated region
    $region18: #{recnet_forward.5} parent=1 // pred_check
      _
    $region19: #{recnet_forward.5} parent=1 // pred_check_branch
      %36 = sbr.rel (0) target = $region21
    $region20: #{recnet_forward.5} parent=1 // pred_region
      %37 = dma.done [#allocation5], 48
    $region21: #{recnet_forward.5} parent=1 // pred_fallthru
      _
    %v38 = vld [vmem:[%s0] sm:$0xff]
    %v39 = vld [vmem:[%s0 + $0x8] sm:$0xff]
    %v40 = vld [vmem:[#allocation2] sm:$0xff]
    %v41 = vld [vmem:[#allocation2 + $0x8] sm:$0xf]
    %v42 = vld [vmem:[#allocation4] sm:$0x7]
    %v44 = vlaneseq
    %v45 = vshrl.u32 %v44, 7
    %v46 = vsub.s32 0, %v45
    %v47 = vrot.slane %v42, %v46
    %v48 = vlaneseq
    %v49 = vshrl.u32 %v48, 7
    %v50 = vsub.s32 1, %v49
    %v51 = vrot.slane %v42, %v50
    %v52 = vlaneseq
    %v53 = vshrl.u32 %v52, 7
    %v54 = vsub.s32 2, %v53
    %v55 = vrot.slane %v42, %v54
    %v61 = vcombine.high %v40, %v40
    %vm62 = vcmask 31744
    %v64 = vsel %vm62, %v38, 0
    %v67 = vsel %vm62, %v39, 0
    %vm69 = vcmask 1043456
    %v70 = vsel %vm69, %v40, 0
    %v72 = vsel %vm69, %v61, 0
    %v74 = vsel %vm69, %v41, 0
    %76 = vmatprep.subr.mxu0 %v72
    %77 = vmatpush1.msra.mxu0 %v70
    %78 = vmatprep.subr.mxu0 0.0
    %79 = vmatpush1.msra.mxu0 0.0
    %80 = vmatprep.subr.mxu0 0.0
    %81 = vmatpush1.msra.mxu0 0.0
    %82 = vmatprep.subr.mxu0 0.0
    %83 = vmatpush1.msra.mxu0 0.0
    %84 = vmatprep.subr.mxu0 0.0
    %85 = vmatpush1.msra.mxu0 0.0
    %86 = vmatprep.subr.mxu0 0.0
    %87 = vmatpush1.msra.mxu0 0.0
    %88 = vmatprep.subr.mxu0 0.0
    %89 = vmatpush1.msra.mxu0 0.0
    %90 = vmatprep.subr.mxu0 0.0
    %91 = vmatpush1.msra.mxu0 0.0
    %92 = vmatprep.subr.mxu0 0.0
    %93 = vmatpush1.msra.mxu0 0.0
    %94 = vmatprep.subr.mxu0 0.0
    %95 = vmatpush1.msra.mxu0 0.0
    %96 = vmatprep.subr.mxu0 0.0
    %97 = vmatpush1.msra.mxu0 0.0
    %98 = vmatprep.subr.mxu0 0.0
    %99 = vmatpush1.msra.mxu0 0.0
    %100 = vmatprep.subr.mxu0 0.0
    %101 = vmatpush1.msra.mxu0 0.0
    %102 = vmatprep.subr.mxu0 0.0
    %103 = vmatpush1.msra.mxu0 0.0
    %104 = vmatprep.subr.mxu0 0.0
    %105 = vmatpush1.msra.mxu0 0.0
    %106 = vmatprep.subr.mxu0 0.0
    %107 = vmatpush1.msra.mxu0 0.0
    %108 = vmatprep.subr.mxu0 0.0
    %109 = vmatpush1.msra.mxu0 0.0
    %110 = vmatprep.subr.mxu0 0.0
    %111 = vmatpush1.msra.mxu0 0.0
    %112 = vmatprep.subr.mxu0 0.0
    %113 = vmatpush1.msra.mxu0 0.0
    %114 = vmatprep.subr.mxu0 0.0
    %115 = vmatpush1.msra.mxu0 0.0
    %116 = vmatprep.subr.mxu0 0.0
    %117 = vmatpush1.msra.mxu0 0.0
    %118 = vmatprep.subr.mxu0 0.0
    %119 = vmatpush1.msra.mxu0 0.0
    %120 = vmatprep.subr.mxu0 0.0
    %121 = vmatpush1.msra.mxu0 0.0
    %122 = vmatprep.subr.mxu0 0.0
    %123 = vmatpush1.msra.mxu0 0.0
    %124 = vmatprep.subr.mxu0 0.0
    %125 = vmatpush1.msra.mxu0 0.0
    %126 = vmatprep.subr.mxu0 0.0
    %127 = vmatpush1.msra.mxu0 0.0
    %128 = vmatprep.subr.mxu0 0.0
    %129 = vmatpush1.msra.mxu0 0.0
    %130 = vmatprep.subr.mxu0 0.0
    %131 = vmatpush1.msra.mxu0 0.0
    %132 = vmatprep.subr.mxu0 0.0
    %133 = vmatpush1.msra.mxu0 0.0
    %134 = vmatprep.subr.mxu0 0.0
    %135 = vmatpush1.msra.mxu0 0.0
    %136 = vmatprep.subr.mxu0 0.0
    %137 = vmatpush1.msra.mxu0 0.0
    %138 = vmatprep.subr.mxu0 0.0
    %139 = vmatpush1.msra.mxu0 0.0
    %140 = vmatprep.mubr.f32.mxu0 0.0
    %141 = vmatmul.mubr.f32.gmra.mrb[0].mxu0 %v64
    %v142 = vpop.f32.mrb[0].mxu0
    %v143 = vadd.f32 %v47, %v142
    %v144 = vpop.f32.mrb[0].mxu0
    %v145 = vadd.f32 %v51, %v144
    %146 = vmatprep.mubr.f32.mxu0 0.0
    %147 = vmatmul.mubr.f32.gmra.mrb[0].mxu0 %v67
    %v148 = vpop.f32.mrb[0].mxu0
    %v149 = vadd.f32 %v47, %v148
    %v150 = vpop.f32.mrb[0].mxu0
    %v151 = vadd.f32 %v51, %v150
    %152 = vdwg.mxu0
    %153 = vmatprep.subr.mxu0 0.0
    %154 = vmatpush1.msra.mxu0 %v74
    %155 = vmatprep.subr.mxu0 0.0
    %156 = vmatpush1.msra.mxu0 0.0
    %157 = vmatprep.subr.mxu0 0.0
    %158 = vmatpush1.msra.mxu0 0.0
    %159 = vmatprep.subr.mxu0 0.0
    %160 = vmatpush1.msra.mxu0 0.0
    %161 = vmatprep.subr.mxu0 0.0
    %162 = vmatpush1.msra.mxu0 0.0
    %163 = vmatprep.subr.mxu0 0.0
    %164 = vmatpush1.msra.mxu0 0.0
    %165 = vmatprep.subr.mxu0 0.0
    %166 = vmatpush1.msra.mxu0 0.0
    %167 = vmatprep.subr.mxu0 0.0
    %168 = vmatpush1.msra.mxu0 0.0
    %169 = vmatprep.subr.mxu0 0.0
    %170 = vmatpush1.msra.mxu0 0.0
    %171 = vmatprep.subr.mxu0 0.0
    %172 = vmatpush1.msra.mxu0 0.0
    %173 = vmatprep.subr.mxu0 0.0
    %174 = vmatpush1.msra.mxu0 0.0
    %175 = vmatprep.subr.mxu0 0.0
    %176 = vmatpush1.msra.mxu0 0.0
    %177 = vmatprep.subr.mxu0 0.0
    %178 = vmatpush1.msra.mxu0 0.0
    %179 = vmatprep.subr.mxu0 0.0
    %180 = vmatpush1.msra.mxu0 0.0
    %181 = vmatprep.subr.mxu0 0.0
    %182 = vmatpush1.msra.mxu0 0.0
    %183 = vmatprep.subr.mxu0 0.0
    %184 = vmatpush1.msra.mxu0 0.0
    %185 = vmatprep.subr.mxu0 0.0
    %186 = vmatpush1.msra.mxu0 0.0
    %187 = vmatprep.subr.mxu0 0.0
    %188 = vmatpush1.msra.mxu0 0.0
    %189 = vmatprep.subr.mxu0 0.0
    %190 = vmatpush1.msra.mxu0 0.0
    %191 = vmatprep.subr.mxu0 0.0
    %192 = vmatpush1.msra.mxu0 0.0
    %193 = vmatprep.subr.mxu0 0.0
    %194 = vmatpush1.msra.mxu0 0.0
    %195 = vmatprep.subr.mxu0 0.0
    %196 = vmatpush1.msra.mxu0 0.0
    %197 = vmatprep.subr.mxu0 0.0
    %198 = vmatpush1.msra.mxu0 0.0
    %199 = vmatprep.subr.mxu0 0.0
    %200 = vmatpush1.msra.mxu0 0.0
    %201 = vmatprep.subr.mxu0 0.0
    %202 = vmatpush1.msra.mxu0 0.0
    %203 = vmatprep.subr.mxu0 0.0
    %204 = vmatpush1.msra.mxu0 0.0
    %205 = vmatprep.subr.mxu0 0.0
    %206 = vmatpush1.msra.mxu0 0.0
    %207 = vmatprep.subr.mxu0 0.0
    %208 = vmatpush1.msra.mxu0 0.0
    %209 = vmatprep.subr.mxu0 0.0
    %210 = vmatpush1.msra.mxu0 0.0
    %211 = vmatprep.subr.mxu0 0.0
    %212 = vmatpush1.msra.mxu0 0.0
    %213 = vmatprep.subr.mxu0 0.0
    %214 = vmatpush1.msra.mxu0 0.0
    %215 = vmatprep.subr.mxu0 0.0
    %216 = vmatpush1.msra.mxu0 0.0
    %217 = vmatprep.mubr.f32.mxu0 0.0
    %218 = vmatmul.mubr.f32.gmra.mrb[0].mxu0 %v64
    %v219 = vpop.f32.mrb[0].mxu0
    %v220 = vadd.f32 %v55, %v219
    %v221 = vpop.f32.mrb[0].mxu0
    %222 = vmatprep.mubr.f32.mxu0 0.0
    %223 = vmatmul.mubr.f32.gmra.mrb[0].mxu0 %v67
    %v224 = vpop.f32.mrb[0].mxu0
    %v225 = vadd.f32 %v55, %v224
    %v226 = vpop.f32.mrb[0].mxu0
    %227 = vdwg.mxu0
    %228 = vst [vmem:[%s3] sm:$0xff] %v143
    %229 = vst [vmem:[%s3 + $0x8] sm:$0xff] %v145
    %230 = vst [vmem:[%s3 + $0x10] sm:$0xff] %v220
    %231 = vst [vmem:[%s3 + $0x18] sm:$0xff] %v149
    %232 = vst [vmem:[%s3 + $0x20] sm:$0xff] %v151
    %233 = vst [vmem:[%s3 + $0x28] sm:$0xff] %v225
    // Predicated region
    $region22: #{recnet_forward.5} parent=1 // pred_check
      _
    $region23: #{recnet_forward.5} parent=1 // pred_check_branch
      %235 = sbr.rel (0) target = $region25
    $region24: #{recnet_forward.5} parent=1 // pred_region
      _
    $region25: #{recnet_forward.5} parent=1 // pred_fallthru
      _
    // Predicated region
    $region26: #{recnet_forward.5} parent=1 // pred_check
      _
    $region27: #{recnet_forward.5} parent=1 // pred_check_branch
      %237 = sbr.rel (0) target = $region29
    $region28: #{recnet_forward.5} parent=1 // pred_region
      _
    $region29: #{recnet_forward.5} parent=1 // pred_fallthru
      _
    %238 = vsyncpa [#allocation3], 1
    %239 = vsyncpa [#allocation5], 1

// kernel: recnet_forward.7
$region0: #{recnet_forward.7}
  #allocation0 [shape = 'u32[]', space=smem, size = 0x4, offset = 0x4, fixed_abs, tag = 'smem constant byte address 0x4 - core index']
  #allocation1 [shape = 'u32[144,128]{1,0:T(1,128)}', space=vmem, size = 0x12000, scoped, tag = 'internal scratch']
  %s0 = inlined_call_operand.vmem [shape: f32[16,128], index: 0, kind: input, shape index: {}]
  %s1 = inlined_call_operand.vmem [shape: f32[128,384], index: 1, kind: input, shape index: {}]
  %s2 = inlined_call_operand.vmem [shape: f32[1,384], index: 2, kind: input, shape index: {}]
  %s3 = inlined_call_operand.vmem [shape: f32[16,384], index: 3, kind: output, shape index: {}]
  %s4 = sld [smem:[#allocation0]]
  $region22: #{recnet_forward.7} parent=0
    _
  %s6 = ssub.s32 1, %s4
  %s7 = scalar_select 0, %s6, %s4
  // Predicated region
  $region2: #{recnet_forward.7} parent=0 // pred_check
    _
  $region3: #{recnet_forward.7} parent=0 // pred_check_branch
    %9 = sbr.rel (0) target = $region5
  $region4: #{recnet_forward.7} parent=0 // pred_region
    _
  $region5: #{recnet_forward.7} parent=0 // pred_fallthru
    _
  // Predicated region
  $region6: #{recnet_forward.7} parent=0 // pred_check
    _
  $region7: #{recnet_forward.7} parent=0 // pred_check_branch
    %11 = sbr.rel (0) target = $region9
  $region8: #{recnet_forward.7} parent=0 // pred_region
    _
  $region9: #{recnet_forward.7} parent=0 // pred_fallthru
    _
  // Predicated region
  $region10: #{recnet_forward.7} parent=0 // pred_check
    _
  $region11: #{recnet_forward.7} parent=0 // pred_check_branch
    %13 = sbr.rel (0) target = $region13
  $region12: #{recnet_forward.7} parent=0 // pred_region
    _
  $region13: #{recnet_forward.7} parent=0 // pred_fallthru
    _
  %v14 = vld [vmem:[%s0] sm:$0xff]
  %v15 = vld [vmem:[%s0 + $0x8] sm:$0xff]
  %v16 = vld [vmem:[%s1] sm:$0xff]
  %v17 = vld [vmem:[%s1 + $0x8] sm:$0xff]
  %v18 = vld [vmem:[%s1 + $0x10] sm:$0xff]
  %v19 = vld [vmem:[%s1 + $0x18] sm:$0xff]
  %v20 = vld [vmem:[%s1 + $0x20] sm:$0xff]
  %v21 = vld [vmem:[%s1 + $0x28] sm:$0xff]
  %v22 = vld [vmem:[%s1 + $0x30] sm:$0xff]
  %v23 = vld [vmem:[%s1 + $0x38] sm:$0xff]
  %v24 = vld [vmem:[%s1 + $0x40] sm:$0xff]
  %v25 = vld [vmem:[%s1 + $0x48] sm:$0xff]
  %v26 = vld [vmem:[%s1 + $0x50] sm:$0xff]
  %v27 = vld [vmem:[%s1 + $0x58] sm:$0xff]
  %v28 = vld [vmem:[%s1 + $0x60] sm:$0xff]
  %v29 = vld [vmem:[%s1 + $0x68] sm:$0xff]
  %v30 = vld [vmem:[%s1 + $0x70] sm:$0xff]
  %v31 = vld [vmem:[%s1 + $0x78] sm:$0xff]
  %v32 = vld [vmem:[%s1 + $0x80] sm:$0xff]
  %v33 = vld [vmem:[%s1 + $0x88] sm:$0xff]
  %v34 = vld [vmem:[%s1 + $0x90] sm:$0xff]
  %v35 = vld [vmem:[%s1 + $0x98] sm:$0xff]
  %v36 = vld [vmem:[%s1 + $0xa0] sm:$0xff]
  %v37 = vld [vmem:[%s1 + $0xa8] sm:$0xff]
  %v38 = vld [vmem:[%s1 + $0xb0] sm:$0xff]
  %v39 = vld [vmem:[%s1 + $0xb8] sm:$0xff]
  %v40 = vld [vmem:[%s1 + $0xc0] sm:$0xff]
  %v41 = vld [vmem:[%s1 + $0xc8] sm:$0xff]
  %v42 = vld [vmem:[%s1 + $0xd0] sm:$0xff]
  %v43 = vld [vmem:[%s1 + $0xd8] sm:$0xff]
  %v44 = vld [vmem:[%s1 + $0xe0] sm:$0xff]
  %v45 = vld [vmem:[%s1 + $0xe8] sm:$0xff]
  %v46 = vld [vmem:[%s1 + $0xf0] sm:$0xff]
  %v47 = vld [vmem:[%s1 + $0xf8] sm:$0xff]
  %v48 = vld [vmem:[%s1 + $0x100] sm:$0xff]
  %v49 = vld [vmem:[%s1 + $0x108] sm:$0xff]
  %v50 = vld [vmem:[%s1 + $0x110] sm:$0xff]
  %v51 = vld [vmem:[%s1 + $0x118] sm:$0xff]
  %v52 = vld [vmem:[%s1 + $0x120] sm:$0xff]
  %v53 = vld [vmem:[%s1 + $0x128] sm:$0xff]
  %v54 = vld [vmem:[%s1 + $0x130] sm:$0xff]
  %v55 = vld [vmem:[%s1 + $0x138] sm:$0xff]
  %v56 = vld [vmem:[%s1 + $0x140] sm:$0xff]
  %v57 = vld [vmem:[%s1 + $0x148] sm:$0xff]
  %v58 = vld [vmem:[%s1 + $0x150] sm:$0xff]
  %v59 = vld [vmem:[%s1 + $0x158] sm:$0xff]
  %v60 = vld [vmem:[%s1 + $0x160] sm:$0xff]
  %v61 = vld [vmem:[%s1 + $0x168] sm:$0xff]
  %v62 = vld [vmem:[%s1 + $0x170] sm:$0xff]
  %v63 = vld [vmem:[%s1 + $0x178] sm:$0xff]
  %v64 = vld [vmem:[%s2] sm:$0x7]
  %v66 = vlaneseq
  %v67 = vshrl.u32 %v66, 7
  %v68 = vsub.s32 0, %v67
  %v69 = vrot.slane %v64, %v68
  %v70 = vlaneseq
  %v71 = vshrl.u32 %v70, 7
  %v72 = vsub.s32 1, %v71
  %v73 = vrot.slane %v64, %v72
  %v74 = vlaneseq
  %v75 = vshrl.u32 %v74, 7
  %v76 = vsub.s32 2, %v75
  %v77 = vrot.slane %v64, %v76
  %81 = vmatprep.subr.mxu0 %v17
  %82 = vmatpush1.msra.mxu0 %v16
  %83 = vmatprep.subr.mxu0 %v20
  %84 = vmatpush1.msra.mxu0 %v19
  %85 = vmatprep.subr.mxu0 %v23
  %86 = vmatpush1.msra.mxu0 %v22
  %87 = vmatprep.subr.mxu0 %v26
  %88 = vmatpush1.msra.mxu0 %v25
  %89 = vmatprep.subr.mxu0 %v29
  %90 = vmatpush1.msra.mxu0 %v28
  %91 = vmatprep.subr.mxu0 %v32
  %92 = vmatpush1.msra.mxu0 %v31
  %93 = vmatprep.subr.mxu0 %v35
  %94 = vmatpush1.msra.mxu0 %v34
  %95 = vmatprep.subr.mxu0 %v38
  %96 = vmatpush1.msra.mxu0 %v37
  %97 = vmatprep.subr.mxu0 %v41
  %98 = vmatpush1.msra.mxu0 %v40
  %99 = vmatprep.subr.mxu0 %v44
  %100 = vmatpush1.msra.mxu0 %v43
  %101 = vmatprep.subr.mxu0 %v47
  %102 = vmatpush1.msra.mxu0 %v46
  %103 = vmatprep.subr.mxu0 %v50
  %104 = vmatpush1.msra.mxu0 %v49
  %105 = vmatprep.subr.mxu0 %v53
  %106 = vmatpush1.msra.mxu0 %v52
  %107 = vmatprep.subr.mxu0 %v56
  %108 = vmatpush1.msra.mxu0 %v55
  %109 = vmatprep.subr.mxu0 %v59
  %110 = vmatpush1.msra.mxu0 %v58
  %111 = vmatprep.subr.mxu0 %v62
  %112 = vmatpush1.msra.mxu0 %v61
  %113 = vmatprep.subr.mxu0 0.0
  %114 = vmatpush1.msra.mxu0 0.0
  %115 = vmatprep.subr.mxu0 0.0
  %116 = vmatpush1.msra.mxu0 0.0
  %117 = vmatprep.subr.mxu0 0.0
  %118 = vmatpush1.msra.mxu0 0.0
  %119 = vmatprep.subr.mxu0 0.0
  %120 = vmatpush1.msra.mxu0 0.0
  %121 = vmatprep.subr.mxu0 0.0
  %122 = vmatpush1.msra.mxu0 0.0
  %123 = vmatprep.subr.mxu0 0.0
  %124 = vmatpush1.msra.mxu0 0.0
  %125 = vmatprep.subr.mxu0 0.0
  %126 = vmatpush1.msra.mxu0 0.0
  %127 = vmatprep.subr.mxu0 0.0
  %128 = vmatpush1.msra.mxu0 0.0
  %129 = vmatprep.subr.mxu0 0.0
  %130 = vmatpush1.msra.mxu0 0.0
  %131 = vmatprep.subr.mxu0 0.0
  %132 = vmatpush1.msra.mxu0 0.0
  %133 = vmatprep.subr.mxu0 0.0
  %134 = vmatpush1.msra.mxu0 0.0
  %135 = vmatprep.subr.mxu0 0.0
  %136 = vmatpush1.msra.mxu0 0.0
  %137 = vmatprep.subr.mxu0 0.0
  %138 = vmatpush1.msra.mxu0 0.0
  %139 = vmatprep.subr.mxu0 0.0
  %140 = vmatpush1.msra.mxu0 0.0
  %141 = vmatprep.subr.mxu0 0.0
  %142 = vmatpush1.msra.mxu0 0.0
  %143 = vmatprep.subr.mxu0 0.0
  %144 = vmatpush1.msra.mxu0 0.0
  %145 = vmatprep.mubr.f32.mxu0 0.0
  %146 = vmatmul.mubr.f32.gmra.mrb[0].mxu0 %v14
  %v147 = vpop.f32.mrb[0].mxu0
  %v148 = vadd.f32 %v69, %v147
  %v149 = vpop.f32.mrb[0].mxu0
  %v150 = vadd.f32 %v73, %v149
  %151 = vmatprep.mubr.f32.mxu0 0.0
  %152 = vmatmul.mubr.f32.gmra.mrb[0].mxu0 %v15
  %v153 = vpop.f32.mrb[0].mxu0
  %v154 = vadd.f32 %v69, %v153
  %v155 = vpop.f32.mrb[0].mxu0
  %v156 = vadd.f32 %v73, %v155
  %157 = vdwg.mxu0
  %158 = vmatprep.subr.mxu0 0.0
  %159 = vmatpush1.msra.mxu0 %v18
  %160 = vmatprep.subr.mxu0 0.0
  %161 = vmatpush1.msra.mxu0 %v21
  %162 = vmatprep.subr.mxu0 0.0
  %163 = vmatpush1.msra.mxu0 %v24
  %164 = vmatprep.subr.mxu0 0.0
  %165 = vmatpush1.msra.mxu0 %v27
  %166 = vmatprep.subr.mxu0 0.0
  %167 = vmatpush1.msra.mxu0 %v30
  %168 = vmatprep.subr.mxu0 0.0
  %169 = vmatpush1.msra.mxu0 %v33
  %170 = vmatprep.subr.mxu0 0.0
  %171 = vmatpush1.msra.mxu0 %v36
  %172 = vmatprep.subr.mxu0 0.0
  %173 = vmatpush1.msra.mxu0 %v39
  %174 = vmatprep.subr.mxu0 0.0
  %175 = vmatpush1.msra.mxu0 %v42
  %176 = vmatprep.subr.mxu0 0.0
  %177 = vmatpush1.msra.mxu0 %v45
  %178 = vmatprep.subr.mxu0 0.0
  %179 = vmatpush1.msra.mxu0 %v48
  %180 = vmatprep.subr.mxu0 0.0
  %181 = vmatpush1.msra.mxu0 %v51
  %182 = vmatprep.subr.mxu0 0.0
  %183 = vmatpush1.msra.mxu0 %v54
  %184 = vmatprep.subr.mxu0 0.0
  %185 = vmatpush1.msra.mxu0 %v57
  %186 = vmatprep.subr.mxu0 0.0
  %187 = vmatpush1.msra.mxu0 %v60
  %188 = vmatprep.subr.mxu0 0.0
  %189 = vmatpush1.msra.mxu0 %v63
  %190 = vmatprep.subr.mxu0 0.0
  %191 = vmatpush1.msra.mxu0 0.0
  %192 = vmatprep.subr.mxu0 0.0
  %193 = vmatpush1.msra.mxu0 0.0
  %194 = vmatprep.subr.mxu0 0.0
  %195 = vmatpush1.msra.mxu0 0.0
  %196 = vmatprep.subr.mxu0 0.0
  %197 = vmatpush1.msra.mxu0 0.0
  %198 = vmatprep.subr.mxu0 0.0
  %199 = vmatpush1.msra.mxu0 0.0
  %200 = vmatprep.subr.mxu0 0.0
  %201 = vmatpush1.msra.mxu0 0.0
  %202 = vmatprep.subr.mxu0 0.0
  %203 = vmatpush1.msra.mxu0 0.0
  %204 = vmatprep.subr.mxu0 0.0
  %205 = vmatpush1.msra.mxu0 0.0
  %206 = vmatprep.subr.mxu0 0.0
  %207 = vmatpush1.msra.mxu0 0.0
  %208 = vmatprep.subr.mxu0 0.0
  %209 = vmatpush1.msra.mxu0 0.0
  %210 = vmatprep.subr.mxu0 0.0
  %211 = vmatpush1.msra.mxu0 0.0
  %212 = vmatprep.subr.mxu0 0.0
  %213 = vmatpush1.msra.mxu0 0.0
  %214 = vmatprep.subr.mxu0 0.0
  %215 = vmatpush1.msra.mxu0 0.0
  %216 = vmatprep.subr.mxu0 0.0
  %217 = vmatpush1.msra.mxu0 0.0
  %218 = vmatprep.subr.mxu0 0.0
  %219 = vmatpush1.msra.mxu0 0.0
  %220 = vmatprep.subr.mxu0 0.0
  %221 = vmatpush1.msra.mxu0 0.0
  %222 = vmatprep.mubr.f32.mxu0 0.0
  %223 = vmatmul.mubr.f32.gmra.mrb[0].mxu0 %v14
  %v224 = vpop.f32.mrb[0].mxu0
  %v225 = vadd.f32 %v77, %v224
  %v226 = vpop.f32.mrb[0].mxu0
  %227 = vmatprep.mubr.f32.mxu0 0.0
  %228 = vmatmul.mubr.f32.gmra.mrb[0].mxu0 %v15
  %v229 = vpop.f32.mrb[0].mxu0
  %v230 = vadd.f32 %v77, %v229
  %v231 = vpop.f32.mrb[0].mxu0
  %232 = vdwg.mxu0
  %233 = vst [vmem:[%s3] sm:$0xff] %v148
  %234 = vst [vmem:[%s3 + $0x8] sm:$0xff] %v150
  %235 = vst [vmem:[%s3 + $0x10] sm:$0xff] %v225
  %236 = vst [vmem:[%s3 + $0x18] sm:$0xff] %v154
  %237 = vst [vmem:[%s3 + $0x20] sm:$0xff] %v156
  %238 = vst [vmem:[%s3 + $0x28] sm:$0xff] %v230
  // Predicated region
  $region14: #{recnet_forward.7} parent=0 // pred_check
    _
  $region15: #{recnet_forward.7} parent=0 // pred_check_branch
    %240 = sbr.rel (0) target = $region17
  $region16: #{recnet_forward.7} parent=0 // pred_region
    _
  $region17: #{recnet_forward.7} parent=0 // pred_fallthru
    _
  // Predicated region
  $region18: #{recnet_forward.7} parent=0 // pred_check
    _
  $region19: #{recnet_forward.7} parent=0 // pred_check_branch
    %242 = sbr.rel (0) target = $region21
  $region20: #{recnet_forward.7} parent=0 // pred_region
    _
  $region21: #{recnet_forward.7} parent=0 // pred_fallthru
    _

// kernel: recnet_forward.9
$region0: #{recnet_forward.9}
  #allocation0 [shape = 'u32[]', space=smem, size = 0x4, offset = 0x4, fixed_abs, tag = 'smem constant byte address 0x4 - core index']
  #allocation1 [shape = 'u32[144,128]{1,0:T(1,128)}', space=vmem, size = 0x12000, scoped, tag = 'internal scratch']
  %s0 = inlined_call_operand.vmem [shape: f32[6,128], index: 0, kind: input, shape index: {}]
  %s1 = inlined_call_operand.vmem [shape: f32[128,128], index: 1, kind: input, shape index: {}]
  %s2 = inlined_call_operand.vmem [shape: f32[1,128], index: 2, kind: input, shape index: {}]
  %s3 = inlined_call_operand.vmem [shape: f32[6,128], index: 3, kind: output, shape index: {}]
  %s4 = sld [smem:[#allocation0]]
  $region22: #{recnet_forward.9} parent=0
    _
  %s6 = ssub.s32 1, %s4
  %s7 = scalar_select 0, %s6, %s4
  // Predicated region
  $region2: #{recnet_forward.9} parent=0 // pred_check
    _
  $region3: #{recnet_forward.9} parent=0 // pred_check_branch
    %9 = sbr.rel (0) target = $region5
  $region4: #{recnet_forward.9} parent=0 // pred_region
    _
  $region5: #{recnet_forward.9} parent=0 // pred_fallthru
    _
  // Predicated region
  $region6: #{recnet_forward.9} parent=0 // pred_check
    _
  $region7: #{recnet_forward.9} parent=0 // pred_check_branch
    %11 = sbr.rel (0) target = $region9
  $region8: #{recnet_forward.9} parent=0 // pred_region
    _
  $region9: #{recnet_forward.9} parent=0 // pred_fallthru
    _
  // Predicated region
  $region10: #{recnet_forward.9} parent=0 // pred_check
    _
  $region11: #{recnet_forward.9} parent=0 // pred_check_branch
    %13 = sbr.rel (0) target = $region13
  $region12: #{recnet_forward.9} parent=0 // pred_region
    _
  $region13: #{recnet_forward.9} parent=0 // pred_fallthru
    _
  %v14 = vld [vmem:[%s0] sm:$0x3f]
  %v15 = vmax.f32 %v14, 0.0
  %v16 = vld [vmem:[%s1] sm:$0xff]
  %v17 = vld [vmem:[%s1 + $0x8] sm:$0xff]
  %v18 = vld [vmem:[%s1 + $0x10] sm:$0xff]
  %v19 = vld [vmem:[%s1 + $0x18] sm:$0xff]
  %v20 = vld [vmem:[%s1 + $0x20] sm:$0xff]
  %v21 = vld [vmem:[%s1 + $0x28] sm:$0xff]
  %v22 = vld [vmem:[%s1 + $0x30] sm:$0xff]
  %v23 = vld [vmem:[%s1 + $0x38] sm:$0xff]
  %v24 = vld [vmem:[%s1 + $0x40] sm:$0xff]
  %v25 = vld [vmem:[%s1 + $0x48] sm:$0xff]
  %v26 = vld [vmem:[%s1 + $0x50] sm:$0xff]
  %v27 = vld [vmem:[%s1 + $0x58] sm:$0xff]
  %v28 = vld [vmem:[%s1 + $0x60] sm:$0xff]
  %v29 = vld [vmem:[%s1 + $0x68] sm:$0xff]
  %v30 = vld [vmem:[%s1 + $0x70] sm:$0xff]
  %v31 = vld [vmem:[%s1 + $0x78] sm:$0xff]
  %v32 = vld [vmem:[%s2] sm:$0x1]
  %v34 = vlaneseq
  %v35 = vshrl.u32 %v34, 7
  %v36 = vsub.s32 0, %v35
  %v37 = vrot.slane %v32, %v36
  %39 = vmatprep.subr.mxu0 0.0
  %40 = vmatpush1.msra.mxu0 %v16
  %41 = vmatprep.subr.mxu0 0.0
  %42 = vmatpush1.msra.mxu0 %v17
  %43 = vmatprep.subr.mxu0 0.0
  %44 = vmatpush1.msra.mxu0 %v18
  %45 = vmatprep.subr.mxu0 0.0
  %46 = vmatpush1.msra.mxu0 %v19
  %47 = vmatprep.subr.mxu0 0.0
  %48 = vmatpush1.msra.mxu0 %v20
  %49 = vmatprep.subr.mxu0 0.0
  %50 = vmatpush1.msra.mxu0 %v21
  %51 = vmatprep.subr.mxu0 0.0
  %52 = vmatpush1.msra.mxu0 %v22
  %53 = vmatprep.subr.mxu0 0.0
  %54 = vmatpush1.msra.mxu0 %v23
  %55 = vmatprep.subr.mxu0 0.0
  %56 = vmatpush1.msra.mxu0 %v24
  %57 = vmatprep.subr.mxu0 0.0
  %58 = vmatpush1.msra.mxu0 %v25
  %59 = vmatprep.subr.mxu0 0.0
  %60 = vmatpush1.msra.mxu0 %v26
  %61 = vmatprep.subr.mxu0 0.0
  %62 = vmatpush1.msra.mxu0 %v27
  %63 = vmatprep.subr.mxu0 0.0
  %64 = vmatpush1.msra.mxu0 %v28
  %65 = vmatprep.subr.mxu0 0.0
  %66 = vmatpush1.msra.mxu0 %v29
  %67 = vmatprep.subr.mxu0 0.0
  %68 = vmatpush1.msra.mxu0 %v30
  %69 = vmatprep.subr.mxu0 0.0
  %70 = vmatpush1.msra.mxu0 %v31
  %71 = vmatprep.subr.mxu0 0.0
  %72 = vmatpush1.msra.mxu0 0.0
  %73 = vmatprep.subr.mxu0 0.0
  %74 = vmatpush1.msra.mxu0 0.0
  %75 = vmatprep.subr.mxu0 0.0
  %76 = vmatpush1.msra.mxu0 0.0
  %77 = vmatprep.subr.mxu0 0.0
  %78 = vmatpush1.msra.mxu0 0.0
  %79 = vmatprep.subr.mxu0 0.0
  %80 = vmatpush1.msra.mxu0 0.0
  %81 = vmatprep.subr.mxu0 0.0
  %82 = vmatpush1.msra.mxu0 0.0
  %83 = vmatprep.subr.mxu0 0.0
  %84 = vmatpush1.msra.mxu0 0.0
  %85 = vmatprep.subr.mxu0 0.0
  %86 = vmatpush1.msra.mxu0 0.0
  %87 = vmatprep.subr.mxu0 0.0
  %88 = vmatpush1.msra.mxu0 0.0
  %89 = vmatprep.subr.mxu0 0.0
  %90 = vmatpush1.msra.mxu0 0.0
  %91 = vmatprep.subr.mxu0 0.0
  %92 = vmatpush1.msra.mxu0 0.0
  %93 = vmatprep.subr.mxu0 0.0
  %94 = vmatpush1.msra.mxu0 0.0
  %95 = vmatprep.subr.mxu0 0.0
  %96 = vmatpush1.msra.mxu0 0.0
  %97 = vmatprep.subr.mxu0 0.0
  %98 = vmatpush1.msra.mxu0 0.0
  %99 = vmatprep.subr.mxu0 0.0
  %100 = vmatpush1.msra.mxu0 0.0
  %101 = vmatprep.subr.mxu0 0.0
  %102 = vmatpush1.msra.mxu0 0.0
  %103 = vmatprep.mubr.f32.mxu0 0.0
  %104 = vmatmul.mubr.f32.gmra.mrb[0].mxu0 %v15
  %v105 = vpop.f32.mrb[0].mxu0
  %v106 = vadd.f32 %v37, %v105
  %v107 = vpop.f32.mrb[0].mxu0
  %108 = vdwg.mxu0
  %109 = vst [vmem:[%s3] sm:$0x3f] %v106
  // Predicated region
  $region14: #{recnet_forward.9} parent=0 // pred_check
    _
  $region15: #{recnet_forward.9} parent=0 // pred_check_branch
    %111 = sbr.rel (0) target = $region17
  $region16: #{recnet_forward.9} parent=0 // pred_region
    _
  $region17: #{recnet_forward.9} parent=0 // pred_fallthru
    _
  // Predicated region
  $region18: #{recnet_forward.9} parent=0 // pred_check
    _
  $region19: #{recnet_forward.9} parent=0 // pred_check_branch
    %113 = sbr.rel (0) target = $region21
  $region20: #{recnet_forward.9} parent=0 // pred_region
    _
  $region21: #{recnet_forward.9} parent=0 // pred_fallthru
    _

// kernel: recnet_forward.6
$region0: #{recnet_forward.6}
  #allocation0 [shape = 'u32[]', space=smem, size = 0x4, offset = 0x4, fixed_abs, tag = 'smem constant byte address 0x4 - core index']
  #allocation1 [shape = 'u32[144,128]{1,0:T(1,128)}', space=vmem, size = 0x12000, scoped, tag = 'internal scratch']
  #allocation2 [shape = 'f32[2,128]{1,0:T(2,128)}', space=vmem, size = 0x400, scoped, tag = 'scratch operand']
  %s0 = inlined_call_operand.vmem [shape: f32[8,2,384], index: 0, kind: input, shape index: {}]
  %s1 = inlined_call_operand.hbm [shape: f32[128,384], index: 1, kind: input, shape index: {}]
  %s2 = inlined_call_operand.hbm [shape: f32[1,384], index: 2, kind: input, shape index: {}]
  %s3 = inlined_call_operand.vmem [shape: f32[2,128], index: 3, kind: input, shape index: {}]
  %s4 = inlined_call_operand.vmem [shape: f32[8,2,128], index: 4, kind: output, shape index: {0}]
  %s5 = inlined_call_operand.vmem [shape: f32[2,128], index: 5, kind: output, shape index: {1}]
  %6 = xla_tuple %s4, %s5
  %s7 = sld [smem:[#allocation0]]
  $region50: #{recnet_forward.6} parent=0
    _
  %s9 = ssub.s32 1, %s7
  %s10 = scalar_select 0, %s9, %s7
  $region1: #{recnet_forward.6} parent=0
    #allocation3 [shape = 'u8[196608]{0}', space=vmem, size = 0x30000, scoped, tag = 'input window, operand 1, single buffered']
    #allocation4 [shape = 's32[1]{0}', space=sflag, size = 0x4, scoped, tag = 'scoped memory for recnet_forward.6']
    #allocation5 [shape = 'u8[1536]{0}', space=vmem, size = 0x800, scoped, tag = 'input window, operand 2, single buffered']
    #allocation6 [shape = 's32[1]{0}', space=sflag, size = 0x4, scoped, tag = 'scoped memory for recnet_forward.6']
    %11 = vsyncpa [#allocation4], 0
    %12 = vsyncpa [#allocation6], 0
    // Predicated region
    $region2: #{recnet_forward.6} parent=1 // pred_check
      _
    $region3: #{recnet_forward.6} parent=1 // pred_check_branch
      %14 = sbr.rel (0) target = $region5
    $region4: #{recnet_forward.6} parent=1 // pred_region
      _
    $region5: #{recnet_forward.6} parent=1 // pred_fallthru
      _
    // Predicated region
    $region6: #{recnet_forward.6} parent=1 // pred_check
      _
    $region7: #{recnet_forward.6} parent=1 // pred_check_branch
      %16 = sbr.rel (0) target = $region9
    $region8: #{recnet_forward.6} parent=1 // pred_region
      %s18 = ssub.s32 6144, 6144
      %19 = vsyncadd [#allocation4], %s18
      %s20 = sshll.u32 [#allocation3], 4
      %s21 = int_to_ptr.vmem [resolvable:$true] %s20
      %26 = dma.hbm_to_vmem [thread:$0]  %s1, 6144, %s21, [#allocation4], 384, 384, 24
    $region9: #{recnet_forward.6} parent=1 // pred_fallthru
      _
    // Predicated region
    $region10: #{recnet_forward.6} parent=1 // pred_check
      _
    $region11: #{recnet_forward.6} parent=1 // pred_check_branch
      %28 = sbr.rel (0) target = $region13
    $region12: #{recnet_forward.6} parent=1 // pred_region
      %s30 = ssub.s32 48, 48
      %31 = vsyncadd [#allocation6], %s30
      %s33 = sshll.u32 [#allocation5], 4
      %s34 = int_to_ptr.vmem [resolvable:$true] %s33
      %36 = dma.hbm_to_vmem [thread:$0]  %s2, 48, %s34, [#allocation6]
    $region13: #{recnet_forward.6} parent=1 // pred_fallthru
      _
    // Predicated region
    $region14: #{recnet_forward.6} parent=1 // pred_check
      _
    $region15: #{recnet_forward.6} parent=1 // pred_check_branch
      %38 = sbr.rel (0) target = $region17
    $region16: #{recnet_forward.6} parent=1 // pred_region
      _
    $region17: #{recnet_forward.6} parent=1 // pred_fallthru
      _
    // Predicated region
    $region18: #{recnet_forward.6} parent=1 // pred_check
      _
    $region19: #{recnet_forward.6} parent=1 // pred_check_branch
      %40 = sbr.rel (0) target = $region21
    $region20: #{recnet_forward.6} parent=1 // pred_region
      %41 = dma.done [#allocation4], 6144
    $region21: #{recnet_forward.6} parent=1 // pred_fallthru
      _
    // Predicated region
    $region22: #{recnet_forward.6} parent=1 // pred_check
      _
    $region23: #{recnet_forward.6} parent=1 // pred_check_branch
      %43 = sbr.rel (0) target = $region25
    $region24: #{recnet_forward.6} parent=1 // pred_region
      %44 = dma.done [#allocation6], 48
    $region25: #{recnet_forward.6} parent=1 // pred_fallthru
      _
    %p45 = scmp.eq.s32.totalorder 0, 0
    // Predicated region
    $region26: #{recnet_forward.6} parent=1 // pred_check
      %p46 = pneg %p45
    $region27: #{recnet_forward.6} parent=1 // pred_check_branch
      %48 = sbr.rel (%p46) target = $region29
    $region28: #{recnet_forward.6} parent=1 // pred_region
      %v49 = vld [vmem:[%s3] sm:$0x3]
      %50 = vst [vmem:[#allocation2] sm:$0x3] %v49
    $region29: #{recnet_forward.6} parent=1 // pred_fallthru
      _
    %v51 = vld [vmem:[#allocation5] sm:$0x7]
    %v53 = vlaneseq
    %v54 = vshrl.u32 %v53, 7
    %v55 = vsub.s32 0, %v54
    %v56 = vrot.slane %v51, %v55
    %v57 = vlaneseq
    %v58 = vshrl.u32 %v57, 7
    %v59 = vsub.s32 1, %v58
    %v60 = vrot.slane %v51, %v59
    %v61 = vlaneseq
    %v62 = vshrl.u32 %v61, 7
    %v63 = vsub.s32 2, %v62
    %v64 = vrot.slane %v51, %v63
    %v68 = vld [vmem:[#allocation2] sm:$0x3]
    %v69 = vld [vmem:[%s0] sm:$0x3f]
    %v70 = vld [vmem:[#allocation3] sm:$0xff]
    %v71 = vld [vmem:[#allocation3 + $0x8] sm:$0xff]
    %v72 = vld [vmem:[#allocation3 + $0x10] sm:$0xff]
    %v73 = vld [vmem:[#allocation3 + $0x18] sm:$0xff]
    %v74 = vld [vmem:[#allocation3 + $0x20] sm:$0xff]
    %v75 = vld [vmem:[#allocation3 + $0x28] sm:$0xff]
    %v76 = vld [vmem:[#allocation3 + $0x30] sm:$0xff]
    %v77 = vld [vmem:[#allocation3 + $0x38] sm:$0xff]
    %v78 = vld [vmem:[#allocation3 + $0x40] sm:$0xff]
    %v79 = vld [vmem:[#allocation3 + $0x48] sm:$0xff]
    %v80 = vld [vmem:[#allocation3 + $0x50] sm:$0xff]
    %v81 = vld [vmem:[#allocation3 + $0x58] sm:$0xff]
    %v82 = vld [vmem:[#allocation3 + $0x60] sm:$0xff]
    %v83 = vld [vmem:[#allocation3 + $0x68] sm:$0xff]
    %v84 = vld [vmem:[#allocation3 + $0x70] sm:$0xff]
    %v85 = vld [vmem:[#allocation3 + $0x78] sm:$0xff]
    %v86 = vld [vmem:[#allocation3 + $0x80] sm:$0xff]
    %v87 = vld [vmem:[#allocation3 + $0x88] sm:$0xff]
    %v88 = vld [vmem:[#allocation3 + $0x90] sm:$0xff]
    %v89 = vld [vmem:[#allocation3 + $0x98] sm:$0xff]
    %v90 = vld [vmem:[#allocation3 + $0xa0] sm:$0xff]
    %v91 = vld [vmem:[#allocation3 + $0xa8] sm:$0xff]
    %v92 = vld [vmem:[#allocation3 + $0xb0] sm:$0xff]
    %v93 = vld [vmem:[#allocation3 + $0xb8] sm:$0xff]
    %v94 = vld [vmem:[#allocation3 + $0xc0] sm:$0xff]
    %v95 = vld [vmem:[#allocation3 + $0xc8] sm:$0xff]
    %v96 = vld [vmem:[#allocation3 + $0xd0] sm:$0xff]
    %v97 = vld [vmem:[#allocation3 + $0xd8] sm:$0xff]
    %v98 = vld [vmem:[#allocation3 + $0xe0] sm:$0xff]
    %v99 = vld [vmem:[#allocation3 + $0xe8] sm:$0xff]
    %v100 = vld [vmem:[#allocation3 + $0xf0] sm:$0xff]
    %v101 = vld [vmem:[#allocation3 + $0xf8] sm:$0xff]
    %v102 = vld [vmem:[#allocation3 + $0x100] sm:$0xff]
    %v103 = vld [vmem:[#allocation3 + $0x108] sm:$0xff]
    %v104 = vld [vmem:[#allocation3 + $0x110] sm:$0xff]
    %v105 = vld [vmem:[#allocation3 + $0x118] sm:$0xff]
    %v106 = vld [vmem:[#allocation3 + $0x120] sm:$0xff]
    %v107 = vld [vmem:[#allocation3 + $0x128] sm:$0xff]
    %v108 = vld [vmem:[#allocation3 + $0x130] sm:$0xff]
    %v109 = vld [vmem:[#allocation3 + $0x138] sm:$0xff]
    %v110 = vld [vmem:[#allocation3 + $0x140] sm:$0xff]
    %v111 = vld [vmem:[#allocation3 + $0x148] sm:$0xff]
    %v112 = vld [vmem:[#allocation3 + $0x150] sm:$0xff]
    %v113 = vld [vmem:[#allocation3 + $0x158] sm:$0xff]
    %v114 = vld [vmem:[#allocation3 + $0x160] sm:$0xff]
    %v115 = vld [vmem:[#allocation3 + $0x168] sm:$0xff]
    %v116 = vld [vmem:[#allocation3 + $0x170] sm:$0xff]
    %v117 = vld [vmem:[#allocation3 + $0x178] sm:$0xff]
    %118 = vmatprep.subr.mxu0 %v71
    %119 = vmatpush1.msra.mxu0 %v70
    %120 = vmatprep.subr.mxu0 %v74
    %121 = vmatpush1.msra.mxu0 %v73
    %122 = vmatprep.subr.mxu0 %v77
    %123 = vmatpush1.msra.mxu0 %v76
    %124 = vmatprep.subr.mxu0 %v80
    %125 = vmatpush1.msra.mxu0 %v79
    %126 = vmatprep.subr.mxu0 %v83
    %127 = vmatpush1.msra.mxu0 %v82
    %128 = vmatprep.subr.mxu0 %v86
    %129 = vmatpush1.msra.mxu0 %v85
    %130 = vmatprep.subr.mxu0 %v89
    %131 = vmatpush1.msra.mxu0 %v88
    %132 = vmatprep.subr.mxu0 %v92
    %133 = vmatpush1.msra.mxu0 %v91
    %134 = vmatprep.subr.mxu0 %v95
    %135 = vmatpush1.msra.mxu0 %v94
    %136 = vmatprep.subr.mxu0 %v98
    %137 = vmatpush1.msra.mxu0 %v97
    %138 = vmatprep.subr.mxu0 %v101
    %139 = vmatpush1.msra.mxu0 %v100
    %140 = vmatprep.subr.mxu0 %v104
    %141 = vmatpush1.msra.mxu0 %v103
    %142 = vmatprep.subr.mxu0 %v107
    %143 = vmatpush1.msra.mxu0 %v106
    %144 = vmatprep.subr.mxu0 %v110
    %145 = vmatpush1.msra.mxu0 %v109
    %146 = vmatprep.subr.mxu0 %v113
    %147 = vmatpush1.msra.mxu0 %v112
    %148 = vmatprep.subr.mxu0 %v116
    %149 = vmatpush1.msra.mxu0 %v115
    %150 = vmatprep.subr.mxu0 0.0
    %151 = vmatpush1.msra.mxu0 0.0
    %152 = vmatprep.subr.mxu0 0.0
    %153 = vmatpush1.msra.mxu0 0.0
    %154 = vmatprep.subr.mxu0 0.0
    %155 = vmatpush1.msra.mxu0 0.0
    %156 = vmatprep.subr.mxu0 0.0
    %157 = vmatpush1.msra.mxu0 0.0
    %158 = vmatprep.subr.mxu0 0.0
    %159 = vmatpush1.msra.mxu0 0.0
    %160 = vmatprep.subr.mxu0 0.0
    %161 = vmatpush1.msra.mxu0 0.0
    %162 = vmatprep.subr.mxu0 0.0
    %163 = vmatpush1.msra.mxu0 0.0
    %164 = vmatprep.subr.mxu0 0.0
    %165 = vmatpush1.msra.mxu0 0.0
    %166 = vmatprep.subr.mxu0 0.0
    %167 = vmatpush1.msra.mxu0 0.0
    %168 = vmatprep.subr.mxu0 0.0
    %169 = vmatpush1.msra.mxu0 0.0
    %170 = vmatprep.subr.mxu0 0.0
    %171 = vmatpush1.msra.mxu0 0.0
    %172 = vmatprep.subr.mxu0 0.0
    %173 = vmatpush1.msra.mxu0 0.0
    %174 = vmatprep.subr.mxu0 0.0
    %175 = vmatpush1.msra.mxu0 0.0
    %176 = vmatprep.subr.mxu0 0.0
    %177 = vmatpush1.msra.mxu0 0.0
    %178 = vmatprep.subr.mxu0 0.0
    %179 = vmatpush1.msra.mxu0 0.0
    %180 = vmatprep.subr.mxu0 0.0
    %181 = vmatpush1.msra.mxu0 0.0
    %182 = vmatprep.mubr.f32.mxu0 0.0
    %183 = vmatmul.mubr.f32.gmra.mrb[0].mxu0 %v68
    %v184 = vpop.f32.mrb[0].mxu0
    %v185 = vadd.f32 %v56, %v184
    %v186 = vpop.f32.mrb[0].mxu0
    %v187 = vadd.f32 %v60, %v186
    %188 = vdwg.mxu0
    %189 = vmatprep.subr.mxu0 0.0
    %190 = vmatpush1.msra.mxu0 %v72
    %191 = vmatprep.subr.mxu0 0.0
    %192 = vmatpush1.msra.mxu0 %v75
    %193 = vmatprep.subr.mxu0 0.0
    %194 = vmatpush1.msra.mxu0 %v78
    %195 = vmatprep.subr.mxu0 0.0
    %196 = vmatpush1.msra.mxu0 %v81
    %197 = vmatprep.subr.mxu0 0.0
    %198 = vmatpush1.msra.mxu0 %v84
    %199 = vmatprep.subr.mxu0 0.0
    %200 = vmatpush1.msra.mxu0 %v87
    %201 = vmatprep.subr.mxu0 0.0
    %202 = vmatpush1.msra.mxu0 %v90
    %203 = vmatprep.subr.mxu0 0.0
    %204 = vmatpush1.msra.mxu0 %v93
    %205 = vmatprep.subr.mxu0 0.0
    %206 = vmatpush1.msra.mxu0 %v96
    %207 = vmatprep.subr.mxu0 0.0
    %208 = vmatpush1.msra.mxu0 %v99
    %209 = vmatprep.subr.mxu0 0.0
    %210 = vmatpush1.msra.mxu0 %v102
    %211 = vmatprep.subr.mxu0 0.0
    %212 = vmatpush1.msra.mxu0 %v105
    %213 = vmatprep.subr.mxu0 0.0
    %214 = vmatpush1.msra.mxu0 %v108
    %215 = vmatprep.subr.mxu0 0.0
    %216 = vmatpush1.msra.mxu0 %v111
    %217 = vmatprep.subr.mxu0 0.0
    %218 = vmatpush1.msra.mxu0 %v114
    %219 = vmatprep.subr.mxu0 0.0
    %220 = vmatpush1.msra.mxu0 %v117
    %221 = vmatprep.subr.mxu0 0.0
    %222 = vmatpush1.msra.mxu0 0.0
    %223 = vmatprep.subr.mxu0 0.0
    %224 = vmatpush1.msra.mxu0 0.0
    %225 = vmatprep.subr.mxu0 0.0
    %226 = vmatpush1.msra.mxu0 0.0
    %227 = vmatprep.subr.mxu0 0.0
    %228 = vmatpush1.msra.mxu0 0.0
    %229 = vmatprep.subr.mxu0 0.0
    %230 = vmatpush1.msra.mxu0 0.0
    %231 = vmatprep.subr.mxu0 0.0
    %232 = vmatpush1.msra.mxu0 0.0
    %233 = vmatprep.subr.mxu0 0.0
    %234 = vmatpush1.msra.mxu0 0.0
    %235 = vmatprep.subr.mxu0 0.0
    %236 = vmatpush1.msra.mxu0 0.0
    %237 = vmatprep.subr.mxu0 0.0
    %238 = vmatpush1.msra.mxu0 0.0
    %239 = vmatprep.subr.mxu0 0.0
    %240 = vmatpush1.msra.mxu0 0.0
    %241 = vmatprep.subr.mxu0 0.0
    %242 = vmatpush1.msra.mxu0 0.0
    %243 = vmatprep.subr.mxu0 0.0
    %244 = vmatpush1.msra.mxu0 0.0
    %245 = vmatprep.subr.mxu0 0.0
    %246 = vmatpush1.msra.mxu0 0.0
    %247 = vmatprep.subr.mxu0 0.0
    %248 = vmatpush1.msra.mxu0 0.0
    %249 = vmatprep.subr.mxu0 0.0
    %250 = vmatpush1.msra.mxu0 0.0
    %251 = vmatprep.subr.mxu0 0.0
    %252 = vmatpush1.msra.mxu0 0.0
    %253 = vmatprep.mubr.f32.mxu0 0.0
    %254 = vmatmul.mubr.f32.gmra.mrb[0].mxu0 %v68
    %v255 = vpop.f32.mrb[0].mxu0
    %v256 = vadd.f32 %v64, %v255
    %v257 = vpop.f32.mrb[0].mxu0
    %258 = vdwg.mxu0
    %v259 = vadd.f32 %v69, %v185
    %v260 = vxor.u32 %v259, 2147483648
    %v261 = vmul.f32 %v260, 1.442695
    %v262 = vpow.pop %v261
    %v263 = vadd.f32 %v262, 1.0
    %v264 = vrcp.pop %v263
    %v265 = vmul.f32 1.0, %v264
    %v267 = vrot.slane %v69, 2
    %v269 = vadd.f32 %v267, %v187
    %v270 = vxor.u32 %v269, 2147483648
    %v271 = vmul.f32 %v270, 1.442695
    %v272 = vpow.pop %v271
    %v273 = vadd.f32 %v272, 1.0
    %v274 = vrcp.pop %v273
    %v275 = vmul.f32 1.0, %v274
    %v276 = vmul.f32 %v265, %v256
    %v277 = vrot.slane %v69, 4
    %v279 = vadd.f32 %v277, %v276
    %v280 = vtanh.pop %v279
    %v281 = vsub.f32 1.0, %v275
    %v282 = vmul.f32 %v281, %v280
    %v283 = vmul.f32 %v275, %v68
    %v284 = vadd.f32 %v282, %v283
    %285 = vst [vmem:[%s4] sm:$0x3] %v284
    %s286 = scalar_lea.vmem %s0, 6
    %v287 = vld [vmem:[%s286] sm:$0x3f]
    %v288 = vld [vmem:[#allocation3] sm:$0xff]
    %v289 = vld [vmem:[#allocation3 + $0x8] sm:$0xff]
    %v290 = vld [vmem:[#allocation3 + $0x10] sm:$0xff]
    %v291 = vld [vmem:[#allocation3 + $0x18] sm:$0xff]
    %v292 = vld [vmem:[#allocation3 + $0x20] sm:$0xff]
    %v293 = vld [vmem:[#allocation3 + $0x28] sm:$0xff]
    %v294 = vld [vmem:[#allocation3 + $0x30] sm:$0xff]
    %v295 = vld [vmem:[#allocation3 + $0x38] sm:$0xff]
    %v296 = vld [vmem:[#allocation3 + $0x40] sm:$0xff]
    %v297 = vld [vmem:[#allocation3 + $0x48] sm:$0xff]
    %v298 = vld [vmem:[#allocation3 + $0x50] sm:$0xff]
    %v299 = vld [vmem:[#allocation3 + $0x58] sm:$0xff]
    %v300 = vld [vmem:[#allocation3 + $0x60] sm:$0xff]
    %v301 = vld [vmem:[#allocation3 + $0x68] sm:$0xff]
    %v302 = vld [vmem:[#allocation3 + $0x70] sm:$0xff]
    %v303 = vld [vmem:[#allocation3 + $0x78] sm:$0xff]
    %v304 = vld [vmem:[#allocation3 + $0x80] sm:$0xff]
    %v305 = vld [vmem:[#allocation3 + $0x88] sm:$0xff]
    %v306 = vld [vmem:[#allocation3 + $0x90] sm:$0xff]
    %v307 = vld [vmem:[#allocation3 + $0x98] sm:$0xff]
    %v308 = vld [vmem:[#allocation3 + $0xa0] sm:$0xff]
    %v309 = vld [vmem:[#allocation3 + $0xa8] sm:$0xff]
    %v310 = vld [vmem:[#allocation3 + $0xb0] sm:$0xff]
    %v311 = vld [vmem:[#allocation3 + $0xb8] sm:$0xff]
    %v312 = vld [vmem:[#allocation3 + $0xc0] sm:$0xff]
    %v313 = vld [vmem:[#allocation3 + $0xc8] sm:$0xff]
    %v314 = vld [vmem:[#allocation3 + $0xd0] sm:$0xff]
    %v315 = vld [vmem:[#allocation3 + $0xd8] sm:$0xff]
    %v316 = vld [vmem:[#allocation3 + $0xe0] sm:$0xff]
    %v317 = vld [vmem:[#allocation3 + $0xe8] sm:$0xff]
    %v318 = vld [vmem:[#allocation3 + $0xf0] sm:$0xff]
    %v319 = vld [vmem:[#allocation3 + $0xf8] sm:$0xff]
    %v320 = vld [vmem:[#allocation3 + $0x100] sm:$0xff]
    %v321 = vld [vmem:[#allocation3 + $0x108] sm:$0xff]
    %v322 = vld [vmem:[#allocation3 + $0x110] sm:$0xff]
    %v323 = vld [vmem:[#allocation3 + $0x118] sm:$0xff]
    %v324 = vld [vmem:[#allocation3 + $0x120] sm:$0xff]
    %v325 = vld [vmem:[#allocation3 + $0x128] sm:$0xff]
    %v326 = vld [vmem:[#allocation3 + $0x130] sm:$0xff]
    %v327 = vld [vmem:[#allocation3 + $0x138] sm:$0xff]
    %v328 = vld [vmem:[#allocation3 + $0x140] sm:$0xff]
    %v329 = vld [vmem:[#allocation3 + $0x148] sm:$0xff]
    %v330 = vld [vmem:[#allocation3 + $0x150] sm:$0xff]
    %v331 = vld [vmem:[#allocation3 + $0x158] sm:$0xff]
    %v332 = vld [vmem:[#allocation3 + $0x160] sm:$0xff]
    %v333 = vld [vmem:[#allocation3 + $0x168] sm:$0xff]
    %v334 = vld [vmem:[#allocation3 + $0x170] sm:$0xff]
    %v335 = vld [vmem:[#allocation3 + $0x178] sm:$0xff]
    %336 = vmatprep.subr.mxu0 %v289
    %337 = vmatpush1.msra.mxu0 %v288
    %338 = vmatprep.subr.mxu0 %v292
    %339 = vmatpush1.msra.mxu0 %v291
    %340 = vmatprep.subr.mxu0 %v295
    %341 = vmatpush1.msra.mxu0 %v294
    %342 = vmatprep.subr.mxu0 %v298
    %343 = vmatpush1.msra.mxu0 %v297
    %344 = vmatprep.subr.mxu0 %v301
    %345 = vmatpush1.msra.mxu0 %v300
    %346 = vmatprep.subr.mxu0 %v304
    %347 = vmatpush1.msra.mxu0 %v303
    %348 = vmatprep.subr.mxu0 %v307
    %349 = vmatpush1.msra.mxu0 %v306
    %350 = vmatprep.subr.mxu0 %v310
    %351 = vmatpush1.msra.mxu0 %v309
    %352 = vmatprep.subr.mxu0 %v313
    %353 = vmatpush1.msra.mxu0 %v312
    %354 = vmatprep.subr.mxu0 %v316
    %355 = vmatpush1.msra.mxu0 %v315
    %356 = vmatprep.subr.mxu0 %v319
    %357 = vmatpush1.msra.mxu0 %v318
    %358 = vmatprep.subr.mxu0 %v322
    %359 = vmatpush1.msra.mxu0 %v321
    %360 = vmatprep.subr.mxu0 %v325
    %361 = vmatpush1.msra.mxu0 %v324
    %362 = vmatprep.subr.mxu0 %v328
    %363 = vmatpush1.msra.mxu0 %v327
    %364 = vmatprep.subr.mxu0 %v331
    %365 = vmatpush1.msra.mxu0 %v330
    %366 = vmatprep.subr.mxu0 %v334
    %367 = vmatpush1.msra.mxu0 %v333
    %368 = vmatprep.subr.mxu0 0.0
    %369 = vmatpush1.msra.mxu0 0.0
    %370 = vmatprep.subr.mxu0 0.0
    %371 = vmatpush1.msra.mxu0 0.0
    %372 = vmatprep.subr.mxu0 0.0
    %373 = vmatpush1.msra.mxu0 0.0
    %374 = vmatprep.subr.mxu0 0.0
    %375 = vmatpush1.msra.mxu0 0.0
    %376 = vmatprep.subr.mxu0 0.0
    %377 = vmatpush1.msra.mxu0 0.0
    %378 = vmatprep.subr.mxu0 0.0
    %379 = vmatpush1.msra.mxu0 0.0
    %380 = vmatprep.subr.mxu0 0.0
    %381 = vmatpush1.msra.mxu0 0.0
    %382 = vmatprep.subr.mxu0 0.0
    %383 = vmatpush1.msra.mxu0 0.0
    %384 = vmatprep.subr.mxu0 0.0
    %385 = vmatpush1.msra.mxu0 0.0
    %386 = vmatprep.subr.mxu0 0.0
    %387 = vmatpush1.msra.mxu0 0.0
    %388 = vmatprep.subr.mxu0 0.0
    %389 = vmatpush1.msra.mxu0 0.0
    %390 = vmatprep.subr.mxu0 0.0
    %391 = vmatpush1.msra.mxu0 0.0
    %392 = vmatprep.subr.mxu0 0.0
    %393 = vmatpush1.msra.mxu0 0.0
    %394 = vmatprep.subr.mxu0 0.0
    %395 = vmatpush1.msra.mxu0 0.0
    %396 = vmatprep.subr.mxu0 0.0
    %397 = vmatpush1.msra.mxu0 0.0
    %398 = vmatprep.subr.mxu0 0.0
    %399 = vmatpush1.msra.mxu0 0.0
    %400 = vmatprep.mubr.f32.mxu0 0.0
    %401 = vmatmul.mubr.f32.gmra.mrb[0].mxu0 %v284
    %v402 = vpop.f32.mrb[0].mxu0
    %v403 = vadd.f32 %v56, %v402
    %v404 = vpop.f32.mrb[0].mxu0
    %v405 = vadd.f32 %v60, %v404
    %406 = vdwg.mxu0
    %407 = vmatprep.subr.mxu0 0.0
    %408 = vmatpush1.msra.mxu0 %v290
    %409 = vmatprep.subr.mxu0 0.0
    %410 = vmatpush1.msra.mxu0 %v293
    %411 = vmatprep.subr.mxu0 0.0
    %412 = vmatpush1.msra.mxu0 %v296
    %413 = vmatprep.subr.mxu0 0.0
    %414 = vmatpush1.msra.mxu0 %v299
    %415 = vmatprep.subr.mxu0 0.0
    %416 = vmatpush1.msra.mxu0 %v302
    %417 = vmatprep.subr.mxu0 0.0
    %418 = vmatpush1.msra.mxu0 %v305
    %419 = vmatprep.subr.mxu0 0.0
    %420 = vmatpush1.msra.mxu0 %v308
    %421 = vmatprep.subr.mxu0 0.0
    %422 = vmatpush1.msra.mxu0 %v311
    %423 = vmatprep.subr.mxu0 0.0
    %424 = vmatpush1.msra.mxu0 %v314
    %425 = vmatprep.subr.mxu0 0.0
    %426 = vmatpush1.msra.mxu0 %v317
    %427 = vmatprep.subr.mxu0 0.0
    %428 = vmatpush1.msra.mxu0 %v320
    %429 = vmatprep.subr.mxu0 0.0
    %430 = vmatpush1.msra.mxu0 %v323
    %431 = vmatprep.subr.mxu0 0.0
    %432 = vmatpush1.msra.mxu0 %v326
    %433 = vmatprep.subr.mxu0 0.0
    %434 = vmatpush1.msra.mxu0 %v329
    %435 = vmatprep.subr.mxu0 0.0
    %436 = vmatpush1.msra.mxu0 %v332
    %437 = vmatprep.subr.mxu0 0.0
    %438 = vmatpush1.msra.mxu0 %v335
    %439 = vmatprep.subr.mxu0 0.0
    %440 = vmatpush1.msra.mxu0 0.0
    %441 = vmatprep.subr.mxu0 0.0
    %442 = vmatpush1.msra.mxu0 0.0
    %443 = vmatprep.subr.mxu0 0.0
    %444 = vmatpush1.msra.mxu0 0.0
    %445 = vmatprep.subr.mxu0 0.0
    %446 = vmatpush1.msra.mxu0 0.0
    %447 = vmatprep.subr.mxu0 0.0
    %448 = vmatpush1.msra.mxu0 0.0
    %449 = vmatprep.subr.mxu0 0.0
    %450 = vmatpush1.msra.mxu0 0.0
    %451 = vmatprep.subr.mxu0 0.0
    %452 = vmatpush1.msra.mxu0 0.0
    %453 = vmatprep.subr.mxu0 0.0
    %454 = vmatpush1.msra.mxu0 0.0
    %455 = vmatprep.subr.mxu0 0.0
    %456 = vmatpush1.msra.mxu0 0.0
    %457 = vmatprep.subr.mxu0 0.0
    %458 = vmatpush1.msra.mxu0 0.0
    %459 = vmatprep.subr.mxu0 0.0
    %460 = vmatpush1.msra.mxu0 0.0
    %461 = vmatprep.subr.mxu0 0.0
    %462 = vmatpush1.msra.mxu0 0.0
    %463 = vmatprep.subr.mxu0 0.0
    %464 = vmatpush1.msra.mxu0 0.0
    %465 = vmatprep.subr.mxu0 0.0
    %466 = vmatpush1.msra.mxu0 0.0
    %467 = vmatprep.subr.mxu0 0.0
    %468 = vmatpush1.msra.mxu0 0.0
    %469 = vmatprep.subr.mxu0 0.0
    %470 = vmatpush1.msra.mxu0 0.0
    %471 = vmatprep.mubr.f32.mxu0 0.0
    %472 = vmatmul.mubr.f32.gmra.mrb[0].mxu0 %v284
    %v473 = vpop.f32.mrb[0].mxu0
    %v474 = vadd.f32 %v64, %v473
    %v475 = vpop.f32.mrb[0].mxu0
    %476 = vdwg.mxu0
    %v477 = vadd.f32 %v287, %v403
    %v478 = vxor.u32 %v477, 2147483648
    %v479 = vmul.f32 %v478, 1.442695
    %v480 = vpow.pop %v479
    %v481 = vadd.f32 %v480, 1.0
    %v482 = vrcp.pop %v481
    %v483 = vmul.f32 1.0, %v482
    %v485 = vrot.slane %v287, 2
    %v487 = vadd.f32 %v485, %v405
    %v488 = vxor.u32 %v487, 2147483648
    %v489 = vmul.f32 %v488, 1.442695
    %v490 = vpow.pop %v489
    %v491 = vadd.f32 %v490, 1.0
    %v492 = vrcp.pop %v491
    %v493 = vmul.f32 1.0, %v492
    %v494 = vmul.f32 %v483, %v474
    %v495 = vrot.slane %v287, 4
    %v497 = vadd.f32 %v495, %v494
    %v498 = vtanh.pop %v497
    %v499 = vsub.f32 1.0, %v493
    %v500 = vmul.f32 %v499, %v498
    %v501 = vmul.f32 %v493, %v284
    %v502 = vadd.f32 %v500, %v501
    %s503 = scalar_lea.vmem %s4, 2
    %504 = vst [vmem:[%s503] sm:$0x3] %v502
    %s505 = scalar_lea.vmem %s0, 12
    %v506 = vld [vmem:[%s505] sm:$0x3f]
    %v507 = vld [vmem:[#allocation3] sm:$0xff]
    %v508 = vld [vmem:[#allocation3 + $0x8] sm:$0xff]
    %v509 = vld [vmem:[#allocation3 + $0x10] sm:$0xff]
    %v510 = vld [vmem:[#allocation3 + $0x18] sm:$0xff]
    %v511 = vld [vmem:[#allocation3 + $0x20] sm:$0xff]
    %v512 = vld [vmem:[#allocation3 + $0x28] sm:$0xff]
    %v513 = vld [vmem:[#allocation3 + $0x30] sm:$0xff]
    %v514 = vld [vmem:[#allocation3 + $0x38] sm:$0xff]
    %v515 = vld [vmem:[#allocation3 + $0x40] sm:$0xff]
    %v516 = vld [vmem:[#allocation3 + $0x48] sm:$0xff]
    %v517 = vld [vmem:[#allocation3 + $0x50] sm:$0xff]
    %v518 = vld [vmem:[#allocation3 + $0x58] sm:$0xff]
    %v519 = vld [vmem:[#allocation3 + $0x60] sm:$0xff]
    %v520 = vld [vmem:[#allocation3 + $0x68] sm:$0xff]
    %v521 = vld [vmem:[#allocation3 + $0x70] sm:$0xff]
    %v522 = vld [vmem:[#allocation3 + $0x78] sm:$0xff]
    %v523 = vld [vmem:[#allocation3 + $0x80] sm:$0xff]
    %v524 = vld [vmem:[#allocation3 + $0x88] sm:$0xff]
    %v525 = vld [vmem:[#allocation3 + $0x90] sm:$0xff]
    %v526 = vld [vmem:[#allocation3 + $0x98] sm:$0xff]
    %v527 = vld [vmem:[#allocation3 + $0xa0] sm:$0xff]
    %v528 = vld [vmem:[#allocation3 + $0xa8] sm:$0xff]
    %v529 = vld [vmem:[#allocation3 + $0xb0] sm:$0xff]
    %v530 = vld [vmem:[#allocation3 + $0xb8] sm:$0xff]
    %v531 = vld [vmem:[#allocation3 + $0xc0] sm:$0xff]
    %v532 = vld [vmem:[#allocation3 + $0xc8] sm:$0xff]
    %v533 = vld [vmem:[#allocation3 + $0xd0] sm:$0xff]
    %v534 = vld [vmem:[#allocation3 + $0xd8] sm:$0xff]
    %v535 = vld [vmem:[#allocation3 + $0xe0] sm:$0xff]
    %v536 = vld [vmem:[#allocation3 + $0xe8] sm:$0xff]
    %v537 = vld [vmem:[#allocation3 + $0xf0] sm:$0xff]
    %v538 = vld [vmem:[#allocation3 + $0xf8] sm:$0xff]
    %v539 = vld [vmem:[#allocation3 + $0x100] sm:$0xff]
    %v540 = vld [vmem:[#allocation3 + $0x108] sm:$0xff]
    %v541 = vld [vmem:[#allocation3 + $0x110] sm:$0xff]
    %v542 = vld [vmem:[#allocation3 + $0x118] sm:$0xff]
    %v543 = vld [vmem:[#allocation3 + $0x120] sm:$0xff]
    %v544 = vld [vmem:[#allocation3 + $0x128] sm:$0xff]
    %v545 = vld [vmem:[#allocation3 + $0x130] sm:$0xff]
    %v546 = vld [vmem:[#allocation3 + $0x138] sm:$0xff]
    %v547 = vld [vmem:[#allocation3 + $0x140] sm:$0xff]
    %v548 = vld [vmem:[#allocation3 + $0x148] sm:$0xff]
    %v549 = vld [vmem:[#allocation3 + $0x150] sm:$0xff]
    %v550 = vld [vmem:[#allocation3 + $0x158] sm:$0xff]
    %v551 = vld [vmem:[#allocation3 + $0x160] sm:$0xff]
    %v552 = vld [vmem:[#allocation3 + $0x168] sm:$0xff]
    %v553 = vld [vmem:[#allocation3 + $0x170] sm:$0xff]
    %v554 = vld [vmem:[#allocation3 + $0x178] sm:$0xff]
    %555 = vmatprep.subr.mxu0 %v508
    %556 = vmatpush1.msra.mxu0 %v507
    %557 = vmatprep.subr.mxu0 %v511
    %558 = vmatpush1.msra.mxu0 %v510
    %559 = vmatprep.subr.mxu0 %v514
    %560 = vmatpush1.msra.mxu0 %v513
    %561 = vmatprep.subr.mxu0 %v517
    %562 = vmatpush1.msra.mxu0 %v516
    %563 = vmatprep.subr.mxu0 %v520
    %564 = vmatpush1.msra.mxu0 %v519
    %565 = vmatprep.subr.mxu0 %v523
    %566 = vmatpush1.msra.mxu0 %v522
    %567 = vmatprep.subr.mxu0 %v526
    %568 = vmatpush1.msra.mxu0 %v525
    %569 = vmatprep.subr.mxu0 %v529
    %570 = vmatpush1.msra.mxu0 %v528
    %571 = vmatprep.subr.mxu0 %v532
    %572 = vmatpush1.msra.mxu0 %v531
    %573 = vmatprep.subr.mxu0 %v535
    %574 = vmatpush1.msra.mxu0 %v534
    %575 = vmatprep.subr.mxu0 %v538
    %576 = vmatpush1.msra.mxu0 %v537
    %577 = vmatprep.subr.mxu0 %v541
    %578 = vmatpush1.msra.mxu0 %v540
    %579 = vmatprep.subr.mxu0 %v544
    %580 = vmatpush1.msra.mxu0 %v543
    %581 = vmatprep.subr.mxu0 %v547
    %582 = vmatpush1.msra.mxu0 %v546
    %583 = vmatprep.subr.mxu0 %v550
    %584 = vmatpush1.msra.mxu0 %v549
    %585 = vmatprep.subr.mxu0 %v553
    %586 = vmatpush1.msra.mxu0 %v552
    %587 = vmatprep.subr.mxu0 0.0
    %588 = vmatpush1.msra.mxu0 0.0
    %589 = vmatprep.subr.mxu0 0.0
    %590 = vmatpush1.msra.mxu0 0.0
    %591 = vmatprep.subr.mxu0 0.0
    %592 = vmatpush1.msra.mxu0 0.0
    %593 = vmatprep.subr.mxu0 0.0
    %594 = vmatpush1.msra.mxu0 0.0
    %595 = vmatprep.subr.mxu0 0.0
    %596 = vmatpush1.msra.mxu0 0.0
    %597 = vmatprep.subr.mxu0 0.0
    %598 = vmatpush1.msra.mxu0 0.0
    %599 = vmatprep.subr.mxu0 0.0
    %600 = vmatpush1.msra.mxu0 0.0
    %601 = vmatprep.subr.mxu0 0.0
    %602 = vmatpush1.msra.mxu0 0.0
    %603 = vmatprep.subr.mxu0 0.0
    %604 = vmatpush1.msra.mxu0 0.0
    %605 = vmatprep.subr.mxu0 0.0
    %606 = vmatpush1.msra.mxu0 0.0
    %607 = vmatprep.subr.mxu0 0.0
    %608 = vmatpush1.msra.mxu0 0.0
    %609 = vmatprep.subr.mxu0 0.0
    %610 = vmatpush1.msra.mxu0 0.0
    %611 = vmatprep.subr.mxu0 0.0
    %612 = vmatpush1.msra.mxu0 0.0
    %613 = vmatprep.subr.mxu0 0.0
    %614 = vmatpush1.msra.mxu0 0.0
    %615 = vmatprep.subr.mxu0 0.0
    %616 = vmatpush1.msra.mxu0 0.0
    %617 = vmatprep.subr.mxu0 0.0
    %618 = vmatpush1.msra.mxu0 0.0
    %619 = vmatprep.mubr.f32.mxu0 0.0
    %620 = vmatmul.mubr.f32.gmra.mrb[0].mxu0 %v502
    %v621 = vpop.f32.mrb[0].mxu0
    %v622 = vadd.f32 %v56, %v621
    %v623 = vpop.f32.mrb[0].mxu0
    %v624 = vadd.f32 %v60, %v623
    %625 = vdwg.mxu0
    %626 = vmatprep.subr.mxu0 0.0
    %627 = vmatpush1.msra.mxu0 %v509
    %628 = vmatprep.subr.mxu0 0.0
    %629 = vmatpush1.msra.mxu0 %v512
    %630 = vmatprep.subr.mxu0 0.0
    %631 = vmatpush1.msra.mxu0 %v515
    %632 = vmatprep.subr.mxu0 0.0
    %633 = vmatpush1.msra.mxu0 %v518
    %634 = vmatprep.subr.mxu0 0.0
    %635 = vmatpush1.msra.mxu0 %v521
    %636 = vmatprep.subr.mxu0 0.0
    %637 = vmatpush1.msra.mxu0 %v524
    %638 = vmatprep.subr.mxu0 0.0
    %639 = vmatpush1.msra.mxu0 %v527
    %640 = vmatprep.subr.mxu0 0.0
    %641 = vmatpush1.msra.mxu0 %v530
    %642 = vmatprep.subr.mxu0 0.0
    %643 = vmatpush1.msra.mxu0 %v533
    %644 = vmatprep.subr.mxu0 0.0
    %645 = vmatpush1.msra.mxu0 %v536
    %646 = vmatprep.subr.mxu0 0.0
    %647 = vmatpush1.msra.mxu0 %v539
    %648 = vmatprep.subr.mxu0 0.0
    %649 = vmatpush1.msra.mxu0 %v542
    %650 = vmatprep.subr.mxu0 0.0
    %651 = vmatpush1.msra.mxu0 %v545
    %652 = vmatprep.subr.mxu0 0.0
    %653 = vmatpush1.msra.mxu0 %v548
    %654 = vmatprep.subr.mxu0 0.0
    %655 = vmatpush1.msra.mxu0 %v551
    %656 = vmatprep.subr.mxu0 0.0
    %657 = vmatpush1.msra.mxu0 %v554
    %658 = vmatprep.subr.mxu0 0.0
    %659 = vmatpush1.msra.mxu0 0.0
    %660 = vmatprep.subr.mxu0 0.0
    %661 = vmatpush1.msra.mxu0 0.0
    %662 = vmatprep.subr.mxu0 0.0
    %663 = vmatpush1.msra.mxu0 0.0
    %664 = vmatprep.subr.mxu0 0.0
    %665 = vmatpush1.msra.mxu0 0.0
    %666 = vmatprep.subr.mxu0 0.0
    %667 = vmatpush1.msra.mxu0 0.0
    %668 = vmatprep.subr.mxu0 0.0
    %669 = vmatpush1.msra.mxu0 0.0
    %670 = vmatprep.subr.mxu0 0.0
    %671 = vmatpush1.msra.mxu0 0.0
    %672 = vmatprep.subr.mxu0 0.0
    %673 = vmatpush1.msra.mxu0 0.0
    %674 = vmatprep.subr.mxu0 0.0
    %675 = vmatpush1.msra.mxu0 0.0
    %676 = vmatprep.subr.mxu0 0.0
    %677 = vmatpush1.msra.mxu0 0.0
    %678 = vmatprep.subr.mxu0 0.0
    %679 = vmatpush1.msra.mxu0 0.0
    %680 = vmatprep.subr.mxu0 0.0
    %681 = vmatpush1.msra.mxu0 0.0
    %682 = vmatprep.subr.mxu0 0.0
    %683 = vmatpush1.msra.mxu0 0.0
    %684 = vmatprep.subr.mxu0 0.0
    %685 = vmatpush1.msra.mxu0 0.0
    %686 = vmatprep.subr.mxu0 0.0
    %687 = vmatpush1.msra.mxu0 0.0
    %688 = vmatprep.subr.mxu0 0.0
    %689 = vmatpush1.msra.mxu0 0.0
    %690 = vmatprep.mubr.f32.mxu0 0.0
    %691 = vmatmul.mubr.f32.gmra.mrb[0].mxu0 %v502
    %v692 = vpop.f32.mrb[0].mxu0
    %v693 = vadd.f32 %v64, %v692
    %v694 = vpop.f32.mrb[0].mxu0
    %695 = vdwg.mxu0
    %v696 = vadd.f32 %v506, %v622
    %v697 = vxor.u32 %v696, 2147483648
    %v698 = vmul.f32 %v697, 1.442695
    %v699 = vpow.pop %v698
    %v700 = vadd.f32 %v699, 1.0
    %v701 = vrcp.pop %v700
    %v702 = vmul.f32 1.0, %v701
    %v704 = vrot.slane %v506, 2
    %v706 = vadd.f32 %v704, %v624
    %v707 = vxor.u32 %v706, 2147483648
    %v708 = vmul.f32 %v707, 1.442695
    %v709 = vpow.pop %v708
    %v710 = vadd.f32 %v709, 1.0
    %v711 = vrcp.pop %v710
    %v712 = vmul.f32 1.0, %v711
    %v713 = vmul.f32 %v702, %v693
    %v714 = vrot.slane %v506, 4
    %v716 = vadd.f32 %v714, %v713
    %v717 = vtanh.pop %v716
    %v718 = vsub.f32 1.0, %v712
    %v719 = vmul.f32 %v718, %v717
    %v720 = vmul.f32 %v712, %v502
    %v721 = vadd.f32 %v719, %v720
    %s722 = scalar_lea.vmem %s4, 4
    %723 = vst [vmem:[%s722] sm:$0x3] %v721
    %s724 = scalar_lea.vmem %s0, 18
    %v725 = vld [vmem:[%s724] sm:$0x3f]
    %v726 = vld [vmem:[#allocation3] sm:$0xff]
    %v727 = vld [vmem:[#allocation3 + $0x8] sm:$0xff]
    %v728 = vld [vmem:[#allocation3 + $0x10] sm:$0xff]
    %v729 = vld [vmem:[#allocation3 + $0x18] sm:$0xff]
    %v730 = vld [vmem:[#allocation3 + $0x20] sm:$0xff]
    %v731 = vld [vmem:[#allocation3 + $0x28] sm:$0xff]
    %v732 = vld [vmem:[#allocation3 + $0x30] sm:$0xff]
    %v733 = vld [vmem:[#allocation3 + $0x38] sm:$0xff]
    %v734 = vld [vmem:[#allocation3 + $0x40] sm:$0xff]
    %v735 = vld [vmem:[#allocation3 + $0x48] sm:$0xff]
    %v736 = vld [vmem:[#allocation3 + $0x50] sm:$0xff]
    %v737 = vld [vmem:[#allocation3 + $0x58] sm:$0xff]
    %v738 = vld [vmem:[#allocation3 + $0x60] sm:$0xff]
    %v739 = vld [vmem:[#allocation3 + $0x68] sm:$0xff]
    %v740 = vld [vmem:[#allocation3 + $0x70] sm:$0xff]
    %v741 = vld [vmem:[#allocation3 + $0x78] sm:$0xff]
    %v742 = vld [vmem:[#allocation3 + $0x80] sm:$0xff]
    %v743 = vld [vmem:[#allocation3 + $0x88] sm:$0xff]
    %v744 = vld [vmem:[#allocation3 + $0x90] sm:$0xff]
    %v745 = vld [vmem:[#allocation3 + $0x98] sm:$0xff]
    %v746 = vld [vmem:[#allocation3 + $0xa0] sm:$0xff]
    %v747 = vld [vmem:[#allocation3 + $0xa8] sm:$0xff]
    %v748 = vld [vmem:[#allocation3 + $0xb0] sm:$0xff]
    %v749 = vld [vmem:[#allocation3 + $0xb8] sm:$0xff]
    %v750 = vld [vmem:[#allocation3 + $0xc0] sm:$0xff]
    %v751 = vld [vmem:[#allocation3 + $0xc8] sm:$0xff]
    %v752 = vld [vmem:[#allocation3 + $0xd0] sm:$0xff]
    %v753 = vld [vmem:[#allocation3 + $0xd8] sm:$0xff]
    %v754 = vld [vmem:[#allocation3 + $0xe0] sm:$0xff]
    %v755 = vld [vmem:[#allocation3 + $0xe8] sm:$0xff]
    %v756 = vld [vmem:[#allocation3 + $0xf0] sm:$0xff]
    %v757 = vld [vmem:[#allocation3 + $0xf8] sm:$0xff]
    %v758 = vld [vmem:[#allocation3 + $0x100] sm:$0xff]
    %v759 = vld [vmem:[#allocation3 + $0x108] sm:$0xff]
    %v760 = vld [vmem:[#allocation3 + $0x110] sm:$0xff]
    %v761 = vld [vmem:[#allocation3 + $0x118] sm:$0xff]
    %v762 = vld [vmem:[#allocation3 + $0x120] sm:$0xff]
    %v763 = vld [vmem:[#allocation3 + $0x128] sm:$0xff]
    %v764 = vld [vmem:[#allocation3 + $0x130] sm:$0xff]
    %v765 = vld [vmem:[#allocation3 + $0x138] sm:$0xff]
    %v766 = vld [vmem:[#allocation3 + $0x140] sm:$0xff]
    %v767 = vld [vmem:[#allocation3 + $0x148] sm:$0xff]
    %v768 = vld [vmem:[#allocation3 + $0x150] sm:$0xff]
    %v769 = vld [vmem:[#allocation3 + $0x158] sm:$0xff]
    %v770 = vld [vmem:[#allocation3 + $0x160] sm:$0xff]
    %v771 = vld [vmem:[#allocation3 + $0x168] sm:$0xff]
    %v772 = vld [vmem:[#allocation3 + $0x170] sm:$0xff]
    %v773 = vld [vmem:[#allocation3 + $0x178] sm:$0xff]
    %774 = vmatprep.subr.mxu0 %v727
    %775 = vmatpush1.msra.mxu0 %v726
    %776 = vmatprep.subr.mxu0 %v730
    %777 = vmatpush1.msra.mxu0 %v729
    %778 = vmatprep.subr.mxu0 %v733
    %779 = vmatpush1.msra.mxu0 %v732
    %780 = vmatprep.subr.mxu0 %v736
    %781 = vmatpush1.msra.mxu0 %v735
    %782 = vmatprep.subr.mxu0 %v739
    %783 = vmatpush1.msra.mxu0 %v738
    %784 = vmatprep.subr.mxu0 %v742
    %785 = vmatpush1.msra.mxu0 %v741
    %786 = vmatprep.subr.mxu0 %v745
    %787 = vmatpush1.msra.mxu0 %v744
    %788 = vmatprep.subr.mxu0 %v748
    %789 = vmatpush1.msra.mxu0 %v747
    %790 = vmatprep.subr.mxu0 %v751
    %791 = vmatpush1.msra.mxu0 %v750
    %792 = vmatprep.subr.mxu0 %v754
    %793 = vmatpush1.msra.mxu0 %v753
    %794 = vmatprep.subr.mxu0 %v757
    %795 = vmatpush1.msra.mxu0 %v756
    %796 = vmatprep.subr.mxu0 %v760
    %797 = vmatpush1.msra.mxu0 %v759
    %798 = vmatprep.subr.mxu0 %v763
    %799 = vmatpush1.msra.mxu0 %v762
    %800 = vmatprep.subr.mxu0 %v766
    %801 = vmatpush1.msra.mxu0 %v765
    %802 = vmatprep.subr.mxu0 %v769
    %803 = vmatpush1.msra.mxu0 %v768
    %804 = vmatprep.subr.mxu0 %v772
    %805 = vmatpush1.msra.mxu0 %v771
    %806 = vmatprep.subr.mxu0 0.0
    %807 = vmatpush1.msra.mxu0 0.0
    %808 = vmatprep.subr.mxu0 0.0
    %809 = vmatpush1.msra.mxu0 0.0
    %810 = vmatprep.subr.mxu0 0.0
    %811 = vmatpush1.msra.mxu0 0.0
    %812 = vmatprep.subr.mxu0 0.0
    %813 = vmatpush1.msra.mxu0 0.0
    %814 = vmatprep.subr.mxu0 0.0
    %815 = vmatpush1.msra.mxu0 0.0
    %816 = vmatprep.subr.mxu0 0.0
    %817 = vmatpush1.msra.mxu0 0.0
    %818 = vmatprep.subr.mxu0 0.0
    %819 = vmatpush1.msra.mxu0 0.0
    %820 = vmatprep.subr.mxu0 0.0
    %821 = vmatpush1.msra.mxu0 0.0
    %822 = vmatprep.subr.mxu0 0.0
    %823 = vmatpush1.msra.mxu0 0.0
    %824 = vmatprep.subr.mxu0 0.0
    %825 = vmatpush1.msra.mxu0 0.0
    %826 = vmatprep.subr.mxu0 0.0
    %827 = vmatpush1.msra.mxu0 0.0
    %828 = vmatprep.subr.mxu0 0.0
    %829 = vmatpush1.msra.mxu0 0.0
    %830 = vmatprep.subr.mxu0 0.0
    %831 = vmatpush1.msra.mxu0 0.0
    %832 = vmatprep.subr.mxu0 0.0
    %833 = vmatpush1.msra.mxu0 0.0
    %834 = vmatprep.subr.mxu0 0.0
    %835 = vmatpush1.msra.mxu0 0.0
    %836 = vmatprep.subr.mxu0 0.0
    %837 = vmatpush1.msra.mxu0 0.0
    %838 = vmatprep.mubr.f32.mxu0 0.0
    %839 = vmatmul.mubr.f32.gmra.mrb[0].mxu0 %v721
    %v840 = vpop.f32.mrb[0].mxu0
    %v841 = vadd.f32 %v56, %v840
    %v842 = vpop.f32.mrb[0].mxu0
    %v843 = vadd.f32 %v60, %v842
    %844 = vdwg.mxu0
    %845 = vmatprep.subr.mxu0 0.0
    %846 = vmatpush1.msra.mxu0 %v728
    %847 = vmatprep.subr.mxu0 0.0
    %848 = vmatpush1.msra.mxu0 %v731
    %849 = vmatprep.subr.mxu0 0.0
    %850 = vmatpush1.msra.mxu0 %v734
    %851 = vmatprep.subr.mxu0 0.0
    %852 = vmatpush1.msra.mxu0 %v737
    %853 = vmatprep.subr.mxu0 0.0
    %854 = vmatpush1.msra.mxu0 %v740
    %855 = vmatprep.subr.mxu0 0.0
    %856 = vmatpush1.msra.mxu0 %v743
    %857 = vmatprep.subr.mxu0 0.0
    %858 = vmatpush1.msra.mxu0 %v746
    %859 = vmatprep.subr.mxu0 0.0
    %860 = vmatpush1.msra.mxu0 %v749
    %861 = vmatprep.subr.mxu0 0.0
    %862 = vmatpush1.msra.mxu0 %v752
    %863 = vmatprep.subr.mxu0 0.0
    %864 = vmatpush1.msra.mxu0 %v755
    %865 = vmatprep.subr.mxu0 0.0
    %866 = vmatpush1.msra.mxu0 %v758
    %867 = vmatprep.subr.mxu0 0.0
    %868 = vmatpush1.msra.mxu0 %v761
    %869 = vmatprep.subr.mxu0 0.0
    %870 = vmatpush1.msra.mxu0 %v764
    %871 = vmatprep.subr.mxu0 0.0
    %872 = vmatpush1.msra.mxu0 %v767
    %873 = vmatprep.subr.mxu0 0.0
    %874 = vmatpush1.msra.mxu0 %v770
    %875 = vmatprep.subr.mxu0 0.0
    %876 = vmatpush1.msra.mxu0 %v773
    %877 = vmatprep.subr.mxu0 0.0
    %878 = vmatpush1.msra.mxu0 0.0
    %879 = vmatprep.subr.mxu0 0.0
    %880 = vmatpush1.msra.mxu0 0.0
    %881 = vmatprep.subr.mxu0 0.0
    %882 = vmatpush1.msra.mxu0 0.0
    %883 = vmatprep.subr.mxu0 0.0
    %884 = vmatpush1.msra.mxu0 0.0
    %885 = vmatprep.subr.mxu0 0.0
    %886 = vmatpush1.msra.mxu0 0.0
    %887 = vmatprep.subr.mxu0 0.0
    %888 = vmatpush1.msra.mxu0 0.0
    %889 = vmatprep.subr.mxu0 0.0
    %890 = vmatpush1.msra.mxu0 0.0
    %891 = vmatprep.subr.mxu0 0.0
    %892 = vmatpush1.msra.mxu0 0.0
    %893 = vmatprep.subr.mxu0 0.0
    %894 = vmatpush1.msra.mxu0 0.0
    %895 = vmatprep.subr.mxu0 0.0
    %896 = vmatpush1.msra.mxu0 0.0
    %897 = vmatprep.subr.mxu0 0.0
    %898 = vmatpush1.msra.mxu0 0.0
    %899 = vmatprep.subr.mxu0 0.0
    %900 = vmatpush1.msra.mxu0 0.0
    %901 = vmatprep.subr.mxu0 0.0
    %902 = vmatpush1.msra.mxu0 0.0
    %903 = vmatprep.subr.mxu0 0.0
    %904 = vmatpush1.msra.mxu0 0.0
    %905 = vmatprep.subr.mxu0 0.0
    %906 = vmatpush1.msra.mxu0 0.0
    %907 = vmatprep.subr.mxu0 0.0
    %908 = vmatpush1.msra.mxu0 0.0
    %909 = vmatprep.mubr.f32.mxu0 0.0
    %910 = vmatmul.mubr.f32.gmra.mrb[0].mxu0 %v721
    %v911 = vpop.f32.mrb[0].mxu0
    %v912 = vadd.f32 %v64, %v911
    %v913 = vpop.f32.mrb[0].mxu0
    %914 = vdwg.mxu0
    %v915 = vadd.f32 %v725, %v841
    %v916 = vxor.u32 %v915, 2147483648
    %v917 = vmul.f32 %v916, 1.442695
    %v918 = vpow.pop %v917
    %v919 = vadd.f32 %v918, 1.0
    %v920 = vrcp.pop %v919
    %v921 = vmul.f32 1.0, %v920
    %v923 = vrot.slane %v725, 2
    %v925 = vadd.f32 %v923, %v843
    %v926 = vxor.u32 %v925, 2147483648
    %v927 = vmul.f32 %v926, 1.442695
    %v928 = vpow.pop %v927
    %v929 = vadd.f32 %v928, 1.0
    %v930 = vrcp.pop %v929
    %v931 = vmul.f32 1.0, %v930
    %v932 = vmul.f32 %v921, %v912
    %v933 = vrot.slane %v725, 4
    %v935 = vadd.f32 %v933, %v932
    %v936 = vtanh.pop %v935
    %v937 = vsub.f32 1.0, %v931
    %v938 = vmul.f32 %v937, %v936
    %v939 = vmul.f32 %v931, %v721
    %v940 = vadd.f32 %v938, %v939
    %s941 = scalar_lea.vmem %s4, 6
    %942 = vst [vmem:[%s941] sm:$0x3] %v940
    %s943 = scalar_lea.vmem %s0, 24
    %v944 = vld [vmem:[%s943] sm:$0x3f]
    %v945 = vld [vmem:[#allocation3] sm:$0xff]
    %v946 = vld [vmem:[#allocation3 + $0x8] sm:$0xff]
    %v947 = vld [vmem:[#allocation3 + $0x10] sm:$0xff]
    %v948 = vld [vmem:[#allocation3 + $0x18] sm:$0xff]
    %v949 = vld [vmem:[#allocation3 + $0x20] sm:$0xff]
    %v950 = vld [vmem:[#allocation3 + $0x28] sm:$0xff]
    %v951 = vld [vmem:[#allocation3 + $0x30] sm:$0xff]
    %v952 = vld [vmem:[#allocation3 + $0x38] sm:$0xff]
    %v953 = vld [vmem:[#allocation3 + $0x40] sm:$0xff]
    %v954 = vld [vmem:[#allocation3 + $0x48] sm:$0xff]
    %v955 = vld [vmem:[#allocation3 + $0x50] sm:$0xff]
    %v956 = vld [vmem:[#allocation3 + $0x58] sm:$0xff]
    %v957 = vld [vmem:[#allocation3 + $0x60] sm:$0xff]
    %v958 = vld [vmem:[#allocation3 + $0x68] sm:$0xff]
    %v959 = vld [vmem:[#allocation3 + $0x70] sm:$0xff]
    %v960 = vld [vmem:[#allocation3 + $0x78] sm:$0xff]
    %v961 = vld [vmem:[#allocation3 + $0x80] sm:$0xff]
    %v962 = vld [vmem:[#allocation3 + $0x88] sm:$0xff]
    %v963 = vld [vmem:[#allocation3 + $0x90] sm:$0xff]
    %v964 = vld [vmem:[#allocation3 + $0x98] sm:$0xff]
    %v965 = vld [vmem:[#allocation3 + $0xa0] sm:$0xff]
    %v966 = vld [vmem:[#allocation3 + $0xa8] sm:$0xff]
    %v967 = vld [vmem:[#allocation3 + $0xb0] sm:$0xff]
    %v968 = vld [vmem:[#allocation3 + $0xb8] sm:$0xff]
    %v969 = vld [vmem:[#allocation3 + $0xc0] sm:$0xff]
    %v970 = vld [vmem:[#allocation3 + $0xc8] sm:$0xff]
    %v971 = vld [vmem:[#allocation3 + $0xd0] sm:$0xff]
    %v972 = vld [vmem:[#allocation3 + $0xd8] sm:$0xff]
    %v973 = vld [vmem:[#allocation3 + $0xe0] sm:$0xff]
    %v974 = vld [vmem:[#allocation3 + $0xe8] sm:$0xff]
    %v975 = vld [vmem:[#allocation3 + $0xf0] sm:$0xff]
    %v976 = vld [vmem:[#allocation3 + $0xf8] sm:$0xff]
    %v977 = vld [vmem:[#allocation3 + $0x100] sm:$0xff]
    %v978 = vld [vmem:[#allocation3 + $0x108] sm:$0xff]
    %v979 = vld [vmem:[#allocation3 + $0x110] sm:$0xff]
    %v980 = vld [vmem:[#allocation3 + $0x118] sm:$0xff]
    %v981 = vld [vmem:[#allocation3 + $0x120] sm:$0xff]
    %v982 = vld [vmem:[#allocation3 + $0x128] sm:$0xff]
    %v983 = vld [vmem:[#allocation3 + $0x130] sm:$0xff]
    %v984 = vld [vmem:[#allocation3 + $0x138] sm:$0xff]
    %v985 = vld [vmem:[#allocation3 + $0x140] sm:$0xff]
    %v986 = vld [vmem:[#allocation3 + $0x148] sm:$0xff]
    %v987 = vld [vmem:[#allocation3 + $0x150] sm:$0xff]
    %v988 = vld [vmem:[#allocation3 + $0x158] sm:$0xff]
    %v989 = vld [vmem:[#allocation3 + $0x160] sm:$0xff]
    %v990 = vld [vmem:[#allocation3 + $0x168] sm:$0xff]
    %v991 = vld [vmem:[#allocation3 + $0x170] sm:$0xff]
    %v992 = vld [vmem:[#allocation3 + $0x178] sm:$0xff]
    %993 = vmatprep.subr.mxu0 %v946
    %994 = vmatpush1.msra.mxu0 %v945
    %995 = vmatprep.subr.mxu0 %v949
    %996 = vmatpush1.msra.mxu0 %v948
    %997 = vmatprep.subr.mxu0 %v952
    %998 = vmatpush1.msra.mxu0 %v951
    %999 = vmatprep.subr.mxu0 %v955
    %1000 = vmatpush1.msra.mxu0 %v954
    %1001 = vmatprep.subr.mxu0 %v958
    %1002 = vmatpush1.msra.mxu0 %v957
    %1003 = vmatprep.subr.mxu0 %v961
    %1004 = vmatpush1.msra.mxu0 %v960
    %1005 = vmatprep.subr.mxu0 %v964
    %1006 = vmatpush1.msra.mxu0 %v963
    %1007 = vmatprep.subr.mxu0 %v967
    %1008 = vmatpush1.msra.mxu0 %v966
    %1009 = vmatprep.subr.mxu0 %v970
    %1010 = vmatpush1.msra.mxu0 %v969
    %1011 = vmatprep.subr.mxu0 %v973
    %1012 = vmatpush1.msra.mxu0 %v972
    %1013 = vmatprep.subr.mxu0 %v976
    %1014 = vmatpush1.msra.mxu0 %v975
    %1015 = vmatprep.subr.mxu0 %v979
    %1016 = vmatpush1.msra.mxu0 %v978
    %1017 = vmatprep.subr.mxu0 %v982
    %1018 = vmatpush1.msra.mxu0 %v981
    %1019 = vmatprep.subr.mxu0 %v985
    %1020 = vmatpush1.msra.mxu0 %v984
    %1021 = vmatprep.subr.mxu0 %v988
    %1022 = vmatpush1.msra.mxu0 %v987
    %1023 = vmatprep.subr.mxu0 %v991
    %1024 = vmatpush1.msra.mxu0 %v990
    %1025 = vmatprep.subr.mxu0 0.0
    %1026 = vmatpush1.msra.mxu0 0.0
    %1027 = vmatprep.subr.mxu0 0.0
    %1028 = vmatpush1.msra.mxu0 0.0
    %1029 = vmatprep.subr.mxu0 0.0
    %1030 = vmatpush1.msra.mxu0 0.0
    %1031 = vmatprep.subr.mxu0 0.0
    %1032 = vmatpush1.msra.mxu0 0.0
    %1033 = vmatprep.subr.mxu0 0.0
    %1034 = vmatpush1.msra.mxu0 0.0
    %1035 = vmatprep.subr.mxu0 0.0
    %1036 = vmatpush1.msra.mxu0 0.0
    %1037 = vmatprep.subr.mxu0 0.0
    %1038 = vmatpush1.msra.mxu0 0.0
    %1039 = vmatprep.subr.mxu0 0.0
    %1040 = vmatpush1.msra.mxu0 0.0
    %1041 = vmatprep.subr.mxu0 0.0
    %1042 = vmatpush1.msra.mxu0 0.0
    %1043 = vmatprep.subr.mxu0 0.0
    %1044 = vmatpush1.msra.mxu0 0.0
    %1045 = vmatprep.subr.mxu0 0.0
    %1046 = vmatpush1.msra.mxu0 0.0
    %1047 = vmatprep.subr.mxu0 0.0
    %1048 = vmatpush1.msra.mxu0 0.0
    %1049 = vmatprep.subr.mxu0 0.0
    %1050 = vmatpush1.msra.mxu0 0.0
    %1051 = vmatprep.subr.mxu0 0.0
    %1052 = vmatpush1.msra.mxu0 0.0
    %1053 = vmatprep.subr.mxu0 0.0
    %1054 = vmatpush1.msra.mxu0 0.0
    %1055 = vmatprep.subr.mxu0 0.0
    %1056 = vmatpush1.msra.mxu0 0.0
    %1057 = vmatprep.mubr.f32.mxu0 0.0
    %1058 = vmatmul.mubr.f32.gmra.mrb[0].mxu0 %v940
    %v1059 = vpop.f32.mrb[0].mxu0
    %v1060 = vadd.f32 %v56, %v1059
    %v1061 = vpop.f32.mrb[0].mxu0
    %v1062 = vadd.f32 %v60, %v1061
    %1063 = vdwg.mxu0
    %1064 = vmatprep.subr.mxu0 0.0
    %1065 = vmatpush1.msra.mxu0 %v947
    %1066 = vmatprep.subr.mxu0 0.0
    %1067 = vmatpush1.msra.mxu0 %v950
    %1068 = vmatprep.subr.mxu0 0.0
    %1069 = vmatpush1.msra.mxu0 %v953
    %1070 = vmatprep.subr.mxu0 0.0
    %1071 = vmatpush1.msra.mxu0 %v956
    %1072 = vmatprep.subr.mxu0 0.0
    %1073 = vmatpush1.msra.mxu0 %v959
    %1074 = vmatprep.subr.mxu0 0.0
    %1075 = vmatpush1.msra.mxu0 %v962
    %1076 = vmatprep.subr.mxu0 0.0
    %1077 = vmatpush1.msra.mxu0 %v965
    %1078 = vmatprep.subr.mxu0 0.0
    %1079 = vmatpush1.msra.mxu0 %v968
    %1080 = vmatprep.subr.mxu0 0.0
    %1081 = vmatpush1.msra.mxu0 %v971
    %1082 = vmatprep.subr.mxu0 0.0
    %1083 = vmatpush1.msra.mxu0 %v974
    %1084 = vmatprep.subr.mxu0 0.0
    %1085 = vmatpush1.msra.mxu0 %v977
    %1086 = vmatprep.subr.mxu0 0.0
    %1087 = vmatpush1.msra.mxu0 %v980
    %1088 = vmatprep.subr.mxu0 0.0
    %1089 = vmatpush1.msra.mxu0 %v983
    %1090 = vmatprep.subr.mxu0 0.0
    %1091 = vmatpush1.msra.mxu0 %v986
    %1092 = vmatprep.subr.mxu0 0.0
    %1093 = vmatpush1.msra.mxu0 %v989
    %1094 = vmatprep.subr.mxu0 0.0
    %1095 = vmatpush1.msra.mxu0 %v992
    %1096 = vmatprep.subr.mxu0 0.0
    %1097 = vmatpush1.msra.mxu0 0.0
    %1098 = vmatprep.subr.mxu0 0.0
    %1099 = vmatpush1.msra.mxu0 0.0
    %1100 = vmatprep.subr.mxu0 0.0
    %1101 = vmatpush1.msra.mxu0 0.0
    %1102 = vmatprep.subr.mxu0 0.0
    %1103 = vmatpush1.msra.mxu0 0.0
    %1104 = vmatprep.subr.mxu0 0.0
    %1105 = vmatpush1.msra.mxu0 0.0
    %1106 = vmatprep.subr.mxu0 0.0
    %1107 = vmatpush1.msra.mxu0 0.0
    %1108 = vmatprep.subr.mxu0 0.0
    %1109 = vmatpush1.msra.mxu0 0.0
    %1110 = vmatprep.subr.mxu0 0.0
    %1111 = vmatpush1.msra.mxu0 0.0
    %1112 = vmatprep.subr.mxu0 0.0
    %1113 = vmatpush1.msra.mxu0 0.0
    %1114 = vmatprep.subr.mxu0 0.0
    %1115 = vmatpush1.msra.mxu0 0.0
    %1116 = vmatprep.subr.mxu0 0.0
    %1117 = vmatpush1.msra.mxu0 0.0
    %1118 = vmatprep.subr.mxu0 0.0
    %1119 = vmatpush1.msra.mxu0 0.0
    %1120 = vmatprep.subr.mxu0 0.0
    %1121 = vmatpush1.msra.mxu0 0.0
    %1122 = vmatprep.subr.mxu0 0.0
    %1123 = vmatpush1.msra.mxu0 0.0
    %1124 = vmatprep.subr.mxu0 0.0
    %1125 = vmatpush1.msra.mxu0 0.0
    %1126 = vmatprep.subr.mxu0 0.0
    %1127 = vmatpush1.msra.mxu0 0.0
    %1128 = vmatprep.mubr.f32.mxu0 0.0
    %1129 = vmatmul.mubr.f32.gmra.mrb[0].mxu0 %v940
    %v1130 = vpop.f32.mrb[0].mxu0
    %v1131 = vadd.f32 %v64, %v1130
    %v1132 = vpop.f32.mrb[0].mxu0
    %1133 = vdwg.mxu0
    %v1134 = vadd.f32 %v944, %v1060
    %v1135 = vxor.u32 %v1134, 2147483648
    %v1136 = vmul.f32 %v1135, 1.442695
    %v1137 = vpow.pop %v1136
    %v1138 = vadd.f32 %v1137, 1.0
    %v1139 = vrcp.pop %v1138
    %v1140 = vmul.f32 1.0, %v1139
    %v1142 = vrot.slane %v944, 2
    %v1144 = vadd.f32 %v1142, %v1062
    %v1145 = vxor.u32 %v1144, 2147483648
    %v1146 = vmul.f32 %v1145, 1.442695
    %v1147 = vpow.pop %v1146
    %v1148 = vadd.f32 %v1147, 1.0
    %v1149 = vrcp.pop %v1148
    %v1150 = vmul.f32 1.0, %v1149
    %v1151 = vmul.f32 %v1140, %v1131
    %v1152 = vrot.slane %v944, 4
    %v1154 = vadd.f32 %v1152, %v1151
    %v1155 = vtanh.pop %v1154
    %v1156 = vsub.f32 1.0, %v1150
    %v1157 = vmul.f32 %v1156, %v1155
    %v1158 = vmul.f32 %v1150, %v940
    %v1159 = vadd.f32 %v1157, %v1158
    %s1160 = scalar_lea.vmem %s4, 8
    %1161 = vst [vmem:[%s1160] sm:$0x3] %v1159
    %s1162 = scalar_lea.vmem %s0, 30
    %v1163 = vld [vmem:[%s1162] sm:$0x3f]
    %v1164 = vld [vmem:[#allocation3] sm:$0xff]
    %v1165 = vld [vmem:[#allocation3 + $0x8] sm:$0xff]
    %v1166 = vld [vmem:[#allocation3 + $0x10] sm:$0xff]
    %v1167 = vld [vmem:[#allocation3 + $0x18] sm:$0xff]
    %v1168 = vld [vmem:[#allocation3 + $0x20] sm:$0xff]
    %v1169 = vld [vmem:[#allocation3 + $0x28] sm:$0xff]
    %v1170 = vld [vmem:[#allocation3 + $0x30] sm:$0xff]
    %v1171 = vld [vmem:[#allocation3 + $0x38] sm:$0xff]
    %v1172 = vld [vmem:[#allocation3 + $0x40] sm:$0xff]
    %v1173 = vld [vmem:[#allocation3 + $0x48] sm:$0xff]
    %v1174 = vld [vmem:[#allocation3 + $0x50] sm:$0xff]
    %v1175 = vld [vmem:[#allocation3 + $0x58] sm:$0xff]
    %v1176 = vld [vmem:[#allocation3 + $0x60] sm:$0xff]
    %v1177 = vld [vmem:[#allocation3 + $0x68] sm:$0xff]
    %v1178 = vld [vmem:[#allocation3 + $0x70] sm:$0xff]
    %v1179 = vld [vmem:[#allocation3 + $0x78] sm:$0xff]
    %v1180 = vld [vmem:[#allocation3 + $0x80] sm:$0xff]
    %v1181 = vld [vmem:[#allocation3 + $0x88] sm:$0xff]
    %v1182 = vld [vmem:[#allocation3 + $0x90] sm:$0xff]
    %v1183 = vld [vmem:[#allocation3 + $0x98] sm:$0xff]
    %v1184 = vld [vmem:[#allocation3 + $0xa0] sm:$0xff]
    %v1185 = vld [vmem:[#allocation3 + $0xa8] sm:$0xff]
    %v1186 = vld [vmem:[#allocation3 + $0xb0] sm:$0xff]
    %v1187 = vld [vmem:[#allocation3 + $0xb8] sm:$0xff]
    %v1188 = vld [vmem:[#allocation3 + $0xc0] sm:$0xff]
    %v1189 = vld [vmem:[#allocation3 + $0xc8] sm:$0xff]
    %v1190 = vld [vmem:[#allocation3 + $0xd0] sm:$0xff]
    %v1191 = vld [vmem:[#allocation3 + $0xd8] sm:$0xff]
    %v1192 = vld [vmem:[#allocation3 + $0xe0] sm:$0xff]
    %v1193 = vld [vmem:[#allocation3 + $0xe8] sm:$0xff]
    %v1194 = vld [vmem:[#allocation3 + $0xf0] sm:$0xff]
    %v1195 = vld [vmem:[#allocation3 + $0xf8] sm:$0xff]
    %v1196 = vld [vmem:[#allocation3 + $0x100] sm:$0xff]
    %v1197 = vld [vmem:[#allocation3 + $0x108] sm:$0xff]
    %v1198 = vld [vmem:[#allocation3 + $0x110] sm:$0xff]
    %v1199 = vld [vmem:[#allocation3 + $0x118] sm:$0xff]
    %v1200 = vld [vmem:[#allocation3 + $0x120] sm:$0xff]
    %v1201 = vld [vmem:[#allocation3 + $0x128] sm:$0xff]
    %v1202 = vld [vmem:[#allocation3 + $0x130] sm:$0xff]
    %v1203 = vld [vmem:[#allocation3 + $0x138] sm:$0xff]
    %v1204 = vld [vmem:[#allocation3 + $0x140] sm:$0xff]
    %v1205 = vld [vmem:[#allocation3 + $0x148] sm:$0xff]
    %v1206 = vld [vmem:[#allocation3 + $0x150] sm:$0xff]
    %v1207 = vld [vmem:[#allocation3 + $0x158] sm:$0xff]
    %v1208 = vld [vmem:[#allocation3 + $0x160] sm:$0xff]
    %v1209 = vld [vmem:[#allocation3 + $0x168] sm:$0xff]
    %v1210 = vld [vmem:[#allocation3 + $0x170] sm:$0xff]
    %v1211 = vld [vmem:[#allocation3 + $0x178] sm:$0xff]
    %1212 = vmatprep.subr.mxu0 %v1165
    %1213 = vmatpush1.msra.mxu0 %v1164
    %1214 = vmatprep.subr.mxu0 %v1168
    %1215 = vmatpush1.msra.mxu0 %v1167
    %1216 = vmatprep.subr.mxu0 %v1171
    %1217 = vmatpush1.msra.mxu0 %v1170
    %1218 = vmatprep.subr.mxu0 %v1174
    %1219 = vmatpush1.msra.mxu0 %v1173
    %1220 = vmatprep.subr.mxu0 %v1177
    %1221 = vmatpush1.msra.mxu0 %v1176
    %1222 = vmatprep.subr.mxu0 %v1180
    %1223 = vmatpush1.msra.mxu0 %v1179
    %1224 = vmatprep.subr.mxu0 %v1183
    %1225 = vmatpush1.msra.mxu0 %v1182
    %1226 = vmatprep.subr.mxu0 %v1186
    %1227 = vmatpush1.msra.mxu0 %v1185
    %1228 = vmatprep.subr.mxu0 %v1189
    %1229 = vmatpush1.msra.mxu0 %v1188
    %1230 = vmatprep.subr.mxu0 %v1192
    %1231 = vmatpush1.msra.mxu0 %v1191
    %1232 = vmatprep.subr.mxu0 %v1195
    %1233 = vmatpush1.msra.mxu0 %v1194
    %1234 = vmatprep.subr.mxu0 %v1198
    %1235 = vmatpush1.msra.mxu0 %v1197
    %1236 = vmatprep.subr.mxu0 %v1201
    %1237 = vmatpush1.msra.mxu0 %v1200
    %1238 = vmatprep.subr.mxu0 %v1204
    %1239 = vmatpush1.msra.mxu0 %v1203
    %1240 = vmatprep.subr.mxu0 %v1207
    %1241 = vmatpush1.msra.mxu0 %v1206
    %1242 = vmatprep.subr.mxu0 %v1210
    %1243 = vmatpush1.msra.mxu0 %v1209
    %1244 = vmatprep.subr.mxu0 0.0
    %1245 = vmatpush1.msra.mxu0 0.0
    %1246 = vmatprep.subr.mxu0 0.0
    %1247 = vmatpush1.msra.mxu0 0.0
    %1248 = vmatprep.subr.mxu0 0.0
    %1249 = vmatpush1.msra.mxu0 0.0
    %1250 = vmatprep.subr.mxu0 0.0
    %1251 = vmatpush1.msra.mxu0 0.0
    %1252 = vmatprep.subr.mxu0 0.0
    %1253 = vmatpush1.msra.mxu0 0.0
    %1254 = vmatprep.subr.mxu0 0.0
    %1255 = vmatpush1.msra.mxu0 0.0
    %1256 = vmatprep.subr.mxu0 0.0
    %1257 = vmatpush1.msra.mxu0 0.0
    %1258 = vmatprep.subr.mxu0 0.0
    %1259 = vmatpush1.msra.mxu0 0.0
    %1260 = vmatprep.subr.mxu0 0.0
    %1261 = vmatpush1.msra.mxu0 0.0
    %1262 = vmatprep.subr.mxu0 0.0
    %1263 = vmatpush1.msra.mxu0 0.0
    %1264 = vmatprep.subr.mxu0 0.0
    %1265 = vmatpush1.msra.mxu0 0.0
    %1266 = vmatprep.subr.mxu0 0.0
    %1267 = vmatpush1.msra.mxu0 0.0
    %1268 = vmatprep.subr.mxu0 0.0
    %1269 = vmatpush1.msra.mxu0 0.0
    %1270 = vmatprep.subr.mxu0 0.0
    %1271 = vmatpush1.msra.mxu0 0.0
    %1272 = vmatprep.subr.mxu0 0.0
    %1273 = vmatpush1.msra.mxu0 0.0
    %1274 = vmatprep.subr.mxu0 0.0
    %1275 = vmatpush1.msra.mxu0 0.0
    %1276 = vmatprep.mubr.f32.mxu0 0.0
    %1277 = vmatmul.mubr.f32.gmra.mrb[0].mxu0 %v1159
    %v1278 = vpop.f32.mrb[0].mxu0
    %v1279 = vadd.f32 %v56, %v1278
    %v1280 = vpop.f32.mrb[0].mxu0
    %v1281 = vadd.f32 %v60, %v1280
    %1282 = vdwg.mxu0
    %1283 = vmatprep.subr.mxu0 0.0
    %1284 = vmatpush1.msra.mxu0 %v1166
    %1285 = vmatprep.subr.mxu0 0.0
    %1286 = vmatpush1.msra.mxu0 %v1169
    %1287 = vmatprep.subr.mxu0 0.0
    %1288 = vmatpush1.msra.mxu0 %v1172
    %1289 = vmatprep.subr.mxu0 0.0
    %1290 = vmatpush1.msra.mxu0 %v1175
    %1291 = vmatprep.subr.mxu0 0.0
    %1292 = vmatpush1.msra.mxu0 %v1178
    %1293 = vmatprep.subr.mxu0 0.0
    %1294 = vmatpush1.msra.mxu0 %v1181
    %1295 = vmatprep.subr.mxu0 0.0
    %1296 = vmatpush1.msra.mxu0 %v1184
    %1297 = vmatprep.subr.mxu0 0.0
    %1298 = vmatpush1.msra.mxu0 %v1187
    %1299 = vmatprep.subr.mxu0 0.0
    %1300 = vmatpush1.msra.mxu0 %v1190
    %1301 = vmatprep.subr.mxu0 0.0
    %1302 = vmatpush1.msra.mxu0 %v1193
    %1303 = vmatprep.subr.mxu0 0.0
    %1304 = vmatpush1.msra.mxu0 %v1196
    %1305 = vmatprep.subr.mxu0 0.0
    %1306 = vmatpush1.msra.mxu0 %v1199
    %1307 = vmatprep.subr.mxu0 0.0
    %1308 = vmatpush1.msra.mxu0 %v1202
    %1309 = vmatprep.subr.mxu0 0.0
    %1310 = vmatpush1.msra.mxu0 %v1205
    %1311 = vmatprep.subr.mxu0 0.0
    %1312 = vmatpush1.msra.mxu0 %v1208
    %1313 = vmatprep.subr.mxu0 0.0
    %1314 = vmatpush1.msra.mxu0 %v1211
    %1315 = vmatprep.subr.mxu0 0.0
    %1316 = vmatpush1.msra.mxu0 0.0
    %1317 = vmatprep.subr.mxu0 0.0
    %1318 = vmatpush1.msra.mxu0 0.0
    %1319 = vmatprep.subr.mxu0 0.0
    %1320 = vmatpush1.msra.mxu0 0.0
    %1321 = vmatprep.subr.mxu0 0.0
    %1322 = vmatpush1.msra.mxu0 0.0
    %1323 = vmatprep.subr.mxu0 0.0
    %1324 = vmatpush1.msra.mxu0 0.0
    %1325 = vmatprep.subr.mxu0 0.0
    %1326 = vmatpush1.msra.mxu0 0.0
    %1327 = vmatprep.subr.mxu0 0.0
    %1328 = vmatpush1.msra.mxu0 0.0
    %1329 = vmatprep.subr.mxu0 0.0
    %1330 = vmatpush1.msra.mxu0 0.0
    %1331 = vmatprep.subr.mxu0 0.0
    %1332 = vmatpush1.msra.mxu0 0.0
    %1333 = vmatprep.subr.mxu0 0.0
    %1334 = vmatpush1.msra.mxu0 0.0
    %1335 = vmatprep.subr.mxu0 0.0
    %1336 = vmatpush1.msra.mxu0 0.0
    %1337 = vmatprep.subr.mxu0 0.0
    %1338 = vmatpush1.msra.mxu0 0.0
    %1339 = vmatprep.subr.mxu0 0.0
    %1340 = vmatpush1.msra.mxu0 0.0
    %1341 = vmatprep.subr.mxu0 0.0
    %1342 = vmatpush1.msra.mxu0 0.0
    %1343 = vmatprep.subr.mxu0 0.0
    %1344 = vmatpush1.msra.mxu0 0.0
    %1345 = vmatprep.subr.mxu0 0.0
    %1346 = vmatpush1.msra.mxu0 0.0
    %1347 = vmatprep.mubr.f32.mxu0 0.0
    %1348 = vmatmul.mubr.f32.gmra.mrb[0].mxu0 %v1159
    %v1349 = vpop.f32.mrb[0].mxu0
    %v1350 = vadd.f32 %v64, %v1349
    %v1351 = vpop.f32.mrb[0].mxu0
    %1352 = vdwg.mxu0
    %v1353 = vadd.f32 %v1163, %v1279
    %v1354 = vxor.u32 %v1353, 2147483648
    %v1355 = vmul.f32 %v1354, 1.442695
    %v1356 = vpow.pop %v1355
    %v1357 = vadd.f32 %v1356, 1.0
    %v1358 = vrcp.pop %v1357
    %v1359 = vmul.f32 1.0, %v1358
    %v1361 = vrot.slane %v1163, 2
    %v1363 = vadd.f32 %v1361, %v1281
    %v1364 = vxor.u32 %v1363, 2147483648
    %v1365 = vmul.f32 %v1364, 1.442695
    %v1366 = vpow.pop %v1365
    %v1367 = vadd.f32 %v1366, 1.0
    %v1368 = vrcp.pop %v1367
    %v1369 = vmul.f32 1.0, %v1368
    %v1370 = vmul.f32 %v1359, %v1350
    %v1371 = vrot.slane %v1163, 4
    %v1373 = vadd.f32 %v1371, %v1370
    %v1374 = vtanh.pop %v1373
    %v1375 = vsub.f32 1.0, %v1369
    %v1376 = vmul.f32 %v1375, %v1374
    %v1377 = vmul.f32 %v1369, %v1159
    %v1378 = vadd.f32 %v1376, %v1377
    %s1379 = scalar_lea.vmem %s4, 10
    %1380 = vst [vmem:[%s1379] sm:$0x3] %v1378
    %s1381 = scalar_lea.vmem %s0, 36
    %v1382 = vld [vmem:[%s1381] sm:$0x3f]
    %v1383 = vld [vmem:[#allocation3] sm:$0xff]
    %v1384 = vld [vmem:[#allocation3 + $0x8] sm:$0xff]
    %v1385 = vld [vmem:[#allocation3 + $0x10] sm:$0xff]
    %v1386 = vld [vmem:[#allocation3 + $0x18] sm:$0xff]
    %v1387 = vld [vmem:[#allocation3 + $0x20] sm:$0xff]
    %v1388 = vld [vmem:[#allocation3 + $0x28] sm:$0xff]
    %v1389 = vld [vmem:[#allocation3 + $0x30] sm:$0xff]
    %v1390 = vld [vmem:[#allocation3 + $0x38] sm:$0xff]
    %v1391 = vld [vmem:[#allocation3 + $0x40] sm:$0xff]
    %v1392 = vld [vmem:[#allocation3 + $0x48] sm:$0xff]
    %v1393 = vld [vmem:[#allocation3 + $0x50] sm:$0xff]
    %v1394 = vld [vmem:[#allocation3 + $0x58] sm:$0xff]
    %v1395 = vld [vmem:[#allocation3 + $0x60] sm:$0xff]
    %v1396 = vld [vmem:[#allocation3 + $0x68] sm:$0xff]
    %v1397 = vld [vmem:[#allocation3 + $0x70] sm:$0xff]
    %v1398 = vld [vmem:[#allocation3 + $0x78] sm:$0xff]
    %v1399 = vld [vmem:[#allocation3 + $0x80] sm:$0xff]
    %v1400 = vld [vmem:[#allocation3 + $0x88] sm:$0xff]
    %v1401 = vld [vmem:[#allocation3 + $0x90] sm:$0xff]
    %v1402 = vld [vmem:[#allocation3 + $0x98] sm:$0xff]
    %v1403 = vld [vmem:[#allocation3 + $0xa0] sm:$0xff]
    %v1404 = vld [vmem:[#allocation3 + $0xa8] sm:$0xff]
    %v1405 = vld [vmem:[#allocation3 + $0xb0] sm:$0xff]
    %v1406 = vld [vmem:[#allocation3 + $0xb8] sm:$0xff]
    %v1407 = vld [vmem:[#allocation3 + $0xc0] sm:$0xff]
    %v1408 = vld [vmem:[#allocation3 + $0xc8] sm:$0xff]
    %v1409 = vld [vmem:[#allocation3 + $0xd0] sm:$0xff]
    %v1410 = vld [vmem:[#allocation3 + $0xd8] sm:$0xff]
    %v1411 = vld [vmem:[#allocation3 + $0xe0] sm:$0xff]
    %v1412 = vld [vmem:[#allocation3 + $0xe8] sm:$0xff]
    %v1413 = vld [vmem:[#allocation3 + $0xf0] sm:$0xff]
    %v1414 = vld [vmem:[#allocation3 + $0xf8] sm:$0xff]
    %v1415 = vld [vmem:[#allocation3 + $0x100] sm:$0xff]
    %v1416 = vld [vmem:[#allocation3 + $0x108] sm:$0xff]
    %v1417 = vld [vmem:[#allocation3 + $0x110] sm:$0xff]
    %v1418 = vld [vmem:[#allocation3 + $0x118] sm:$0xff]
    %v1419 = vld [vmem:[#allocation3 + $0x120] sm:$0xff]
    %v1420 = vld [vmem:[#allocation3 + $0x128] sm:$0xff]
    %v1421 = vld [vmem:[#allocation3 + $0x130] sm:$0xff]
    %v1422 = vld [vmem:[#allocation3 + $0x138] sm:$0xff]
    %v1423 = vld [vmem:[#allocation3 + $0x140] sm:$0xff]
    %v1424 = vld [vmem:[#allocation3 + $0x148] sm:$0xff]
    %v1425 = vld [vmem:[#allocation3 + $0x150] sm:$0xff]
    %v1426 = vld [vmem:[#allocation3 + $0x158] sm:$0xff]
    %v1427 = vld [vmem:[#allocation3 + $0x160] sm:$0xff]
    %v1428 = vld [vmem:[#allocation3 + $0x168] sm:$0xff]
    %v1429 = vld [vmem:[#allocation3 + $0x170] sm:$0xff]
    %v1430 = vld [vmem:[#allocation3 + $0x178] sm:$0xff]
    %1431 = vmatprep.subr.mxu0 %v1384
    %1432 = vmatpush1.msra.mxu0 %v1383
    %1433 = vmatprep.subr.mxu0 %v1387
    %1434 = vmatpush1.msra.mxu0 %v1386
    %1435 = vmatprep.subr.mxu0 %v1390
    %1436 = vmatpush1.msra.mxu0 %v1389
    %1437 = vmatprep.subr.mxu0 %v1393
    %1438 = vmatpush1.msra.mxu0 %v1392
    %1439 = vmatprep.subr.mxu0 %v1396
    %1440 = vmatpush1.msra.mxu0 %v1395
    %1441 = vmatprep.subr.mxu0 %v1399
    %1442 = vmatpush1.msra.mxu0 %v1398
    %1443 = vmatprep.subr.mxu0 %v1402
    %1444 = vmatpush1.msra.mxu0 %v1401
    %1445 = vmatprep.subr.mxu0 %v1405
    %1446 = vmatpush1.msra.mxu0 %v1404
    %1447 = vmatprep.subr.mxu0 %v1408
    %1448 = vmatpush1.msra.mxu0 %v1407
    %1449 = vmatprep.subr.mxu0 %v1411
    %1450 = vmatpush1.msra.mxu0 %v1410
    %1451 = vmatprep.subr.mxu0 %v1414
    %1452 = vmatpush1.msra.mxu0 %v1413
    %1453 = vmatprep.subr.mxu0 %v1417
    %1454 = vmatpush1.msra.mxu0 %v1416
    %1455 = vmatprep.subr.mxu0 %v1420
    %1456 = vmatpush1.msra.mxu0 %v1419
    %1457 = vmatprep.subr.mxu0 %v1423
    %1458 = vmatpush1.msra.mxu0 %v1422
    %1459 = vmatprep.subr.mxu0 %v1426
    %1460 = vmatpush1.msra.mxu0 %v1425
    %1461 = vmatprep.subr.mxu0 %v1429
    %1462 = vmatpush1.msra.mxu0 %v1428
    %1463 = vmatprep.subr.mxu0 0.0
    %1464 = vmatpush1.msra.mxu0 0.0
    %1465 = vmatprep.subr.mxu0 0.0
    %1466 = vmatpush1.msra.mxu0 0.0
    %1467 = vmatprep.subr.mxu0 0.0
    %1468 = vmatpush1.msra.mxu0 0.0
    %1469 = vmatprep.subr.mxu0 0.0
    %1470 = vmatpush1.msra.mxu0 0.0
    %1471 = vmatprep.subr.mxu0 0.0
    %1472 = vmatpush1.msra.mxu0 0.0
    %1473 = vmatprep.subr.mxu0 0.0
    %1474 = vmatpush1.msra.mxu0 0.0
    %1475 = vmatprep.subr.mxu0 0.0
    %1476 = vmatpush1.msra.mxu0 0.0
    %1477 = vmatprep.subr.mxu0 0.0
    %1478 = vmatpush1.msra.mxu0 0.0
    %1479 = vmatprep.subr.mxu0 0.0
    %1480 = vmatpush1.msra.mxu0 0.0
    %1481 = vmatprep.subr.mxu0 0.0
    %1482 = vmatpush1.msra.mxu0 0.0
    %1483 = vmatprep.subr.mxu0 0.0
    %1484 = vmatpush1.msra.mxu0 0.0
    %1485 = vmatprep.subr.mxu0 0.0
    %1486 = vmatpush1.msra.mxu0 0.0
    %1487 = vmatprep.subr.mxu0 0.0
    %1488 = vmatpush1.msra.mxu0 0.0
    %1489 = vmatprep.subr.mxu0 0.0
    %1490 = vmatpush1.msra.mxu0 0.0
    %1491 = vmatprep.subr.mxu0 0.0
    %1492 = vmatpush1.msra.mxu0 0.0
    %1493 = vmatprep.subr.mxu0 0.0
    %1494 = vmatpush1.msra.mxu0 0.0
    %1495 = vmatprep.mubr.f32.mxu0 0.0
    %1496 = vmatmul.mubr.f32.gmra.mrb[0].mxu0 %v1378
    %v1497 = vpop.f32.mrb[0].mxu0
    %v1498 = vadd.f32 %v56, %v1497
    %v1499 = vpop.f32.mrb[0].mxu0
    %v1500 = vadd.f32 %v60, %v1499
    %1501 = vdwg.mxu0
    %1502 = vmatprep.subr.mxu0 0.0
    %1503 = vmatpush1.msra.mxu0 %v1385
    %1504 = vmatprep.subr.mxu0 0.0
    %1505 = vmatpush1.msra.mxu0 %v1388
    %1506 = vmatprep.subr.mxu0 0.0
    %1507 = vmatpush1.msra.mxu0 %v1391
    %1508 = vmatprep.subr.mxu0 0.0
    %1509 = vmatpush1.msra.mxu0 %v1394
    %1510 = vmatprep.subr.mxu0 0.0
    %1511 = vmatpush1.msra.mxu0 %v1397
    %1512 = vmatprep.subr.mxu0 0.0
    %1513 = vmatpush1.msra.mxu0 %v1400
    %1514 = vmatprep.subr.mxu0 0.0
    %1515 = vmatpush1.msra.mxu0 %v1403
    %1516 = vmatprep.subr.mxu0 0.0
    %1517 = vmatpush1.msra.mxu0 %v1406
    %1518 = vmatprep.subr.mxu0 0.0
    %1519 = vmatpush1.msra.mxu0 %v1409
    %1520 = vmatprep.subr.mxu0 0.0
    %1521 = vmatpush1.msra.mxu0 %v1412
    %1522 = vmatprep.subr.mxu0 0.0
    %1523 = vmatpush1.msra.mxu0 %v1415
    %1524 = vmatprep.subr.mxu0 0.0
    %1525 = vmatpush1.msra.mxu0 %v1418
    %1526 = vmatprep.subr.mxu0 0.0
    %1527 = vmatpush1.msra.mxu0 %v1421
    %1528 = vmatprep.subr.mxu0 0.0
    %1529 = vmatpush1.msra.mxu0 %v1424
    %1530 = vmatprep.subr.mxu0 0.0
    %1531 = vmatpush1.msra.mxu0 %v1427
    %1532 = vmatprep.subr.mxu0 0.0
    %1533 = vmatpush1.msra.mxu0 %v1430
    %1534 = vmatprep.subr.mxu0 0.0
    %1535 = vmatpush1.msra.mxu0 0.0
    %1536 = vmatprep.subr.mxu0 0.0
    %1537 = vmatpush1.msra.mxu0 0.0
    %1538 = vmatprep.subr.mxu0 0.0
    %1539 = vmatpush1.msra.mxu0 0.0
    %1540 = vmatprep.subr.mxu0 0.0
    %1541 = vmatpush1.msra.mxu0 0.0
    %1542 = vmatprep.subr.mxu0 0.0
    %1543 = vmatpush1.msra.mxu0 0.0
    %1544 = vmatprep.subr.mxu0 0.0
    %1545 = vmatpush1.msra.mxu0 0.0
    %1546 = vmatprep.subr.mxu0 0.0
    %1547 = vmatpush1.msra.mxu0 0.0
    %1548 = vmatprep.subr.mxu0 0.0
    %1549 = vmatpush1.msra.mxu0 0.0
    %1550 = vmatprep.subr.mxu0 0.0
    %1551 = vmatpush1.msra.mxu0 0.0
    %1552 = vmatprep.subr.mxu0 0.0
    %1553 = vmatpush1.msra.mxu0 0.0
    %1554 = vmatprep.subr.mxu0 0.0
    %1555 = vmatpush1.msra.mxu0 0.0
    %1556 = vmatprep.subr.mxu0 0.0
    %1557 = vmatpush1.msra.mxu0 0.0
    %1558 = vmatprep.subr.mxu0 0.0
    %1559 = vmatpush1.msra.mxu0 0.0
    %1560 = vmatprep.subr.mxu0 0.0
    %1561 = vmatpush1.msra.mxu0 0.0
    %1562 = vmatprep.subr.mxu0 0.0
    %1563 = vmatpush1.msra.mxu0 0.0
    %1564 = vmatprep.subr.mxu0 0.0
    %1565 = vmatpush1.msra.mxu0 0.0
    %1566 = vmatprep.mubr.f32.mxu0 0.0
    %1567 = vmatmul.mubr.f32.gmra.mrb[0].mxu0 %v1378
    %v1568 = vpop.f32.mrb[0].mxu0
    %v1569 = vadd.f32 %v64, %v1568
    %v1570 = vpop.f32.mrb[0].mxu0
    %1571 = vdwg.mxu0
    %v1572 = vadd.f32 %v1382, %v1498
    %v1573 = vxor.u32 %v1572, 2147483648
    %v1574 = vmul.f32 %v1573, 1.442695
    %v1575 = vpow.pop %v1574
    %v1576 = vadd.f32 %v1575, 1.0
    %v1577 = vrcp.pop %v1576
    %v1578 = vmul.f32 1.0, %v1577
    %v1580 = vrot.slane %v1382, 2
    %v1582 = vadd.f32 %v1580, %v1500
    %v1583 = vxor.u32 %v1582, 2147483648
    %v1584 = vmul.f32 %v1583, 1.442695
    %v1585 = vpow.pop %v1584
    %v1586 = vadd.f32 %v1585, 1.0
    %v1587 = vrcp.pop %v1586
    %v1588 = vmul.f32 1.0, %v1587
    %v1589 = vmul.f32 %v1578, %v1569
    %v1590 = vrot.slane %v1382, 4
    %v1592 = vadd.f32 %v1590, %v1589
    %v1593 = vtanh.pop %v1592
    %v1594 = vsub.f32 1.0, %v1588
    %v1595 = vmul.f32 %v1594, %v1593
    %v1596 = vmul.f32 %v1588, %v1378
    %v1597 = vadd.f32 %v1595, %v1596
    %s1598 = scalar_lea.vmem %s4, 12
    %1599 = vst [vmem:[%s1598] sm:$0x3] %v1597
    %s1600 = scalar_lea.vmem %s0, 42
    %v1601 = vld [vmem:[%s1600] sm:$0x3f]
    %v1602 = vld [vmem:[#allocation3] sm:$0xff]
    %v1603 = vld [vmem:[#allocation3 + $0x8] sm:$0xff]
    %v1604 = vld [vmem:[#allocation3 + $0x10] sm:$0xff]
    %v1605 = vld [vmem:[#allocation3 + $0x18] sm:$0xff]
    %v1606 = vld [vmem:[#allocation3 + $0x20] sm:$0xff]
    %v1607 = vld [vmem:[#allocation3 + $0x28] sm:$0xff]
    %v1608 = vld [vmem:[#allocation3 + $0x30] sm:$0xff]
    %v1609 = vld [vmem:[#allocation3 + $0x38] sm:$0xff]
    %v1610 = vld [vmem:[#allocation3 + $0x40] sm:$0xff]
    %v1611 = vld [vmem:[#allocation3 + $0x48] sm:$0xff]
    %v1612 = vld [vmem:[#allocation3 + $0x50] sm:$0xff]
    %v1613 = vld [vmem:[#allocation3 + $0x58] sm:$0xff]
    %v1614 = vld [vmem:[#allocation3 + $0x60] sm:$0xff]
    %v1615 = vld [vmem:[#allocation3 + $0x68] sm:$0xff]
    %v1616 = vld [vmem:[#allocation3 + $0x70] sm:$0xff]
    %v1617 = vld [vmem:[#allocation3 + $0x78] sm:$0xff]
    %v1618 = vld [vmem:[#allocation3 + $0x80] sm:$0xff]
    %v1619 = vld [vmem:[#allocation3 + $0x88] sm:$0xff]
    %v1620 = vld [vmem:[#allocation3 + $0x90] sm:$0xff]
    %v1621 = vld [vmem:[#allocation3 + $0x98] sm:$0xff]
    %v1622 = vld [vmem:[#allocation3 + $0xa0] sm:$0xff]
    %v1623 = vld [vmem:[#allocation3 + $0xa8] sm:$0xff]
    %v1624 = vld [vmem:[#allocation3 + $0xb0] sm:$0xff]
    %v1625 = vld [vmem:[#allocation3 + $0xb8] sm:$0xff]
    %v1626 = vld [vmem:[#allocation3 + $0xc0] sm:$0xff]
    %v1627 = vld [vmem:[#allocation3 + $0xc8] sm:$0xff]
    %v1628 = vld [vmem:[#allocation3 + $0xd0] sm:$0xff]
    %v1629 = vld [vmem:[#allocation3 + $0xd8] sm:$0xff]
    %v1630 = vld [vmem:[#allocation3 + $0xe0] sm:$0xff]
    %v1631 = vld [vmem:[#allocation3 + $0xe8] sm:$0xff]
    %v1632 = vld [vmem:[#allocation3 + $0xf0] sm:$0xff]
    %v1633 = vld [vmem:[#allocation3 + $0xf8] sm:$0xff]
    %v1634 = vld [vmem:[#allocation3 + $0x100] sm:$0xff]
    %v1635 = vld [vmem:[#allocation3 + $0x108] sm:$0xff]
    %v1636 = vld [vmem:[#allocation3 + $0x110] sm:$0xff]
    %v1637 = vld [vmem:[#allocation3 + $0x118] sm:$0xff]
    %v1638 = vld [vmem:[#allocation3 + $0x120] sm:$0xff]
    %v1639 = vld [vmem:[#allocation3 + $0x128] sm:$0xff]
    %v1640 = vld [vmem:[#allocation3 + $0x130] sm:$0xff]
    %v1641 = vld [vmem:[#allocation3 + $0x138] sm:$0xff]
    %v1642 = vld [vmem:[#allocation3 + $0x140] sm:$0xff]
    %v1643 = vld [vmem:[#allocation3 + $0x148] sm:$0xff]
    %v1644 = vld [vmem:[#allocation3 + $0x150] sm:$0xff]
    %v1645 = vld [vmem:[#allocation3 + $0x158] sm:$0xff]
    %v1646 = vld [vmem:[#allocation3 + $0x160] sm:$0xff]
    %v1647 = vld [vmem:[#allocation3 + $0x168] sm:$0xff]
    %v1648 = vld [vmem:[#allocation3 + $0x170] sm:$0xff]
    %v1649 = vld [vmem:[#allocation3 + $0x178] sm:$0xff]
    %1650 = vmatprep.subr.mxu0 %v1603
    %1651 = vmatpush1.msra.mxu0 %v1602
    %1652 = vmatprep.subr.mxu0 %v1606
    %1653 = vmatpush1.msra.mxu0 %v1605
    %1654 = vmatprep.subr.mxu0 %v1609
    %1655 = vmatpush1.msra.mxu0 %v1608
    %1656 = vmatprep.subr.mxu0 %v1612
    %1657 = vmatpush1.msra.mxu0 %v1611
    %1658 = vmatprep.subr.mxu0 %v1615
    %1659 = vmatpush1.msra.mxu0 %v1614
    %1660 = vmatprep.subr.mxu0 %v1618
    %1661 = vmatpush1.msra.mxu0 %v1617
    %1662 = vmatprep.subr.mxu0 %v1621
    %1663 = vmatpush1.msra.mxu0 %v1620
    %1664 = vmatprep.subr.mxu0 %v1624
    %1665 = vmatpush1.msra.mxu0 %v1623
    %1666 = vmatprep.subr.mxu0 %v1627
    %1667 = vmatpush1.msra.mxu0 %v1626
    %1668 = vmatprep.subr.mxu0 %v1630
    %1669 = vmatpush1.msra.mxu0 %v1629
    %1670 = vmatprep.subr.mxu0 %v1633
    %1671 = vmatpush1.msra.mxu0 %v1632
    %1672 = vmatprep.subr.mxu0 %v1636
    %1673 = vmatpush1.msra.mxu0 %v1635
    %1674 = vmatprep.subr.mxu0 %v1639
    %1675 = vmatpush1.msra.mxu0 %v1638
    %1676 = vmatprep.subr.mxu0 %v1642
    %1677 = vmatpush1.msra.mxu0 %v1641
    %1678 = vmatprep.subr.mxu0 %v1645
    %1679 = vmatpush1.msra.mxu0 %v1644
    %1680 = vmatprep.subr.mxu0 %v1648
    %1681 = vmatpush1.msra.mxu0 %v1647
    %1682 = vmatprep.subr.mxu0 0.0
    %1683 = vmatpush1.msra.mxu0 0.0
    %1684 = vmatprep.subr.mxu0 0.0
    %1685 = vmatpush1.msra.mxu0 0.0
    %1686 = vmatprep.subr.mxu0 0.0
    %1687 = vmatpush1.msra.mxu0 0.0
    %1688 = vmatprep.subr.mxu0 0.0
    %1689 = vmatpush1.msra.mxu0 0.0
    %1690 = vmatprep.subr.mxu0 0.0
    %1691 = vmatpush1.msra.mxu0 0.0
    %1692 = vmatprep.subr.mxu0 0.0
    %1693 = vmatpush1.msra.mxu0 0.0
    %1694 = vmatprep.subr.mxu0 0.0
    %1695 = vmatpush1.msra.mxu0 0.0
    %1696 = vmatprep.subr.mxu0 0.0
    %1697 = vmatpush1.msra.mxu0 0.0
    %1698 = vmatprep.subr.mxu0 0.0
    %1699 = vmatpush1.msra.mxu0 0.0
    %1700 = vmatprep.subr.mxu0 0.0
    %1701 = vmatpush1.msra.mxu0 0.0
    %1702 = vmatprep.subr.mxu0 0.0
    %1703 = vmatpush1.msra.mxu0 0.0
    %1704 = vmatprep.subr.mxu0 0.0
    %1705 = vmatpush1.msra.mxu0 0.0
    %1706 = vmatprep.subr.mxu0 0.0
    %1707 = vmatpush1.msra.mxu0 0.0
    %1708 = vmatprep.subr.mxu0 0.0
    %1709 = vmatpush1.msra.mxu0 0.0
    %1710 = vmatprep.subr.mxu0 0.0
    %1711 = vmatpush1.msra.mxu0 0.0
    %1712 = vmatprep.subr.mxu0 0.0
    %1713 = vmatpush1.msra.mxu0 0.0
    %1714 = vmatprep.mubr.f32.mxu0 0.0
    %1715 = vmatmul.mubr.f32.gmra.mrb[0].mxu0 %v1597
    %v1716 = vpop.f32.mrb[0].mxu0
    %v1717 = vadd.f32 %v56, %v1716
    %v1718 = vpop.f32.mrb[0].mxu0
    %v1719 = vadd.f32 %v60, %v1718
    %1720 = vdwg.mxu0
    %1721 = vmatprep.subr.mxu0 0.0
    %1722 = vmatpush1.msra.mxu0 %v1604
    %1723 = vmatprep.subr.mxu0 0.0
    %1724 = vmatpush1.msra.mxu0 %v1607
    %1725 = vmatprep.subr.mxu0 0.0
    %1726 = vmatpush1.msra.mxu0 %v1610
    %1727 = vmatprep.subr.mxu0 0.0
    %1728 = vmatpush1.msra.mxu0 %v1613
    %1729 = vmatprep.subr.mxu0 0.0
    %1730 = vmatpush1.msra.mxu0 %v1616
    %1731 = vmatprep.subr.mxu0 0.0
    %1732 = vmatpush1.msra.mxu0 %v1619
    %1733 = vmatprep.subr.mxu0 0.0
    %1734 = vmatpush1.msra.mxu0 %v1622
    %1735 = vmatprep.subr.mxu0 0.0
    %1736 = vmatpush1.msra.mxu0 %v1625
    %1737 = vmatprep.subr.mxu0 0.0
    %1738 = vmatpush1.msra.mxu0 %v1628
    %1739 = vmatprep.subr.mxu0 0.0
    %1740 = vmatpush1.msra.mxu0 %v1631
    %1741 = vmatprep.subr.mxu0 0.0
    %1742 = vmatpush1.msra.mxu0 %v1634
    %1743 = vmatprep.subr.mxu0 0.0
    %1744 = vmatpush1.msra.mxu0 %v1637
    %1745 = vmatprep.subr.mxu0 0.0
    %1746 = vmatpush1.msra.mxu0 %v1640
    %1747 = vmatprep.subr.mxu0 0.0
    %1748 = vmatpush1.msra.mxu0 %v1643
    %1749 = vmatprep.subr.mxu0 0.0
    %1750 = vmatpush1.msra.mxu0 %v1646
    %1751 = vmatprep.subr.mxu0 0.0
    %1752 = vmatpush1.msra.mxu0 %v1649
    %1753 = vmatprep.subr.mxu0 0.0
    %1754 = vmatpush1.msra.mxu0 0.0
    %1755 = vmatprep.subr.mxu0 0.0
    %1756 = vmatpush1.msra.mxu0 0.0
    %1757 = vmatprep.subr.mxu0 0.0
    %1758 = vmatpush1.msra.mxu0 0.0
    %1759 = vmatprep.subr.mxu0 0.0
    %1760 = vmatpush1.msra.mxu0 0.0
    %1761 = vmatprep.subr.mxu0 0.0
    %1762 = vmatpush1.msra.mxu0 0.0
    %1763 = vmatprep.subr.mxu0 0.0
    %1764 = vmatpush1.msra.mxu0 0.0
    %1765 = vmatprep.subr.mxu0 0.0
    %1766 = vmatpush1.msra.mxu0 0.0
    %1767 = vmatprep.subr.mxu0 0.0
    %1768 = vmatpush1.msra.mxu0 0.0
    %1769 = vmatprep.subr.mxu0 0.0
    %1770 = vmatpush1.msra.mxu0 0.0
    %1771 = vmatprep.subr.mxu0 0.0
    %1772 = vmatpush1.msra.mxu0 0.0
    %1773 = vmatprep.subr.mxu0 0.0
    %1774 = vmatpush1.msra.mxu0 0.0
    %1775 = vmatprep.subr.mxu0 0.0
    %1776 = vmatpush1.msra.mxu0 0.0
    %1777 = vmatprep.subr.mxu0 0.0
    %1778 = vmatpush1.msra.mxu0 0.0
    %1779 = vmatprep.subr.mxu0 0.0
    %1780 = vmatpush1.msra.mxu0 0.0
    %1781 = vmatprep.subr.mxu0 0.0
    %1782 = vmatpush1.msra.mxu0 0.0
    %1783 = vmatprep.subr.mxu0 0.0
    %1784 = vmatpush1.msra.mxu0 0.0
    %1785 = vmatprep.mubr.f32.mxu0 0.0
    %1786 = vmatmul.mubr.f32.gmra.mrb[0].mxu0 %v1597
    %v1787 = vpop.f32.mrb[0].mxu0
    %v1788 = vadd.f32 %v64, %v1787
    %v1789 = vpop.f32.mrb[0].mxu0
    %1790 = vdwg.mxu0
    %v1791 = vadd.f32 %v1601, %v1717
    %v1792 = vxor.u32 %v1791, 2147483648
    %v1793 = vmul.f32 %v1792, 1.442695
    %v1794 = vpow.pop %v1793
    %v1795 = vadd.f32 %v1794, 1.0
    %v1796 = vrcp.pop %v1795
    %v1797 = vmul.f32 1.0, %v1796
    %v1799 = vrot.slane %v1601, 2
    %v1801 = vadd.f32 %v1799, %v1719
    %v1802 = vxor.u32 %v1801, 2147483648
    %v1803 = vmul.f32 %v1802, 1.442695
    %v1804 = vpow.pop %v1803
    %v1805 = vadd.f32 %v1804, 1.0
    %v1806 = vrcp.pop %v1805
    %v1807 = vmul.f32 1.0, %v1806
    %v1808 = vmul.f32 %v1797, %v1788
    %v1809 = vrot.slane %v1601, 4
    %v1811 = vadd.f32 %v1809, %v1808
    %v1812 = vtanh.pop %v1811
    %v1813 = vsub.f32 1.0, %v1807
    %v1814 = vmul.f32 %v1813, %v1812
    %v1815 = vmul.f32 %v1807, %v1597
    %v1816 = vadd.f32 %v1814, %v1815
    %s1817 = scalar_lea.vmem %s4, 14
    %1818 = vst [vmem:[%s1817] sm:$0x3] %v1816
    %1819 = vst [vmem:[#allocation2] sm:$0x3] %v1816
    // Predicated region
    $region30: #{recnet_forward.6} parent=1 // pred_check
      %p1820 = pneg %p45
    $region31: #{recnet_forward.6} parent=1 // pred_check_branch
      %1822 = sbr.rel (%p1820) target = $region33
    $region32: #{recnet_forward.6} parent=1 // pred_region
      %1823 = vst [vmem:[%s5] sm:$0x3] %v1816
    $region33: #{recnet_forward.6} parent=1 // pred_fallthru
      _
    // Predicated region
    $region34: #{recnet_forward.6} parent=1 // pred_check
      _
    $region35: #{recnet_forward.6} parent=1 // pred_check_branch
      %1825 = sbr.rel (0) target = $region37
    $region36: #{recnet_forward.6} parent=1 // pred_region
      _
    $region37: #{recnet_forward.6} parent=1 // pred_fallthru
      _
    // Predicated region
    $region38: #{recnet_forward.6} parent=1 // pred_check
      _
    $region39: #{recnet_forward.6} parent=1 // pred_check_branch
      %1827 = sbr.rel (0) target = $region41
    $region40: #{recnet_forward.6} parent=1 // pred_region
      _
    $region41: #{recnet_forward.6} parent=1 // pred_fallthru
      _
    // Predicated region
    $region42: #{recnet_forward.6} parent=1 // pred_check
      _
    $region43: #{recnet_forward.6} parent=1 // pred_check_branch
      %1829 = sbr.rel (0) target = $region45
    $region44: #{recnet_forward.6} parent=1 // pred_region
      _
    $region45: #{recnet_forward.6} parent=1 // pred_fallthru
      _
    // Predicated region
    $region46: #{recnet_forward.6} parent=1 // pred_check
      _
    $region47: #{recnet_forward.6} parent=1 // pred_check_branch
      %1831 = sbr.rel (0) target = $region49
    $region48: #{recnet_forward.6} parent=1 // pred_region
      _
    $region49: #{recnet_forward.6} parent=1 // pred_fallthru
      _
    %1832 = vsyncpa [#allocation4], 1
    %1833 = vsyncpa [#allocation6], 1

// kernel: recnet_forward.8
$region0: #{recnet_forward.8}
  #allocation0 [shape = 'u32[]', space=smem, size = 0x4, offset = 0x4, fixed_abs, tag = 'smem constant byte address 0x4 - core index']
  #allocation1 [shape = 'u32[144,128]{1,0:T(1,128)}', space=vmem, size = 0x12000, scoped, tag = 'internal scratch']
  #allocation2 [shape = 'f32[2,128]{1,0:T(2,128)}', space=vmem, size = 0x400, scoped, tag = 'scratch operand']
  %s0 = inlined_call_operand.vmem [shape: f32[8,2,384], index: 0, kind: input, shape index: {}]
  %s1 = inlined_call_operand.vmem [shape: f32[128,384], index: 1, kind: input, shape index: {}]
  %s2 = inlined_call_operand.vmem [shape: f32[1,384], index: 2, kind: input, shape index: {}]
  %s3 = inlined_call_operand.vmem [shape: f32[2,128], index: 3, kind: input, shape index: {}]
  %s4 = inlined_call_operand.vmem [shape: f32[8,2,128], index: 4, kind: output, shape index: {0}]
  %s5 = inlined_call_operand.vmem [shape: f32[2,128], index: 5, kind: output, shape index: {1}]
  %6 = xla_tuple %s4, %s5
  %s7 = sld [smem:[#allocation0]]
  $region42: #{recnet_forward.8} parent=0
    _
  %s9 = ssub.s32 1, %s7
  %s10 = scalar_select 0, %s9, %s7
  // Predicated region
  $region2: #{recnet_forward.8} parent=0 // pred_check
    _
  $region3: #{recnet_forward.8} parent=0 // pred_check_branch
    %12 = sbr.rel (0) target = $region5
  $region4: #{recnet_forward.8} parent=0 // pred_region
    _
  $region5: #{recnet_forward.8} parent=0 // pred_fallthru
    _
  // Predicated region
  $region6: #{recnet_forward.8} parent=0 // pred_check
    _
  $region7: #{recnet_forward.8} parent=0 // pred_check_branch
    %14 = sbr.rel (0) target = $region9
  $region8: #{recnet_forward.8} parent=0 // pred_region
    _
  $region9: #{recnet_forward.8} parent=0 // pred_fallthru
    _
  // Predicated region
  $region10: #{recnet_forward.8} parent=0 // pred_check
    _
  $region11: #{recnet_forward.8} parent=0 // pred_check_branch
    %16 = sbr.rel (0) target = $region13
  $region12: #{recnet_forward.8} parent=0 // pred_region
    _
  $region13: #{recnet_forward.8} parent=0 // pred_fallthru
    _
  // Predicated region
  $region14: #{recnet_forward.8} parent=0 // pred_check
    _
  $region15: #{recnet_forward.8} parent=0 // pred_check_branch
    %18 = sbr.rel (0) target = $region17
  $region16: #{recnet_forward.8} parent=0 // pred_region
    _
  $region17: #{recnet_forward.8} parent=0 // pred_fallthru
    _
  %p19 = scmp.eq.s32.totalorder 0, 0
  // Predicated region
  $region18: #{recnet_forward.8} parent=0 // pred_check
    %p20 = pneg %p19
  $region19: #{recnet_forward.8} parent=0 // pred_check_branch
    %22 = sbr.rel (%p20) target = $region21
  $region20: #{recnet_forward.8} parent=0 // pred_region
    %v23 = vld [vmem:[%s3] sm:$0x3]
    %24 = vst [vmem:[#allocation2] sm:$0x3] %v23
  $region21: #{recnet_forward.8} parent=0 // pred_fallthru
    _
  %v25 = vld [vmem:[%s2] sm:$0x7]
  %v27 = vlaneseq
  %v28 = vshrl.u32 %v27, 7
  %v29 = vsub.s32 0, %v28
  %v30 = vrot.slane %v25, %v29
  %v31 = vlaneseq
  %v32 = vshrl.u32 %v31, 7
  %v33 = vsub.s32 1, %v32
  %v34 = vrot.slane %v25, %v33
  %v35 = vlaneseq
  %v36 = vshrl.u32 %v35, 7
  %v37 = vsub.s32 2, %v36
  %v38 = vrot.slane %v25, %v37
  %v42 = vld [vmem:[#allocation2] sm:$0x3]
  %v43 = vld [vmem:[%s0] sm:$0x3f]
  %v44 = vld [vmem:[%s1] sm:$0xff]
  %v45 = vld [vmem:[%s1 + $0x8] sm:$0xff]
  %v46 = vld [vmem:[%s1 + $0x10] sm:$0xff]
  %v47 = vld [vmem:[%s1 + $0x18] sm:$0xff]
  %v48 = vld [vmem:[%s1 + $0x20] sm:$0xff]
  %v49 = vld [vmem:[%s1 + $0x28] sm:$0xff]
  %v50 = vld [vmem:[%s1 + $0x30] sm:$0xff]
  %v51 = vld [vmem:[%s1 + $0x38] sm:$0xff]
  %v52 = vld [vmem:[%s1 + $0x40] sm:$0xff]
  %v53 = vld [vmem:[%s1 + $0x48] sm:$0xff]
  %v54 = vld [vmem:[%s1 + $0x50] sm:$0xff]
  %v55 = vld [vmem:[%s1 + $0x58] sm:$0xff]
  %v56 = vld [vmem:[%s1 + $0x60] sm:$0xff]
  %v57 = vld [vmem:[%s1 + $0x68] sm:$0xff]
  %v58 = vld [vmem:[%s1 + $0x70] sm:$0xff]
  %v59 = vld [vmem:[%s1 + $0x78] sm:$0xff]
  %v60 = vld [vmem:[%s1 + $0x80] sm:$0xff]
  %v61 = vld [vmem:[%s1 + $0x88] sm:$0xff]
  %v62 = vld [vmem:[%s1 + $0x90] sm:$0xff]
  %v63 = vld [vmem:[%s1 + $0x98] sm:$0xff]
  %v64 = vld [vmem:[%s1 + $0xa0] sm:$0xff]
  %v65 = vld [vmem:[%s1 + $0xa8] sm:$0xff]
  %v66 = vld [vmem:[%s1 + $0xb0] sm:$0xff]
  %v67 = vld [vmem:[%s1 + $0xb8] sm:$0xff]
  %v68 = vld [vmem:[%s1 + $0xc0] sm:$0xff]
  %v69 = vld [vmem:[%s1 + $0xc8] sm:$0xff]
  %v70 = vld [vmem:[%s1 + $0xd0] sm:$0xff]
  %v71 = vld [vmem:[%s1 + $0xd8] sm:$0xff]
  %v72 = vld [vmem:[%s1 + $0xe0] sm:$0xff]
  %v73 = vld [vmem:[%s1 + $0xe8] sm:$0xff]
  %v74 = vld [vmem:[%s1 + $0xf0] sm:$0xff]
  %v75 = vld [vmem:[%s1 + $0xf8] sm:$0xff]
  %v76 = vld [vmem:[%s1 + $0x100] sm:$0xff]
  %v77 = vld [vmem:[%s1 + $0x108] sm:$0xff]
  %v78 = vld [vmem:[%s1 + $0x110] sm:$0xff]
  %v79 = vld [vmem:[%s1 + $0x118] sm:$0xff]
  %v80 = vld [vmem:[%s1 + $0x120] sm:$0xff]
  %v81 = vld [vmem:[%s1 + $0x128] sm:$0xff]
  %v82 = vld [vmem:[%s1 + $0x130] sm:$0xff]
  %v83 = vld [vmem:[%s1 + $0x138] sm:$0xff]
  %v84 = vld [vmem:[%s1 + $0x140] sm:$0xff]
  %v85 = vld [vmem:[%s1 + $0x148] sm:$0xff]
  %v86 = vld [vmem:[%s1 + $0x150] sm:$0xff]
  %v87 = vld [vmem:[%s1 + $0x158] sm:$0xff]
  %v88 = vld [vmem:[%s1 + $0x160] sm:$0xff]
  %v89 = vld [vmem:[%s1 + $0x168] sm:$0xff]
  %v90 = vld [vmem:[%s1 + $0x170] sm:$0xff]
  %v91 = vld [vmem:[%s1 + $0x178] sm:$0xff]
  %92 = vmatprep.subr.mxu0 %v45
  %93 = vmatpush1.msra.mxu0 %v44
  %94 = vmatprep.subr.mxu0 %v48
  %95 = vmatpush1.msra.mxu0 %v47
  %96 = vmatprep.subr.mxu0 %v51
  %97 = vmatpush1.msra.mxu0 %v50
  %98 = vmatprep.subr.mxu0 %v54
  %99 = vmatpush1.msra.mxu0 %v53
  %100 = vmatprep.subr.mxu0 %v57
  %101 = vmatpush1.msra.mxu0 %v56
  %102 = vmatprep.subr.mxu0 %v60
  %103 = vmatpush1.msra.mxu0 %v59
  %104 = vmatprep.subr.mxu0 %v63
  %105 = vmatpush1.msra.mxu0 %v62
  %106 = vmatprep.subr.mxu0 %v66
  %107 = vmatpush1.msra.mxu0 %v65
  %108 = vmatprep.subr.mxu0 %v69
  %109 = vmatpush1.msra.mxu0 %v68
  %110 = vmatprep.subr.mxu0 %v72
  %111 = vmatpush1.msra.mxu0 %v71
  %112 = vmatprep.subr.mxu0 %v75
  %113 = vmatpush1.msra.mxu0 %v74
  %114 = vmatprep.subr.mxu0 %v78
  %115 = vmatpush1.msra.mxu0 %v77
  %116 = vmatprep.subr.mxu0 %v81
  %117 = vmatpush1.msra.mxu0 %v80
  %118 = vmatprep.subr.mxu0 %v84
  %119 = vmatpush1.msra.mxu0 %v83
  %120 = vmatprep.subr.mxu0 %v87
  %121 = vmatpush1.msra.mxu0 %v86
  %122 = vmatprep.subr.mxu0 %v90
  %123 = vmatpush1.msra.mxu0 %v89
  %124 = vmatprep.subr.mxu0 0.0
  %125 = vmatpush1.msra.mxu0 0.0
  %126 = vmatprep.subr.mxu0 0.0
  %127 = vmatpush1.msra.mxu0 0.0
  %128 = vmatprep.subr.mxu0 0.0
  %129 = vmatpush1.msra.mxu0 0.0
  %130 = vmatprep.subr.mxu0 0.0
  %131 = vmatpush1.msra.mxu0 0.0
  %132 = vmatprep.subr.mxu0 0.0
  %133 = vmatpush1.msra.mxu0 0.0
  %134 = vmatprep.subr.mxu0 0.0
  %135 = vmatpush1.msra.mxu0 0.0
  %136 = vmatprep.subr.mxu0 0.0
  %137 = vmatpush1.msra.mxu0 0.0
  %138 = vmatprep.subr.mxu0 0.0
  %139 = vmatpush1.msra.mxu0 0.0
  %140 = vmatprep.subr.mxu0 0.0
  %141 = vmatpush1.msra.mxu0 0.0
  %142 = vmatprep.subr.mxu0 0.0
  %143 = vmatpush1.msra.mxu0 0.0
  %144 = vmatprep.subr.mxu0 0.0
  %145 = vmatpush1.msra.mxu0 0.0
  %146 = vmatprep.subr.mxu0 0.0
  %147 = vmatpush1.msra.mxu0 0.0
  %148 = vmatprep.subr.mxu0 0.0
  %149 = vmatpush1.msra.mxu0 0.0
  %150 = vmatprep.subr.mxu0 0.0
  %151 = vmatpush1.msra.mxu0 0.0
  %152 = vmatprep.subr.mxu0 0.0
  %153 = vmatpush1.msra.mxu0 0.0
  %154 = vmatprep.subr.mxu0 0.0
  %155 = vmatpush1.msra.mxu0 0.0
  %156 = vmatprep.mubr.f32.mxu0 0.0
  %157 = vmatmul.mubr.f32.gmra.mrb[0].mxu0 %v42
  %v158 = vpop.f32.mrb[0].mxu0
  %v159 = vadd.f32 %v30, %v158
  %v160 = vpop.f32.mrb[0].mxu0
  %v161 = vadd.f32 %v34, %v160
  %162 = vdwg.mxu0
  %163 = vmatprep.subr.mxu0 0.0
  %164 = vmatpush1.msra.mxu0 %v46
  %165 = vmatprep.subr.mxu0 0.0
  %166 = vmatpush1.msra.mxu0 %v49
  %167 = vmatprep.subr.mxu0 0.0
  %168 = vmatpush1.msra.mxu0 %v52
  %169 = vmatprep.subr.mxu0 0.0
  %170 = vmatpush1.msra.mxu0 %v55
  %171 = vmatprep.subr.mxu0 0.0
  %172 = vmatpush1.msra.mxu0 %v58
  %173 = vmatprep.subr.mxu0 0.0
  %174 = vmatpush1.msra.mxu0 %v61
  %175 = vmatprep.subr.mxu0 0.0
  %176 = vmatpush1.msra.mxu0 %v64
  %177 = vmatprep.subr.mxu0 0.0
  %178 = vmatpush1.msra.mxu0 %v67
  %179 = vmatprep.subr.mxu0 0.0
  %180 = vmatpush1.msra.mxu0 %v70
  %181 = vmatprep.subr.mxu0 0.0
  %182 = vmatpush1.msra.mxu0 %v73
  %183 = vmatprep.subr.mxu0 0.0
  %184 = vmatpush1.msra.mxu0 %v76
  %185 = vmatprep.subr.mxu0 0.0
  %186 = vmatpush1.msra.mxu0 %v79
  %187 = vmatprep.subr.mxu0 0.0
  %188 = vmatpush1.msra.mxu0 %v82
  %189 = vmatprep.subr.mxu0 0.0
  %190 = vmatpush1.msra.mxu0 %v85
  %191 = vmatprep.subr.mxu0 0.0
  %192 = vmatpush1.msra.mxu0 %v88
  %193 = vmatprep.subr.mxu0 0.0
  %194 = vmatpush1.msra.mxu0 %v91
  %195 = vmatprep.subr.mxu0 0.0
  %196 = vmatpush1.msra.mxu0 0.0
  %197 = vmatprep.subr.mxu0 0.0
  %198 = vmatpush1.msra.mxu0 0.0
  %199 = vmatprep.subr.mxu0 0.0
  %200 = vmatpush1.msra.mxu0 0.0
  %201 = vmatprep.subr.mxu0 0.0
  %202 = vmatpush1.msra.mxu0 0.0
  %203 = vmatprep.subr.mxu0 0.0
  %204 = vmatpush1.msra.mxu0 0.0
  %205 = vmatprep.subr.mxu0 0.0
  %206 = vmatpush1.msra.mxu0 0.0
  %207 = vmatprep.subr.mxu0 0.0
  %208 = vmatpush1.msra.mxu0 0.0
  %209 = vmatprep.subr.mxu0 0.0
  %210 = vmatpush1.msra.mxu0 0.0
  %211 = vmatprep.subr.mxu0 0.0
  %212 = vmatpush1.msra.mxu0 0.0
  %213 = vmatprep.subr.mxu0 0.0
  %214 = vmatpush1.msra.mxu0 0.0
  %215 = vmatprep.subr.mxu0 0.0
  %216 = vmatpush1.msra.mxu0 0.0
  %217 = vmatprep.subr.mxu0 0.0
  %218 = vmatpush1.msra.mxu0 0.0
  %219 = vmatprep.subr.mxu0 0.0
  %220 = vmatpush1.msra.mxu0 0.0
  %221 = vmatprep.subr.mxu0 0.0
  %222 = vmatpush1.msra.mxu0 0.0
  %223 = vmatprep.subr.mxu0 0.0
  %224 = vmatpush1.msra.mxu0 0.0
  %225 = vmatprep.subr.mxu0 0.0
  %226 = vmatpush1.msra.mxu0 0.0
  %227 = vmatprep.mubr.f32.mxu0 0.0
  %228 = vmatmul.mubr.f32.gmra.mrb[0].mxu0 %v42
  %v229 = vpop.f32.mrb[0].mxu0
  %v230 = vadd.f32 %v38, %v229
  %v231 = vpop.f32.mrb[0].mxu0
  %232 = vdwg.mxu0
  %v233 = vadd.f32 %v43, %v159
  %v234 = vxor.u32 %v233, 2147483648
  %v235 = vmul.f32 %v234, 1.442695
  %v236 = vpow.pop %v235
  %v237 = vadd.f32 %v236, 1.0
  %v238 = vrcp.pop %v237
  %v239 = vmul.f32 1.0, %v238
  %v241 = vrot.slane %v43, 2
  %v243 = vadd.f32 %v241, %v161
  %v244 = vxor.u32 %v243, 2147483648
  %v245 = vmul.f32 %v244, 1.442695
  %v246 = vpow.pop %v245
  %v247 = vadd.f32 %v246, 1.0
  %v248 = vrcp.pop %v247
  %v249 = vmul.f32 1.0, %v248
  %v250 = vmul.f32 %v239, %v230
  %v251 = vrot.slane %v43, 4
  %v253 = vadd.f32 %v251, %v250
  %v254 = vtanh.pop %v253
  %v255 = vsub.f32 1.0, %v249
  %v256 = vmul.f32 %v255, %v254
  %v257 = vmul.f32 %v249, %v42
  %v258 = vadd.f32 %v256, %v257
  %259 = vst [vmem:[%s4] sm:$0x3] %v258
  %s260 = scalar_lea.vmem %s0, 6
  %v261 = vld [vmem:[%s260] sm:$0x3f]
  %v262 = vld [vmem:[%s1] sm:$0xff]
  %v263 = vld [vmem:[%s1 + $0x8] sm:$0xff]
  %v264 = vld [vmem:[%s1 + $0x10] sm:$0xff]
  %v265 = vld [vmem:[%s1 + $0x18] sm:$0xff]
  %v266 = vld [vmem:[%s1 + $0x20] sm:$0xff]
  %v267 = vld [vmem:[%s1 + $0x28] sm:$0xff]
  %v268 = vld [vmem:[%s1 + $0x30] sm:$0xff]
  %v269 = vld [vmem:[%s1 + $0x38] sm:$0xff]
  %v270 = vld [vmem:[%s1 + $0x40] sm:$0xff]
  %v271 = vld [vmem:[%s1 + $0x48] sm:$0xff]
  %v272 = vld [vmem:[%s1 + $0x50] sm:$0xff]
  %v273 = vld [vmem:[%s1 + $0x58] sm:$0xff]
  %v274 = vld [vmem:[%s1 + $0x60] sm:$0xff]
  %v275 = vld [vmem:[%s1 + $0x68] sm:$0xff]
  %v276 = vld [vmem:[%s1 + $0x70] sm:$0xff]
  %v277 = vld [vmem:[%s1 + $0x78] sm:$0xff]
  %v278 = vld [vmem:[%s1 + $0x80] sm:$0xff]
  %v279 = vld [vmem:[%s1 + $0x88] sm:$0xff]
  %v280 = vld [vmem:[%s1 + $0x90] sm:$0xff]
  %v281 = vld [vmem:[%s1 + $0x98] sm:$0xff]
  %v282 = vld [vmem:[%s1 + $0xa0] sm:$0xff]
  %v283 = vld [vmem:[%s1 + $0xa8] sm:$0xff]
  %v284 = vld [vmem:[%s1 + $0xb0] sm:$0xff]
  %v285 = vld [vmem:[%s1 + $0xb8] sm:$0xff]
  %v286 = vld [vmem:[%s1 + $0xc0] sm:$0xff]
  %v287 = vld [vmem:[%s1 + $0xc8] sm:$0xff]
  %v288 = vld [vmem:[%s1 + $0xd0] sm:$0xff]
  %v289 = vld [vmem:[%s1 + $0xd8] sm:$0xff]
  %v290 = vld [vmem:[%s1 + $0xe0] sm:$0xff]
  %v291 = vld [vmem:[%s1 + $0xe8] sm:$0xff]
  %v292 = vld [vmem:[%s1 + $0xf0] sm:$0xff]
  %v293 = vld [vmem:[%s1 + $0xf8] sm:$0xff]
  %v294 = vld [vmem:[%s1 + $0x100] sm:$0xff]
  %v295 = vld [vmem:[%s1 + $0x108] sm:$0xff]
  %v296 = vld [vmem:[%s1 + $0x110] sm:$0xff]
  %v297 = vld [vmem:[%s1 + $0x118] sm:$0xff]
  %v298 = vld [vmem:[%s1 + $0x120] sm:$0xff]
  %v299 = vld [vmem:[%s1 + $0x128] sm:$0xff]
  %v300 = vld [vmem:[%s1 + $0x130] sm:$0xff]
  %v301 = vld [vmem:[%s1 + $0x138] sm:$0xff]
  %v302 = vld [vmem:[%s1 + $0x140] sm:$0xff]
  %v303 = vld [vmem:[%s1 + $0x148] sm:$0xff]
  %v304 = vld [vmem:[%s1 + $0x150] sm:$0xff]
  %v305 = vld [vmem:[%s1 + $0x158] sm:$0xff]
  %v306 = vld [vmem:[%s1 + $0x160] sm:$0xff]
  %v307 = vld [vmem:[%s1 + $0x168] sm:$0xff]
  %v308 = vld [vmem:[%s1 + $0x170] sm:$0xff]
  %v309 = vld [vmem:[%s1 + $0x178] sm:$0xff]
  %310 = vmatprep.subr.mxu0 %v263
  %311 = vmatpush1.msra.mxu0 %v262
  %312 = vmatprep.subr.mxu0 %v266
  %313 = vmatpush1.msra.mxu0 %v265
  %314 = vmatprep.subr.mxu0 %v269
  %315 = vmatpush1.msra.mxu0 %v268
  %316 = vmatprep.subr.mxu0 %v272
  %317 = vmatpush1.msra.mxu0 %v271
  %318 = vmatprep.subr.mxu0 %v275
  %319 = vmatpush1.msra.mxu0 %v274
  %320 = vmatprep.subr.mxu0 %v278
  %321 = vmatpush1.msra.mxu0 %v277
  %322 = vmatprep.subr.mxu0 %v281
  %323 = vmatpush1.msra.mxu0 %v280
  %324 = vmatprep.subr.mxu0 %v284
  %325 = vmatpush1.msra.mxu0 %v283
  %326 = vmatprep.subr.mxu0 %v287
  %327 = vmatpush1.msra.mxu0 %v286
  %328 = vmatprep.subr.mxu0 %v290
  %329 = vmatpush1.msra.mxu0 %v289
  %330 = vmatprep.subr.mxu0 %v293
  %331 = vmatpush1.msra.mxu0 %v292
  %332 = vmatprep.subr.mxu0 %v296
  %333 = vmatpush1.msra.mxu0 %v295
  %334 = vmatprep.subr.mxu0 %v299
  %335 = vmatpush1.msra.mxu0 %v298
  %336 = vmatprep.subr.mxu0 %v302
  %337 = vmatpush1.msra.mxu0 %v301
  %338 = vmatprep.subr.mxu0 %v305
  %339 = vmatpush1.msra.mxu0 %v304
  %340 = vmatprep.subr.mxu0 %v308
  %341 = vmatpush1.msra.mxu0 %v307
  %342 = vmatprep.subr.mxu0 0.0
  %343 = vmatpush1.msra.mxu0 0.0
  %344 = vmatprep.subr.mxu0 0.0
  %345 = vmatpush1.msra.mxu0 0.0
  %346 = vmatprep.subr.mxu0 0.0
  %347 = vmatpush1.msra.mxu0 0.0
  %348 = vmatprep.subr.mxu0 0.0
  %349 = vmatpush1.msra.mxu0 0.0
  %350 = vmatprep.subr.mxu0 0.0
  %351 = vmatpush1.msra.mxu0 0.0
  %352 = vmatprep.subr.mxu0 0.0
  %353 = vmatpush1.msra.mxu0 0.0
  %354 = vmatprep.subr.mxu0 0.0
  %355 = vmatpush1.msra.mxu0 0.0
  %356 = vmatprep.subr.mxu0 0.0
  %357 = vmatpush1.msra.mxu0 0.0
  %358 = vmatprep.subr.mxu0 0.0
  %359 = vmatpush1.msra.mxu0 0.0
  %360 = vmatprep.subr.mxu0 0.0
  %361 = vmatpush1.msra.mxu0 0.0
  %362 = vmatprep.subr.mxu0 0.0
  %363 = vmatpush1.msra.mxu0 0.0
  %364 = vmatprep.subr.mxu0 0.0
  %365 = vmatpush1.msra.mxu0 0.0
  %366 = vmatprep.subr.mxu0 0.0
  %367 = vmatpush1.msra.mxu0 0.0
  %368 = vmatprep.subr.mxu0 0.0
  %369 = vmatpush1.msra.mxu0 0.0
  %370 = vmatprep.subr.mxu0 0.0
  %371 = vmatpush1.msra.mxu0 0.0
  %372 = vmatprep.subr.mxu0 0.0
  %373 = vmatpush1.msra.mxu0 0.0
  %374 = vmatprep.mubr.f32.mxu0 0.0
  %375 = vmatmul.mubr.f32.gmra.mrb[0].mxu0 %v258
  %v376 = vpop.f32.mrb[0].mxu0
  %v377 = vadd.f32 %v30, %v376
  %v378 = vpop.f32.mrb[0].mxu0
  %v379 = vadd.f32 %v34, %v378
  %380 = vdwg.mxu0
  %381 = vmatprep.subr.mxu0 0.0
  %382 = vmatpush1.msra.mxu0 %v264
  %383 = vmatprep.subr.mxu0 0.0
  %384 = vmatpush1.msra.mxu0 %v267
  %385 = vmatprep.subr.mxu0 0.0
  %386 = vmatpush1.msra.mxu0 %v270
  %387 = vmatprep.subr.mxu0 0.0
  %388 = vmatpush1.msra.mxu0 %v273
  %389 = vmatprep.subr.mxu0 0.0
  %390 = vmatpush1.msra.mxu0 %v276
  %391 = vmatprep.subr.mxu0 0.0
  %392 = vmatpush1.msra.mxu0 %v279
  %393 = vmatprep.subr.mxu0 0.0
  %394 = vmatpush1.msra.mxu0 %v282
  %395 = vmatprep.subr.mxu0 0.0
  %396 = vmatpush1.msra.mxu0 %v285
  %397 = vmatprep.subr.mxu0 0.0
  %398 = vmatpush1.msra.mxu0 %v288
  %399 = vmatprep.subr.mxu0 0.0
  %400 = vmatpush1.msra.mxu0 %v291
  %401 = vmatprep.subr.mxu0 0.0
  %402 = vmatpush1.msra.mxu0 %v294
  %403 = vmatprep.subr.mxu0 0.0
  %404 = vmatpush1.msra.mxu0 %v297
  %405 = vmatprep.subr.mxu0 0.0
  %406 = vmatpush1.msra.mxu0 %v300
  %407 = vmatprep.subr.mxu0 0.0
  %408 = vmatpush1.msra.mxu0 %v303
  %409 = vmatprep.subr.mxu0 0.0
  %410 = vmatpush1.msra.mxu0 %v306
  %411 = vmatprep.subr.mxu0 0.0
  %412 = vmatpush1.msra.mxu0 %v309
  %413 = vmatprep.subr.mxu0 0.0
  %414 = vmatpush1.msra.mxu0 0.0
  %415 = vmatprep.subr.mxu0 0.0
  %416 = vmatpush1.msra.mxu0 0.0
  %417 = vmatprep.subr.mxu0 0.0
  %418 = vmatpush1.msra.mxu0 0.0
  %419 = vmatprep.subr.mxu0 0.0
  %420 = vmatpush1.msra.mxu0 0.0
  %421 = vmatprep.subr.mxu0 0.0
  %422 = vmatpush1.msra.mxu0 0.0
  %423 = vmatprep.subr.mxu0 0.0
  %424 = vmatpush1.msra.mxu0 0.0
  %425 = vmatprep.subr.mxu0 0.0
  %426 = vmatpush1.msra.mxu0 0.0
  %427 = vmatprep.subr.mxu0 0.0
  %428 = vmatpush1.msra.mxu0 0.0
  %429 = vmatprep.subr.mxu0 0.0
  %430 = vmatpush1.msra.mxu0 0.0
  %431 = vmatprep.subr.mxu0 0.0
  %432 = vmatpush1.msra.mxu0 0.0
  %433 = vmatprep.subr.mxu0 0.0
  %434 = vmatpush1.msra.mxu0 0.0
  %435 = vmatprep.subr.mxu0 0.0
  %436 = vmatpush1.msra.mxu0 0.0
  %437 = vmatprep.subr.mxu0 0.0
  %438 = vmatpush1.msra.mxu0 0.0
  %439 = vmatprep.subr.mxu0 0.0
  %440 = vmatpush1.msra.mxu0 0.0
  %441 = vmatprep.subr.mxu0 0.0
  %442 = vmatpush1.msra.mxu0 0.0
  %443 = vmatprep.subr.mxu0 0.0
  %444 = vmatpush1.msra.mxu0 0.0
  %445 = vmatprep.mubr.f32.mxu0 0.0
  %446 = vmatmul.mubr.f32.gmra.mrb[0].mxu0 %v258
  %v447 = vpop.f32.mrb[0].mxu0
  %v448 = vadd.f32 %v38, %v447
  %v449 = vpop.f32.mrb[0].mxu0
  %450 = vdwg.mxu0
  %v451 = vadd.f32 %v261, %v377
  %v452 = vxor.u32 %v451, 2147483648
  %v453 = vmul.f32 %v452, 1.442695
  %v454 = vpow.pop %v453
  %v455 = vadd.f32 %v454, 1.0
  %v456 = vrcp.pop %v455
  %v457 = vmul.f32 1.0, %v456
  %v459 = vrot.slane %v261, 2
  %v461 = vadd.f32 %v459, %v379
  %v462 = vxor.u32 %v461, 2147483648
  %v463 = vmul.f32 %v462, 1.442695
  %v464 = vpow.pop %v463
  %v465 = vadd.f32 %v464, 1.0
  %v466 = vrcp.pop %v465
  %v467 = vmul.f32 1.0, %v466
  %v468 = vmul.f32 %v457, %v448
  %v469 = vrot.slane %v261, 4
  %v471 = vadd.f32 %v469, %v468
  %v472 = vtanh.pop %v471
  %v473 = vsub.f32 1.0, %v467
  %v474 = vmul.f32 %v473, %v472
  %v475 = vmul.f32 %v467, %v258
  %v476 = vadd.f32 %v474, %v475
  %s477 = scalar_lea.vmem %s4, 2
  %478 = vst [vmem:[%s477] sm:$0x3] %v476
  %s479 = scalar_lea.vmem %s0, 12
  %v480 = vld [vmem:[%s479] sm:$0x3f]
  %v481 = vld [vmem:[%s1] sm:$0xff]
  %v482 = vld [vmem:[%s1 + $0x8] sm:$0xff]
  %v483 = vld [vmem:[%s1 + $0x10] sm:$0xff]
  %v484 = vld [vmem:[%s1 + $0x18] sm:$0xff]
  %v485 = vld [vmem:[%s1 + $0x20] sm:$0xff]
  %v486 = vld [vmem:[%s1 + $0x28] sm:$0xff]
  %v487 = vld [vmem:[%s1 + $0x30] sm:$0xff]
  %v488 = vld [vmem:[%s1 + $0x38] sm:$0xff]
  %v489 = vld [vmem:[%s1 + $0x40] sm:$0xff]
  %v490 = vld [vmem:[%s1 + $0x48] sm:$0xff]
  %v491 = vld [vmem:[%s1 + $0x50] sm:$0xff]
  %v492 = vld [vmem:[%s1 + $0x58] sm:$0xff]
  %v493 = vld [vmem:[%s1 + $0x60] sm:$0xff]
  %v494 = vld [vmem:[%s1 + $0x68] sm:$0xff]
  %v495 = vld [vmem:[%s1 + $0x70] sm:$0xff]
  %v496 = vld [vmem:[%s1 + $0x78] sm:$0xff]
  %v497 = vld [vmem:[%s1 + $0x80] sm:$0xff]
  %v498 = vld [vmem:[%s1 + $0x88] sm:$0xff]
  %v499 = vld [vmem:[%s1 + $0x90] sm:$0xff]
  %v500 = vld [vmem:[%s1 + $0x98] sm:$0xff]
  %v501 = vld [vmem:[%s1 + $0xa0] sm:$0xff]
  %v502 = vld [vmem:[%s1 + $0xa8] sm:$0xff]
  %v503 = vld [vmem:[%s1 + $0xb0] sm:$0xff]
  %v504 = vld [vmem:[%s1 + $0xb8] sm:$0xff]
  %v505 = vld [vmem:[%s1 + $0xc0] sm:$0xff]
  %v506 = vld [vmem:[%s1 + $0xc8] sm:$0xff]
  %v507 = vld [vmem:[%s1 + $0xd0] sm:$0xff]
  %v508 = vld [vmem:[%s1 + $0xd8] sm:$0xff]
  %v509 = vld [vmem:[%s1 + $0xe0] sm:$0xff]
  %v510 = vld [vmem:[%s1 + $0xe8] sm:$0xff]
  %v511 = vld [vmem:[%s1 + $0xf0] sm:$0xff]
  %v512 = vld [vmem:[%s1 + $0xf8] sm:$0xff]
  %v513 = vld [vmem:[%s1 + $0x100] sm:$0xff]
  %v514 = vld [vmem:[%s1 + $0x108] sm:$0xff]
  %v515 = vld [vmem:[%s1 + $0x110] sm:$0xff]
  %v516 = vld [vmem:[%s1 + $0x118] sm:$0xff]
  %v517 = vld [vmem:[%s1 + $0x120] sm:$0xff]
  %v518 = vld [vmem:[%s1 + $0x128] sm:$0xff]
  %v519 = vld [vmem:[%s1 + $0x130] sm:$0xff]
  %v520 = vld [vmem:[%s1 + $0x138] sm:$0xff]
  %v521 = vld [vmem:[%s1 + $0x140] sm:$0xff]
  %v522 = vld [vmem:[%s1 + $0x148] sm:$0xff]
  %v523 = vld [vmem:[%s1 + $0x150] sm:$0xff]
  %v524 = vld [vmem:[%s1 + $0x158] sm:$0xff]
  %v525 = vld [vmem:[%s1 + $0x160] sm:$0xff]
  %v526 = vld [vmem:[%s1 + $0x168] sm:$0xff]
  %v527 = vld [vmem:[%s1 + $0x170] sm:$0xff]
  %v528 = vld [vmem:[%s1 + $0x178] sm:$0xff]
  %529 = vmatprep.subr.mxu0 %v482
  %530 = vmatpush1.msra.mxu0 %v481
  %531 = vmatprep.subr.mxu0 %v485
  %532 = vmatpush1.msra.mxu0 %v484
  %533 = vmatprep.subr.mxu0 %v488
  %534 = vmatpush1.msra.mxu0 %v487
  %535 = vmatprep.subr.mxu0 %v491
  %536 = vmatpush1.msra.mxu0 %v490
  %537 = vmatprep.subr.mxu0 %v494
  %538 = vmatpush1.msra.mxu0 %v493
  %539 = vmatprep.subr.mxu0 %v497
  %540 = vmatpush1.msra.mxu0 %v496
  %541 = vmatprep.subr.mxu0 %v500
  %542 = vmatpush1.msra.mxu0 %v499
  %543 = vmatprep.subr.mxu0 %v503
  %544 = vmatpush1.msra.mxu0 %v502
  %545 = vmatprep.subr.mxu0 %v506
  %546 = vmatpush1.msra.mxu0 %v505
  %547 = vmatprep.subr.mxu0 %v509
  %548 = vmatpush1.msra.mxu0 %v508
  %549 = vmatprep.subr.mxu0 %v512
  %550 = vmatpush1.msra.mxu0 %v511
  %551 = vmatprep.subr.mxu0 %v515
  %552 = vmatpush1.msra.mxu0 %v514
  %553 = vmatprep.subr.mxu0 %v518
  %554 = vmatpush1.msra.mxu0 %v517
  %555 = vmatprep.subr.mxu0 %v521
  %556 = vmatpush1.msra.mxu0 %v520
  %557 = vmatprep.subr.mxu0 %v524
  %558 = vmatpush1.msra.mxu0 %v523
  %559 = vmatprep.subr.mxu0 %v527
  %560 = vmatpush1.msra.mxu0 %v526
  %561 = vmatprep.subr.mxu0 0.0
  %562 = vmatpush1.msra.mxu0 0.0
  %563 = vmatprep.subr.mxu0 0.0
  %564 = vmatpush1.msra.mxu0 0.0
  %565 = vmatprep.subr.mxu0 0.0
  %566 = vmatpush1.msra.mxu0 0.0
  %567 = vmatprep.subr.mxu0 0.0
  %568 = vmatpush1.msra.mxu0 0.0
  %569 = vmatprep.subr.mxu0 0.0
  %570 = vmatpush1.msra.mxu0 0.0
  %571 = vmatprep.subr.mxu0 0.0
  %572 = vmatpush1.msra.mxu0 0.0
  %573 = vmatprep.subr.mxu0 0.0
  %574 = vmatpush1.msra.mxu0 0.0
  %575 = vmatprep.subr.mxu0 0.0
  %576 = vmatpush1.msra.mxu0 0.0
  %577 = vmatprep.subr.mxu0 0.0
  %578 = vmatpush1.msra.mxu0 0.0
  %579 = vmatprep.subr.mxu0 0.0
  %580 = vmatpush1.msra.mxu0 0.0
  %581 = vmatprep.subr.mxu0 0.0
  %582 = vmatpush1.msra.mxu0 0.0
  %583 = vmatprep.subr.mxu0 0.0
  %584 = vmatpush1.msra.mxu0 0.0
  %585 = vmatprep.subr.mxu0 0.0
  %586 = vmatpush1.msra.mxu0 0.0
  %587 = vmatprep.subr.mxu0 0.0
  %588 = vmatpush1.msra.mxu0 0.0
  %589 = vmatprep.subr.mxu0 0.0
  %590 = vmatpush1.msra.mxu0 0.0
  %591 = vmatprep.subr.mxu0 0.0
  %592 = vmatpush1.msra.mxu0 0.0
  %593 = vmatprep.mubr.f32.mxu0 0.0
  %594 = vmatmul.mubr.f32.gmra.mrb[0].mxu0 %v476
  %v595 = vpop.f32.mrb[0].mxu0
  %v596 = vadd.f32 %v30, %v595
  %v597 = vpop.f32.mrb[0].mxu0
  %v598 = vadd.f32 %v34, %v597
  %599 = vdwg.mxu0
  %600 = vmatprep.subr.mxu0 0.0
  %601 = vmatpush1.msra.mxu0 %v483
  %602 = vmatprep.subr.mxu0 0.0
  %603 = vmatpush1.msra.mxu0 %v486
  %604 = vmatprep.subr.mxu0 0.0
  %605 = vmatpush1.msra.mxu0 %v489
  %606 = vmatprep.subr.mxu0 0.0
  %607 = vmatpush1.msra.mxu0 %v492
  %608 = vmatprep.subr.mxu0 0.0
  %609 = vmatpush1.msra.mxu0 %v495
  %610 = vmatprep.subr.mxu0 0.0
  %611 = vmatpush1.msra.mxu0 %v498
  %612 = vmatprep.subr.mxu0 0.0
  %613 = vmatpush1.msra.mxu0 %v501
  %614 = vmatprep.subr.mxu0 0.0
  %615 = vmatpush1.msra.mxu0 %v504
  %616 = vmatprep.subr.mxu0 0.0
  %617 = vmatpush1.msra.mxu0 %v507
  %618 = vmatprep.subr.mxu0 0.0
  %619 = vmatpush1.msra.mxu0 %v510
  %620 = vmatprep.subr.mxu0 0.0
  %621 = vmatpush1.msra.mxu0 %v513
  %622 = vmatprep.subr.mxu0 0.0
  %623 = vmatpush1.msra.mxu0 %v516
  %624 = vmatprep.subr.mxu0 0.0
  %625 = vmatpush1.msra.mxu0 %v519
  %626 = vmatprep.subr.mxu0 0.0
  %627 = vmatpush1.msra.mxu0 %v522
  %628 = vmatprep.subr.mxu0 0.0
  %629 = vmatpush1.msra.mxu0 %v525
  %630 = vmatprep.subr.mxu0 0.0
  %631 = vmatpush1.msra.mxu0 %v528
  %632 = vmatprep.subr.mxu0 0.0
  %633 = vmatpush1.msra.mxu0 0.0
  %634 = vmatprep.subr.mxu0 0.0
  %635 = vmatpush1.msra.mxu0 0.0
  %636 = vmatprep.subr.mxu0 0.0
  %637 = vmatpush1.msra.mxu0 0.0
  %638 = vmatprep.subr.mxu0 0.0
  %639 = vmatpush1.msra.mxu0 0.0
  %640 = vmatprep.subr.mxu0 0.0
  %641 = vmatpush1.msra.mxu0 0.0
  %642 = vmatprep.subr.mxu0 0.0
  %643 = vmatpush1.msra.mxu0 0.0
  %644 = vmatprep.subr.mxu0 0.0
  %645 = vmatpush1.msra.mxu0 0.0
  %646 = vmatprep.subr.mxu0 0.0
  %647 = vmatpush1.msra.mxu0 0.0
  %648 = vmatprep.subr.mxu0 0.0
  %649 = vmatpush1.msra.mxu0 0.0
  %650 = vmatprep.subr.mxu0 0.0
  %651 = vmatpush1.msra.mxu0 0.0
  %652 = vmatprep.subr.mxu0 0.0
  %653 = vmatpush1.msra.mxu0 0.0
  %654 = vmatprep.subr.mxu0 0.0
  %655 = vmatpush1.msra.mxu0 0.0
  %656 = vmatprep.subr.mxu0 0.0
  %657 = vmatpush1.msra.mxu0 0.0
  %658 = vmatprep.subr.mxu0 0.0
  %659 = vmatpush1.msra.mxu0 0.0
  %660 = vmatprep.subr.mxu0 0.0
  %661 = vmatpush1.msra.mxu0 0.0
  %662 = vmatprep.subr.mxu0 0.0
  %663 = vmatpush1.msra.mxu0 0.0
  %664 = vmatprep.mubr.f32.mxu0 0.0
  %665 = vmatmul.mubr.f32.gmra.mrb[0].mxu0 %v476
  %v666 = vpop.f32.mrb[0].mxu0
  %v667 = vadd.f32 %v38, %v666
  %v668 = vpop.f32.mrb[0].mxu0
  %669 = vdwg.mxu0
  %v670 = vadd.f32 %v480, %v596
  %v671 = vxor.u32 %v670, 2147483648
  %v672 = vmul.f32 %v671, 1.442695
  %v673 = vpow.pop %v672
  %v674 = vadd.f32 %v673, 1.0
  %v675 = vrcp.pop %v674
  %v676 = vmul.f32 1.0, %v675
  %v678 = vrot.slane %v480, 2
  %v680 = vadd.f32 %v678, %v598
  %v681 = vxor.u32 %v680, 2147483648
  %v682 = vmul.f32 %v681, 1.442695
  %v683 = vpow.pop %v682
  %v684 = vadd.f32 %v683, 1.0
  %v685 = vrcp.pop %v684
  %v686 = vmul.f32 1.0, %v685
  %v687 = vmul.f32 %v676, %v667
  %v688 = vrot.slane %v480, 4
  %v690 = vadd.f32 %v688, %v687
  %v691 = vtanh.pop %v690
  %v692 = vsub.f32 1.0, %v686
  %v693 = vmul.f32 %v692, %v691
  %v694 = vmul.f32 %v686, %v476
  %v695 = vadd.f32 %v693, %v694
  %s696 = scalar_lea.vmem %s4, 4
  %697 = vst [vmem:[%s696] sm:$0x3] %v695
  %s698 = scalar_lea.vmem %s0, 18
  %v699 = vld [vmem:[%s698] sm:$0x3f]
  %v700 = vld [vmem:[%s1] sm:$0xff]
  %v701 = vld [vmem:[%s1 + $0x8] sm:$0xff]
  %v702 = vld [vmem:[%s1 + $0x10] sm:$0xff]
  %v703 = vld [vmem:[%s1 + $0x18] sm:$0xff]
  %v704 = vld [vmem:[%s1 + $0x20] sm:$0xff]
  %v705 = vld [vmem:[%s1 + $0x28] sm:$0xff]
  %v706 = vld [vmem:[%s1 + $0x30] sm:$0xff]
  %v707 = vld [vmem:[%s1 + $0x38] sm:$0xff]
  %v708 = vld [vmem:[%s1 + $0x40] sm:$0xff]
  %v709 = vld [vmem:[%s1 + $0x48] sm:$0xff]
  %v710 = vld [vmem:[%s1 + $0x50] sm:$0xff]
  %v711 = vld [vmem:[%s1 + $0x58] sm:$0xff]
  %v712 = vld [vmem:[%s1 + $0x60] sm:$0xff]
  %v713 = vld [vmem:[%s1 + $0x68] sm:$0xff]
  %v714 = vld [vmem:[%s1 + $0x70] sm:$0xff]
  %v715 = vld [vmem:[%s1 + $0x78] sm:$0xff]
  %v716 = vld [vmem:[%s1 + $0x80] sm:$0xff]
  %v717 = vld [vmem:[%s1 + $0x88] sm:$0xff]
  %v718 = vld [vmem:[%s1 + $0x90] sm:$0xff]
  %v719 = vld [vmem:[%s1 + $0x98] sm:$0xff]
  %v720 = vld [vmem:[%s1 + $0xa0] sm:$0xff]
  %v721 = vld [vmem:[%s1 + $0xa8] sm:$0xff]
  %v722 = vld [vmem:[%s1 + $0xb0] sm:$0xff]
  %v723 = vld [vmem:[%s1 + $0xb8] sm:$0xff]
  %v724 = vld [vmem:[%s1 + $0xc0] sm:$0xff]
  %v725 = vld [vmem:[%s1 + $0xc8] sm:$0xff]
  %v726 = vld [vmem:[%s1 + $0xd0] sm:$0xff]
  %v727 = vld [vmem:[%s1 + $0xd8] sm:$0xff]
  %v728 = vld [vmem:[%s1 + $0xe0] sm:$0xff]
  %v729 = vld [vmem:[%s1 + $0xe8] sm:$0xff]
  %v730 = vld [vmem:[%s1 + $0xf0] sm:$0xff]
  %v731 = vld [vmem:[%s1 + $0xf8] sm:$0xff]
  %v732 = vld [vmem:[%s1 + $0x100] sm:$0xff]
  %v733 = vld [vmem:[%s1 + $0x108] sm:$0xff]
  %v734 = vld [vmem:[%s1 + $0x110] sm:$0xff]
  %v735 = vld [vmem:[%s1 + $0x118] sm:$0xff]
  %v736 = vld [vmem:[%s1 + $0x120] sm:$0xff]
  %v737 = vld [vmem:[%s1 + $0x128] sm:$0xff]
  %v738 = vld [vmem:[%s1 + $0x130] sm:$0xff]
  %v739 = vld [vmem:[%s1 + $0x138] sm:$0xff]
  %v740 = vld [vmem:[%s1 + $0x140] sm:$0xff]
  %v741 = vld [vmem:[%s1 + $0x148] sm:$0xff]
  %v742 = vld [vmem:[%s1 + $0x150] sm:$0xff]
  %v743 = vld [vmem:[%s1 + $0x158] sm:$0xff]
  %v744 = vld [vmem:[%s1 + $0x160] sm:$0xff]
  %v745 = vld [vmem:[%s1 + $0x168] sm:$0xff]
  %v746 = vld [vmem:[%s1 + $0x170] sm:$0xff]
  %v747 = vld [vmem:[%s1 + $0x178] sm:$0xff]
  %748 = vmatprep.subr.mxu0 %v701
  %749 = vmatpush1.msra.mxu0 %v700
  %750 = vmatprep.subr.mxu0 %v704
  %751 = vmatpush1.msra.mxu0 %v703
  %752 = vmatprep.subr.mxu0 %v707
  %753 = vmatpush1.msra.mxu0 %v706
  %754 = vmatprep.subr.mxu0 %v710
  %755 = vmatpush1.msra.mxu0 %v709
  %756 = vmatprep.subr.mxu0 %v713
  %757 = vmatpush1.msra.mxu0 %v712
  %758 = vmatprep.subr.mxu0 %v716
  %759 = vmatpush1.msra.mxu0 %v715
  %760 = vmatprep.subr.mxu0 %v719
  %761 = vmatpush1.msra.mxu0 %v718
  %762 = vmatprep.subr.mxu0 %v722
  %763 = vmatpush1.msra.mxu0 %v721
  %764 = vmatprep.subr.mxu0 %v725
  %765 = vmatpush1.msra.mxu0 %v724
  %766 = vmatprep.subr.mxu0 %v728
  %767 = vmatpush1.msra.mxu0 %v727
  %768 = vmatprep.subr.mxu0 %v731
  %769 = vmatpush1.msra.mxu0 %v730
  %770 = vmatprep.subr.mxu0 %v734
  %771 = vmatpush1.msra.mxu0 %v733
  %772 = vmatprep.subr.mxu0 %v737
  %773 = vmatpush1.msra.mxu0 %v736
  %774 = vmatprep.subr.mxu0 %v740
  %775 = vmatpush1.msra.mxu0 %v739
  %776 = vmatprep.subr.mxu0 %v743
  %777 = vmatpush1.msra.mxu0 %v742
  %778 = vmatprep.subr.mxu0 %v746
  %779 = vmatpush1.msra.mxu0 %v745
  %780 = vmatprep.subr.mxu0 0.0
  %781 = vmatpush1.msra.mxu0 0.0
  %782 = vmatprep.subr.mxu0 0.0
  %783 = vmatpush1.msra.mxu0 0.0
  %784 = vmatprep.subr.mxu0 0.0
  %785 = vmatpush1.msra.mxu0 0.0
  %786 = vmatprep.subr.mxu0 0.0
  %787 = vmatpush1.msra.mxu0 0.0
  %788 = vmatprep.subr.mxu0 0.0
  %789 = vmatpush1.msra.mxu0 0.0
  %790 = vmatprep.subr.mxu0 0.0
  %791 = vmatpush1.msra.mxu0 0.0
  %792 = vmatprep.subr.mxu0 0.0
  %793 = vmatpush1.msra.mxu0 0.0
  %794 = vmatprep.subr.mxu0 0.0
  %795 = vmatpush1.msra.mxu0 0.0
  %796 = vmatprep.subr.mxu0 0.0
  %797 = vmatpush1.msra.mxu0 0.0
  %798 = vmatprep.subr.mxu0 0.0
  %799 = vmatpush1.msra.mxu0 0.0
  %800 = vmatprep.subr.mxu0 0.0
  %801 = vmatpush1.msra.mxu0 0.0
  %802 = vmatprep.subr.mxu0 0.0
  %803 = vmatpush1.msra.mxu0 0.0
  %804 = vmatprep.subr.mxu0 0.0
  %805 = vmatpush1.msra.mxu0 0.0
  %806 = vmatprep.subr.mxu0 0.0
  %807 = vmatpush1.msra.mxu0 0.0
  %808 = vmatprep.subr.mxu0 0.0
  %809 = vmatpush1.msra.mxu0 0.0
  %810 = vmatprep.subr.mxu0 0.0
  %811 = vmatpush1.msra.mxu0 0.0
  %812 = vmatprep.mubr.f32.mxu0 0.0
  %813 = vmatmul.mubr.f32.gmra.mrb[0].mxu0 %v695
  %v814 = vpop.f32.mrb[0].mxu0
  %v815 = vadd.f32 %v30, %v814
  %v816 = vpop.f32.mrb[0].mxu0
  %v817 = vadd.f32 %v34, %v816
  %818 = vdwg.mxu0
  %819 = vmatprep.subr.mxu0 0.0
  %820 = vmatpush1.msra.mxu0 %v702
  %821 = vmatprep.subr.mxu0 0.0
  %822 = vmatpush1.msra.mxu0 %v705
  %823 = vmatprep.subr.mxu0 0.0
  %824 = vmatpush1.msra.mxu0 %v708
  %825 = vmatprep.subr.mxu0 0.0
  %826 = vmatpush1.msra.mxu0 %v711
  %827 = vmatprep.subr.mxu0 0.0
  %828 = vmatpush1.msra.mxu0 %v714
  %829 = vmatprep.subr.mxu0 0.0
  %830 = vmatpush1.msra.mxu0 %v717
  %831 = vmatprep.subr.mxu0 0.0
  %832 = vmatpush1.msra.mxu0 %v720
  %833 = vmatprep.subr.mxu0 0.0
  %834 = vmatpush1.msra.mxu0 %v723
  %835 = vmatprep.subr.mxu0 0.0
  %836 = vmatpush1.msra.mxu0 %v726
  %837 = vmatprep.subr.mxu0 0.0
  %838 = vmatpush1.msra.mxu0 %v729
  %839 = vmatprep.subr.mxu0 0.0
  %840 = vmatpush1.msra.mxu0 %v732
  %841 = vmatprep.subr.mxu0 0.0
  %842 = vmatpush1.msra.mxu0 %v735
  %843 = vmatprep.subr.mxu0 0.0
  %844 = vmatpush1.msra.mxu0 %v738
  %845 = vmatprep.subr.mxu0 0.0
  %846 = vmatpush1.msra.mxu0 %v741
  %847 = vmatprep.subr.mxu0 0.0
  %848 = vmatpush1.msra.mxu0 %v744
  %849 = vmatprep.subr.mxu0 0.0
  %850 = vmatpush1.msra.mxu0 %v747
  %851 = vmatprep.subr.mxu0 0.0
  %852 = vmatpush1.msra.mxu0 0.0
  %853 = vmatprep.subr.mxu0 0.0
  %854 = vmatpush1.msra.mxu0 0.0
  %855 = vmatprep.subr.mxu0 0.0
  %856 = vmatpush1.msra.mxu0 0.0
  %857 = vmatprep.subr.mxu0 0.0
  %858 = vmatpush1.msra.mxu0 0.0
  %859 = vmatprep.subr.mxu0 0.0
  %860 = vmatpush1.msra.mxu0 0.0
  %861 = vmatprep.subr.mxu0 0.0
  %862 = vmatpush1.msra.mxu0 0.0
  %863 = vmatprep.subr.mxu0 0.0
  %864 = vmatpush1.msra.mxu0 0.0
  %865 = vmatprep.subr.mxu0 0.0
  %866 = vmatpush1.msra.mxu0 0.0
  %867 = vmatprep.subr.mxu0 0.0
  %868 = vmatpush1.msra.mxu0 0.0
  %869 = vmatprep.subr.mxu0 0.0
  %870 = vmatpush1.msra.mxu0 0.0
  %871 = vmatprep.subr.mxu0 0.0
  %872 = vmatpush1.msra.mxu0 0.0
  %873 = vmatprep.subr.mxu0 0.0
  %874 = vmatpush1.msra.mxu0 0.0
  %875 = vmatprep.subr.mxu0 0.0
  %876 = vmatpush1.msra.mxu0 0.0
  %877 = vmatprep.subr.mxu0 0.0
  %878 = vmatpush1.msra.mxu0 0.0
  %879 = vmatprep.subr.mxu0 0.0
  %880 = vmatpush1.msra.mxu0 0.0
  %881 = vmatprep.subr.mxu0 0.0
  %882 = vmatpush1.msra.mxu0 0.0
  %883 = vmatprep.mubr.f32.mxu0 0.0
  %884 = vmatmul.mubr.f32.gmra.mrb[0].mxu0 %v695
  %v885 = vpop.f32.mrb[0].mxu0
  %v886 = vadd.f32 %v38, %v885
  %v887 = vpop.f32.mrb[0].mxu0
  %888 = vdwg.mxu0
  %v889 = vadd.f32 %v699, %v815
  %v890 = vxor.u32 %v889, 2147483648
  %v891 = vmul.f32 %v890, 1.442695
  %v892 = vpow.pop %v891
  %v893 = vadd.f32 %v892, 1.0
  %v894 = vrcp.pop %v893
  %v895 = vmul.f32 1.0, %v894
  %v897 = vrot.slane %v699, 2
  %v899 = vadd.f32 %v897, %v817
  %v900 = vxor.u32 %v899, 2147483648
  %v901 = vmul.f32 %v900, 1.442695
  %v902 = vpow.pop %v901
  %v903 = vadd.f32 %v902, 1.0
  %v904 = vrcp.pop %v903
  %v905 = vmul.f32 1.0, %v904
  %v906 = vmul.f32 %v895, %v886
  %v907 = vrot.slane %v699, 4
  %v909 = vadd.f32 %v907, %v906
  %v910 = vtanh.pop %v909
  %v911 = vsub.f32 1.0, %v905
  %v912 = vmul.f32 %v911, %v910
  %v913 = vmul.f32 %v905, %v695
  %v914 = vadd.f32 %v912, %v913
  %s915 = scalar_lea.vmem %s4, 6
  %916 = vst [vmem:[%s915] sm:$0x3] %v914
  %s917 = scalar_lea.vmem %s0, 24
  %v918 = vld [vmem:[%s917] sm:$0x3f]
  %v919 = vld [vmem:[%s1] sm:$0xff]
  %v920 = vld [vmem:[%s1 + $0x8] sm:$0xff]
  %v921 = vld [vmem:[%s1 + $0x10] sm:$0xff]
  %v922 = vld [vmem:[%s1 + $0x18] sm:$0xff]
  %v923 = vld [vmem:[%s1 + $0x20] sm:$0xff]
  %v924 = vld [vmem:[%s1 + $0x28] sm:$0xff]
  %v925 = vld [vmem:[%s1 + $0x30] sm:$0xff]
  %v926 = vld [vmem:[%s1 + $0x38] sm:$0xff]
  %v927 = vld [vmem:[%s1 + $0x40] sm:$0xff]
  %v928 = vld [vmem:[%s1 + $0x48] sm:$0xff]
  %v929 = vld [vmem:[%s1 + $0x50] sm:$0xff]
  %v930 = vld [vmem:[%s1 + $0x58] sm:$0xff]
  %v931 = vld [vmem:[%s1 + $0x60] sm:$0xff]
  %v932 = vld [vmem:[%s1 + $0x68] sm:$0xff]
  %v933 = vld [vmem:[%s1 + $0x70] sm:$0xff]
  %v934 = vld [vmem:[%s1 + $0x78] sm:$0xff]
  %v935 = vld [vmem:[%s1 + $0x80] sm:$0xff]
  %v936 = vld [vmem:[%s1 + $0x88] sm:$0xff]
  %v937 = vld [vmem:[%s1 + $0x90] sm:$0xff]
  %v938 = vld [vmem:[%s1 + $0x98] sm:$0xff]
  %v939 = vld [vmem:[%s1 + $0xa0] sm:$0xff]
  %v940 = vld [vmem:[%s1 + $0xa8] sm:$0xff]
  %v941 = vld [vmem:[%s1 + $0xb0] sm:$0xff]
  %v942 = vld [vmem:[%s1 + $0xb8] sm:$0xff]
  %v943 = vld [vmem:[%s1 + $0xc0] sm:$0xff]
  %v944 = vld [vmem:[%s1 + $0xc8] sm:$0xff]
  %v945 = vld [vmem:[%s1 + $0xd0] sm:$0xff]
  %v946 = vld [vmem:[%s1 + $0xd8] sm:$0xff]
  %v947 = vld [vmem:[%s1 + $0xe0] sm:$0xff]
  %v948 = vld [vmem:[%s1 + $0xe8] sm:$0xff]
  %v949 = vld [vmem:[%s1 + $0xf0] sm:$0xff]
  %v950 = vld [vmem:[%s1 + $0xf8] sm:$0xff]
  %v951 = vld [vmem:[%s1 + $0x100] sm:$0xff]
  %v952 = vld [vmem:[%s1 + $0x108] sm:$0xff]
  %v953 = vld [vmem:[%s1 + $0x110] sm:$0xff]
  %v954 = vld [vmem:[%s1 + $0x118] sm:$0xff]
  %v955 = vld [vmem:[%s1 + $0x120] sm:$0xff]
  %v956 = vld [vmem:[%s1 + $0x128] sm:$0xff]
  %v957 = vld [vmem:[%s1 + $0x130] sm:$0xff]
  %v958 = vld [vmem:[%s1 + $0x138] sm:$0xff]
  %v959 = vld [vmem:[%s1 + $0x140] sm:$0xff]
  %v960 = vld [vmem:[%s1 + $0x148] sm:$0xff]
  %v961 = vld [vmem:[%s1 + $0x150] sm:$0xff]
  %v962 = vld [vmem:[%s1 + $0x158] sm:$0xff]
  %v963 = vld [vmem:[%s1 + $0x160] sm:$0xff]
  %v964 = vld [vmem:[%s1 + $0x168] sm:$0xff]
  %v965 = vld [vmem:[%s1 + $0x170] sm:$0xff]
  %v966 = vld [vmem:[%s1 + $0x178] sm:$0xff]
  %967 = vmatprep.subr.mxu0 %v920
  %968 = vmatpush1.msra.mxu0 %v919
  %969 = vmatprep.subr.mxu0 %v923
  %970 = vmatpush1.msra.mxu0 %v922
  %971 = vmatprep.subr.mxu0 %v926
  %972 = vmatpush1.msra.mxu0 %v925
  %973 = vmatprep.subr.mxu0 %v929
  %974 = vmatpush1.msra.mxu0 %v928
  %975 = vmatprep.subr.mxu0 %v932
  %976 = vmatpush1.msra.mxu0 %v931
  %977 = vmatprep.subr.mxu0 %v935
  %978 = vmatpush1.msra.mxu0 %v934
  %979 = vmatprep.subr.mxu0 %v938
  %980 = vmatpush1.msra.mxu0 %v937
  %981 = vmatprep.subr.mxu0 %v941
  %982 = vmatpush1.msra.mxu0 %v940
  %983 = vmatprep.subr.mxu0 %v944
  %984 = vmatpush1.msra.mxu0 %v943
  %985 = vmatprep.subr.mxu0 %v947
  %986 = vmatpush1.msra.mxu0 %v946
  %987 = vmatprep.subr.mxu0 %v950
  %988 = vmatpush1.msra.mxu0 %v949
  %989 = vmatprep.subr.mxu0 %v953
  %990 = vmatpush1.msra.mxu0 %v952
  %991 = vmatprep.subr.mxu0 %v956
  %992 = vmatpush1.msra.mxu0 %v955
  %993 = vmatprep.subr.mxu0 %v959
  %994 = vmatpush1.msra.mxu0 %v958
  %995 = vmatprep.subr.mxu0 %v962
  %996 = vmatpush1.msra.mxu0 %v961
  %997 = vmatprep.subr.mxu0 %v965
  %998 = vmatpush1.msra.mxu0 %v964
  %999 = vmatprep.subr.mxu0 0.0
  %1000 = vmatpush1.msra.mxu0 0.0
  %1001 = vmatprep.subr.mxu0 0.0
  %1002 = vmatpush1.msra.mxu0 0.0
  %1003 = vmatprep.subr.mxu0 0.0
  %1004 = vmatpush1.msra.mxu0 0.0
  %1005 = vmatprep.subr.mxu0 0.0
  %1006 = vmatpush1.msra.mxu0 0.0
  %1007 = vmatprep.subr.mxu0 0.0
  %1008 = vmatpush1.msra.mxu0 0.0
  %1009 = vmatprep.subr.mxu0 0.0
  %1010 = vmatpush1.msra.mxu0 0.0
  %1011 = vmatprep.subr.mxu0 0.0
  %1012 = vmatpush1.msra.mxu0 0.0
  %1013 = vmatprep.subr.mxu0 0.0
  %1014 = vmatpush1.msra.mxu0 0.0
  %1015 = vmatprep.subr.mxu0 0.0
  %1016 = vmatpush1.msra.mxu0 0.0
  %1017 = vmatprep.subr.mxu0 0.0
  %1018 = vmatpush1.msra.mxu0 0.0
  %1019 = vmatprep.subr.mxu0 0.0
  %1020 = vmatpush1.msra.mxu0 0.0
  %1021 = vmatprep.subr.mxu0 0.0
  %1022 = vmatpush1.msra.mxu0 0.0
  %1023 = vmatprep.subr.mxu0 0.0
  %1024 = vmatpush1.msra.mxu0 0.0
  %1025 = vmatprep.subr.mxu0 0.0
  %1026 = vmatpush1.msra.mxu0 0.0
  %1027 = vmatprep.subr.mxu0 0.0
  %1028 = vmatpush1.msra.mxu0 0.0
  %1029 = vmatprep.subr.mxu0 0.0
  %1030 = vmatpush1.msra.mxu0 0.0
  %1031 = vmatprep.mubr.f32.mxu0 0.0
  %1032 = vmatmul.mubr.f32.gmra.mrb[0].mxu0 %v914
  %v1033 = vpop.f32.mrb[0].mxu0
  %v1034 = vadd.f32 %v30, %v1033
  %v1035 = vpop.f32.mrb[0].mxu0
  %v1036 = vadd.f32 %v34, %v1035
  %1037 = vdwg.mxu0
  %1038 = vmatprep.subr.mxu0 0.0
  %1039 = vmatpush1.msra.mxu0 %v921
  %1040 = vmatprep.subr.mxu0 0.0
  %1041 = vmatpush1.msra.mxu0 %v924
  %1042 = vmatprep.subr.mxu0 0.0
  %1043 = vmatpush1.msra.mxu0 %v927
  %1044 = vmatprep.subr.mxu0 0.0
  %1045 = vmatpush1.msra.mxu0 %v930
  %1046 = vmatprep.subr.mxu0 0.0
  %1047 = vmatpush1.msra.mxu0 %v933
  %1048 = vmatprep.subr.mxu0 0.0
  %1049 = vmatpush1.msra.mxu0 %v936
  %1050 = vmatprep.subr.mxu0 0.0
  %1051 = vmatpush1.msra.mxu0 %v939
  %1052 = vmatprep.subr.mxu0 0.0
  %1053 = vmatpush1.msra.mxu0 %v942
  %1054 = vmatprep.subr.mxu0 0.0
  %1055 = vmatpush1.msra.mxu0 %v945
  %1056 = vmatprep.subr.mxu0 0.0
  %1057 = vmatpush1.msra.mxu0 %v948
  %1058 = vmatprep.subr.mxu0 0.0
  %1059 = vmatpush1.msra.mxu0 %v951
  %1060 = vmatprep.subr.mxu0 0.0
  %1061 = vmatpush1.msra.mxu0 %v954
  %1062 = vmatprep.subr.mxu0 0.0
  %1063 = vmatpush1.msra.mxu0 %v957
  %1064 = vmatprep.subr.mxu0 0.0
  %1065 = vmatpush1.msra.mxu0 %v960
  %1066 = vmatprep.subr.mxu0 0.0
  %1067 = vmatpush1.msra.mxu0 %v963
  %1068 = vmatprep.subr.mxu0 0.0
  %1069 = vmatpush1.msra.mxu0 %v966
  %1070 = vmatprep.subr.mxu0 0.0
  %1071 = vmatpush1.msra.mxu0 0.0
  %1072 = vmatprep.subr.mxu0 0.0
  %1073 = vmatpush1.msra.mxu0 0.0
  %1074 = vmatprep.subr.mxu0 0.0
  %1075 = vmatpush1.msra.mxu0 0.0
  %1076 = vmatprep.subr.mxu0 0.0
  %1077 = vmatpush1.msra.mxu0 0.0
  %1078 = vmatprep.subr.mxu0 0.0
  %1079 = vmatpush1.msra.mxu0 0.0
  %1080 = vmatprep.subr.mxu0 0.0
  %1081 = vmatpush1.msra.mxu0 0.0
  %1082 = vmatprep.subr.mxu0 0.0
  %1083 = vmatpush1.msra.mxu0 0.0
  %1084 = vmatprep.subr.mxu0 0.0
  %1085 = vmatpush1.msra.mxu0 0.0
  %1086 = vmatprep.subr.mxu0 0.0
  %1087 = vmatpush1.msra.mxu0 0.0
  %1088 = vmatprep.subr.mxu0 0.0
  %1089 = vmatpush1.msra.mxu0 0.0
  %1090 = vmatprep.subr.mxu0 0.0
  %1091 = vmatpush1.msra.mxu0 0.0
  %1092 = vmatprep.subr.mxu0 0.0
  %1093 = vmatpush1.msra.mxu0 0.0
  %1094 = vmatprep.subr.mxu0 0.0
  %1095 = vmatpush1.msra.mxu0 0.0
  %1096 = vmatprep.subr.mxu0 0.0
  %1097 = vmatpush1.msra.mxu0 0.0
  %1098 = vmatprep.subr.mxu0 0.0
  %1099 = vmatpush1.msra.mxu0 0.0
  %1100 = vmatprep.subr.mxu0 0.0
  %1101 = vmatpush1.msra.mxu0 0.0
  %1102 = vmatprep.mubr.f32.mxu0 0.0
  %1103 = vmatmul.mubr.f32.gmra.mrb[0].mxu0 %v914
  %v1104 = vpop.f32.mrb[0].mxu0
  %v1105 = vadd.f32 %v38, %v1104
  %v1106 = vpop.f32.mrb[0].mxu0
  %1107 = vdwg.mxu0
  %v1108 = vadd.f32 %v918, %v1034
  %v1109 = vxor.u32 %v1108, 2147483648
  %v1110 = vmul.f32 %v1109, 1.442695
  %v1111 = vpow.pop %v1110
  %v1112 = vadd.f32 %v1111, 1.0
  %v1113 = vrcp.pop %v1112
  %v1114 = vmul.f32 1.0, %v1113
  %v1116 = vrot.slane %v918, 2
  %v1118 = vadd.f32 %v1116, %v1036
  %v1119 = vxor.u32 %v1118, 2147483648
  %v1120 = vmul.f32 %v1119, 1.442695
  %v1121 = vpow.pop %v1120
  %v1122 = vadd.f32 %v1121, 1.0
  %v1123 = vrcp.pop %v1122
  %v1124 = vmul.f32 1.0, %v1123
  %v1125 = vmul.f32 %v1114, %v1105
  %v1126 = vrot.slane %v918, 4
  %v1128 = vadd.f32 %v1126, %v1125
  %v1129 = vtanh.pop %v1128
  %v1130 = vsub.f32 1.0, %v1124
  %v1131 = vmul.f32 %v1130, %v1129
  %v1132 = vmul.f32 %v1124, %v914
  %v1133 = vadd.f32 %v1131, %v1132
  %s1134 = scalar_lea.vmem %s4, 8
  %1135 = vst [vmem:[%s1134] sm:$0x3] %v1133
  %s1136 = scalar_lea.vmem %s0, 30
  %v1137 = vld [vmem:[%s1136] sm:$0x3f]
  %v1138 = vld [vmem:[%s1] sm:$0xff]
  %v1139 = vld [vmem:[%s1 + $0x8] sm:$0xff]
  %v1140 = vld [vmem:[%s1 + $0x10] sm:$0xff]
  %v1141 = vld [vmem:[%s1 + $0x18] sm:$0xff]
  %v1142 = vld [vmem:[%s1 + $0x20] sm:$0xff]
  %v1143 = vld [vmem:[%s1 + $0x28] sm:$0xff]
  %v1144 = vld [vmem:[%s1 + $0x30] sm:$0xff]
  %v1145 = vld [vmem:[%s1 + $0x38] sm:$0xff]
  %v1146 = vld [vmem:[%s1 + $0x40] sm:$0xff]
  %v1147 = vld [vmem:[%s1 + $0x48] sm:$0xff]
  %v1148 = vld [vmem:[%s1 + $0x50] sm:$0xff]
  %v1149 = vld [vmem:[%s1 + $0x58] sm:$0xff]
  %v1150 = vld [vmem:[%s1 + $0x60] sm:$0xff]
  %v1151 = vld [vmem:[%s1 + $0x68] sm:$0xff]
  %v1152 = vld [vmem:[%s1 + $0x70] sm:$0xff]
  %v1153 = vld [vmem:[%s1 + $0x78] sm:$0xff]
  %v1154 = vld [vmem:[%s1 + $0x80] sm:$0xff]
  %v1155 = vld [vmem:[%s1 + $0x88] sm:$0xff]
  %v1156 = vld [vmem:[%s1 + $0x90] sm:$0xff]
  %v1157 = vld [vmem:[%s1 + $0x98] sm:$0xff]
  %v1158 = vld [vmem:[%s1 + $0xa0] sm:$0xff]
  %v1159 = vld [vmem:[%s1 + $0xa8] sm:$0xff]
  %v1160 = vld [vmem:[%s1 + $0xb0] sm:$0xff]
  %v1161 = vld [vmem:[%s1 + $0xb8] sm:$0xff]
  %v1162 = vld [vmem:[%s1 + $0xc0] sm:$0xff]
  %v1163 = vld [vmem:[%s1 + $0xc8] sm:$0xff]
  %v1164 = vld [vmem:[%s1 + $0xd0] sm:$0xff]
  %v1165 = vld [vmem:[%s1 + $0xd8] sm:$0xff]
  %v1166 = vld [vmem:[%s1 + $0xe0] sm:$0xff]
  %v1167 = vld [vmem:[%s1 + $0xe8] sm:$0xff]
  %v1168 = vld [vmem:[%s1 + $0xf0] sm:$0xff]
  %v1169 = vld [vmem:[%s1 + $0xf8] sm:$0xff]
  %v1170 = vld [vmem:[%s1 + $0x100] sm:$0xff]
  %v1171 = vld [vmem:[%s1 + $0x108] sm:$0xff]
  %v1172 = vld [vmem:[%s1 + $0x110] sm:$0xff]
  %v1173 = vld [vmem:[%s1 + $0x118] sm:$0xff]
  %v1174 = vld [vmem:[%s1 + $0x120] sm:$0xff]
  %v1175 = vld [vmem:[%s1 + $0x128] sm:$0xff]
  %v1176 = vld [vmem:[%s1 + $0x130] sm:$0xff]
  %v1177 = vld [vmem:[%s1 + $0x138] sm:$0xff]
  %v1178 = vld [vmem:[%s1 + $0x140] sm:$0xff]
  %v1179 = vld [vmem:[%s1 + $0x148] sm:$0xff]
  %v1180 = vld [vmem:[%s1 + $0x150] sm:$0xff]
  %v1181 = vld [vmem:[%s1 + $0x158] sm:$0xff]
  %v1182 = vld [vmem:[%s1 + $0x160] sm:$0xff]
  %v1183 = vld [vmem:[%s1 + $0x168] sm:$0xff]
  %v1184 = vld [vmem:[%s1 + $0x170] sm:$0xff]
  %v1185 = vld [vmem:[%s1 + $0x178] sm:$0xff]
  %1186 = vmatprep.subr.mxu0 %v1139
  %1187 = vmatpush1.msra.mxu0 %v1138
  %1188 = vmatprep.subr.mxu0 %v1142
  %1189 = vmatpush1.msra.mxu0 %v1141
  %1190 = vmatprep.subr.mxu0 %v1145
  %1191 = vmatpush1.msra.mxu0 %v1144
  %1192 = vmatprep.subr.mxu0 %v1148
  %1193 = vmatpush1.msra.mxu0 %v1147
  %1194 = vmatprep.subr.mxu0 %v1151
  %1195 = vmatpush1.msra.mxu0 %v1150
  %1196 = vmatprep.subr.mxu0 %v1154
  %1197 = vmatpush1.msra.mxu0 %v1153
  %1198 = vmatprep.subr.mxu0 %v1157
  %1199 = vmatpush1.msra.mxu0 %v1156
  %1200 = vmatprep.subr.mxu0 %v1160
  %1201 = vmatpush1.msra.mxu0 %v1159
  %1202 = vmatprep.subr.mxu0 %v1163
  %1203 = vmatpush1.msra.mxu0 %v1162
  %1204 = vmatprep.subr.mxu0 %v1166
  %1205 = vmatpush1.msra.mxu0 %v1165
  %1206 = vmatprep.subr.mxu0 %v1169
  %1207 = vmatpush1.msra.mxu0 %v1168
  %1208 = vmatprep.subr.mxu0 %v1172
  %1209 = vmatpush1.msra.mxu0 %v1171
  %1210 = vmatprep.subr.mxu0 %v1175
  %1211 = vmatpush1.msra.mxu0 %v1174
  %1212 = vmatprep.subr.mxu0 %v1178
  %1213 = vmatpush1.msra.mxu0 %v1177
  %1214 = vmatprep.subr.mxu0 %v1181
  %1215 = vmatpush1.msra.mxu0 %v1180
  %1216 = vmatprep.subr.mxu0 %v1184
  %1217 = vmatpush1.msra.mxu0 %v1183
  %1218 = vmatprep.subr.mxu0 0.0
  %1219 = vmatpush1.msra.mxu0 0.0
  %1220 = vmatprep.subr.mxu0 0.0
  %1221 = vmatpush1.msra.mxu0 0.0
  %1222 = vmatprep.subr.mxu0 0.0
  %1223 = vmatpush1.msra.mxu0 0.0
  %1224 = vmatprep.subr.mxu0 0.0
  %1225 = vmatpush1.msra.mxu0 0.0
  %1226 = vmatprep.subr.mxu0 0.0
  %1227 = vmatpush1.msra.mxu0 0.0
  %1228 = vmatprep.subr.mxu0 0.0
  %1229 = vmatpush1.msra.mxu0 0.0
  %1230 = vmatprep.subr.mxu0 0.0
  %1231 = vmatpush1.msra.mxu0 0.0
  %1232 = vmatprep.subr.mxu0 0.0
  %1233 = vmatpush1.msra.mxu0 0.0
  %1234 = vmatprep.subr.mxu0 0.0
  %1235 = vmatpush1.msra.mxu0 0.0
  %1236 = vmatprep.subr.mxu0 0.0
  %1237 = vmatpush1.msra.mxu0 0.0
  %1238 = vmatprep.subr.mxu0 0.0
  %1239 = vmatpush1.msra.mxu0 0.0
  %1240 = vmatprep.subr.mxu0 0.0
  %1241 = vmatpush1.msra.mxu0 0.0
  %1242 = vmatprep.subr.mxu0 0.0
  %1243 = vmatpush1.msra.mxu0 0.0
  %1244 = vmatprep.subr.mxu0 0.0
  %1245 = vmatpush1.msra.mxu0 0.0
  %1246 = vmatprep.subr.mxu0 0.0
  %1247 = vmatpush1.msra.mxu0 0.0
  %1248 = vmatprep.subr.mxu0 0.0
  %1249 = vmatpush1.msra.mxu0 0.0
  %1250 = vmatprep.mubr.f32.mxu0 0.0
  %1251 = vmatmul.mubr.f32.gmra.mrb[0].mxu0 %v1133
  %v1252 = vpop.f32.mrb[0].mxu0
  %v1253 = vadd.f32 %v30, %v1252
  %v1254 = vpop.f32.mrb[0].mxu0
  %v1255 = vadd.f32 %v34, %v1254
  %1256 = vdwg.mxu0
  %1257 = vmatprep.subr.mxu0 0.0
  %1258 = vmatpush1.msra.mxu0 %v1140
  %1259 = vmatprep.subr.mxu0 0.0
  %1260 = vmatpush1.msra.mxu0 %v1143
  %1261 = vmatprep.subr.mxu0 0.0
  %1262 = vmatpush1.msra.mxu0 %v1146
  %1263 = vmatprep.subr.mxu0 0.0
  %1264 = vmatpush1.msra.mxu0 %v1149
  %1265 = vmatprep.subr.mxu0 0.0
  %1266 = vmatpush1.msra.mxu0 %v1152
  %1267 = vmatprep.subr.mxu0 0.0
  %1268 = vmatpush1.msra.mxu0 %v1155
  %1269 = vmatprep.subr.mxu0 0.0
  %1270 = vmatpush1.msra.mxu0 %v1158
  %1271 = vmatprep.subr.mxu0 0.0
  %1272 = vmatpush1.msra.mxu0 %v1161
  %1273 = vmatprep.subr.mxu0 0.0
  %1274 = vmatpush1.msra.mxu0 %v1164
  %1275 = vmatprep.subr.mxu0 0.0
  %1276 = vmatpush1.msra.mxu0 %v1167
  %1277 = vmatprep.subr.mxu0 0.0
  %1278 = vmatpush1.msra.mxu0 %v1170
  %1279 = vmatprep.subr.mxu0 0.0
  %1280 = vmatpush1.msra.mxu0 %v1173
  %1281 = vmatprep.subr.mxu0 0.0
  %1282 = vmatpush1.msra.mxu0 %v1176
  %1283 = vmatprep.subr.mxu0 0.0
  %1284 = vmatpush1.msra.mxu0 %v1179
  %1285 = vmatprep.subr.mxu0 0.0
  %1286 = vmatpush1.msra.mxu0 %v1182
  %1287 = vmatprep.subr.mxu0 0.0
  %1288 = vmatpush1.msra.mxu0 %v1185
  %1289 = vmatprep.subr.mxu0 0.0
  %1290 = vmatpush1.msra.mxu0 0.0
  %1291 = vmatprep.subr.mxu0 0.0
  %1292 = vmatpush1.msra.mxu0 0.0
  %1293 = vmatprep.subr.mxu0 0.0
  %1294 = vmatpush1.msra.mxu0 0.0
  %1295 = vmatprep.subr.mxu0 0.0
  %1296 = vmatpush1.msra.mxu0 0.0
  %1297 = vmatprep.subr.mxu0 0.0
  %1298 = vmatpush1.msra.mxu0 0.0
  %1299 = vmatprep.subr.mxu0 0.0
  %1300 = vmatpush1.msra.mxu0 0.0
  %1301 = vmatprep.subr.mxu0 0.0
  %1302 = vmatpush1.msra.mxu0 0.0
  %1303 = vmatprep.subr.mxu0 0.0
  %1304 = vmatpush1.msra.mxu0 0.0
  %1305 = vmatprep.subr.mxu0 0.0
  %1306 = vmatpush1.msra.mxu0 0.0
  %1307 = vmatprep.subr.mxu0 0.0
  %1308 = vmatpush1.msra.mxu0 0.0
  %1309 = vmatprep.subr.mxu0 0.0
  %1310 = vmatpush1.msra.mxu0 0.0
  %1311 = vmatprep.subr.mxu0 0.0
  %1312 = vmatpush1.msra.mxu0 0.0
  %1313 = vmatprep.subr.mxu0 0.0
  %1314 = vmatpush1.msra.mxu0 0.0
  %1315 = vmatprep.subr.mxu0 0.0
  %1316 = vmatpush1.msra.mxu0 0.0
  %1317 = vmatprep.subr.mxu0 0.0
  %1318 = vmatpush1.msra.mxu0 0.0
  %1319 = vmatprep.subr.mxu0 0.0
  %1320 = vmatpush1.msra.mxu0 0.0
  %1321 = vmatprep.mubr.f32.mxu0 0.0
  %1322 = vmatmul.mubr.f32.gmra.mrb[0].mxu0 %v1133
  %v1323 = vpop.f32.mrb[0].mxu0
  %v1324 = vadd.f32 %v38, %v1323
  %v1325 = vpop.f32.mrb[0].mxu0
  %1326 = vdwg.mxu0
  %v1327 = vadd.f32 %v1137, %v1253
  %v1328 = vxor.u32 %v1327, 2147483648
  %v1329 = vmul.f32 %v1328, 1.442695
  %v1330 = vpow.pop %v1329
  %v1331 = vadd.f32 %v1330, 1.0
  %v1332 = vrcp.pop %v1331
  %v1333 = vmul.f32 1.0, %v1332
  %v1335 = vrot.slane %v1137, 2
  %v1337 = vadd.f32 %v1335, %v1255
  %v1338 = vxor.u32 %v1337, 2147483648
  %v1339 = vmul.f32 %v1338, 1.442695
  %v1340 = vpow.pop %v1339
  %v1341 = vadd.f32 %v1340, 1.0
  %v1342 = vrcp.pop %v1341
  %v1343 = vmul.f32 1.0, %v1342
  %v1344 = vmul.f32 %v1333, %v1324
  %v1345 = vrot.slane %v1137, 4
  %v1347 = vadd.f32 %v1345, %v1344
  %v1348 = vtanh.pop %v1347
  %v1349 = vsub.f32 1.0, %v1343
  %v1350 = vmul.f32 %v1349, %v1348
  %v1351 = vmul.f32 %v1343, %v1133
  %v1352 = vadd.f32 %v1350, %v1351
  %s1353 = scalar_lea.vmem %s4, 10
  %1354 = vst [vmem:[%s1353] sm:$0x3] %v1352
  %s1355 = scalar_lea.vmem %s0, 36
  %v1356 = vld [vmem:[%s1355] sm:$0x3f]
  %v1357 = vld [vmem:[%s1] sm:$0xff]
  %v1358 = vld [vmem:[%s1 + $0x8] sm:$0xff]
  %v1359 = vld [vmem:[%s1 + $0x10] sm:$0xff]
  %v1360 = vld [vmem:[%s1 + $0x18] sm:$0xff]
  %v1361 = vld [vmem:[%s1 + $0x20] sm:$0xff]
  %v1362 = vld [vmem:[%s1 + $0x28] sm:$0xff]
  %v1363 = vld [vmem:[%s1 + $0x30] sm:$0xff]
  %v1364 = vld [vmem:[%s1 + $0x38] sm:$0xff]
  %v1365 = vld [vmem:[%s1 + $0x40] sm:$0xff]
  %v1366 = vld [vmem:[%s1 + $0x48] sm:$0xff]
  %v1367 = vld [vmem:[%s1 + $0x50] sm:$0xff]
  %v1368 = vld [vmem:[%s1 + $0x58] sm:$0xff]
  %v1369 = vld [vmem:[%s1 + $0x60] sm:$0xff]
  %v1370 = vld [vmem:[%s1 + $0x68] sm:$0xff]
  %v1371 = vld [vmem:[%s1 + $0x70] sm:$0xff]
  %v1372 = vld [vmem:[%s1 + $0x78] sm:$0xff]
  %v1373 = vld [vmem:[%s1 + $0x80] sm:$0xff]
  %v1374 = vld [vmem:[%s1 + $0x88] sm:$0xff]
  %v1375 = vld [vmem:[%s1 + $0x90] sm:$0xff]
  %v1376 = vld [vmem:[%s1 + $0x98] sm:$0xff]
  %v1377 = vld [vmem:[%s1 + $0xa0] sm:$0xff]
  %v1378 = vld [vmem:[%s1 + $0xa8] sm:$0xff]
  %v1379 = vld [vmem:[%s1 + $0xb0] sm:$0xff]
  %v1380 = vld [vmem:[%s1 + $0xb8] sm:$0xff]
  %v1381 = vld [vmem:[%s1 + $0xc0] sm:$0xff]
  %v1382 = vld [vmem:[%s1 + $0xc8] sm:$0xff]
  %v1383 = vld [vmem:[%s1 + $0xd0] sm:$0xff]
  %v1384 = vld [vmem:[%s1 + $0xd8] sm:$0xff]
  %v1385 = vld [vmem:[%s1 + $0xe0] sm:$0xff]
  %v1386 = vld [vmem:[%s1 + $0xe8] sm:$0xff]
  %v1387 = vld [vmem:[%s1 + $0xf0] sm:$0xff]
  %v1388 = vld [vmem:[%s1 + $0xf8] sm:$0xff]
  %v1389 = vld [vmem:[%s1 + $0x100] sm:$0xff]
  %v1390 = vld [vmem:[%s1 + $0x108] sm:$0xff]
  %v1391 = vld [vmem:[%s1 + $0x110] sm:$0xff]
  %v1392 = vld [vmem:[%s1 + $0x118] sm:$0xff]
  %v1393 = vld [vmem:[%s1 + $0x120] sm:$0xff]
  %v1394 = vld [vmem:[%s1 + $0x128] sm:$0xff]
  %v1395 = vld [vmem:[%s1 + $0x130] sm:$0xff]
  %v1396 = vld [vmem:[%s1 + $0x138] sm:$0xff]
  %v1397 = vld [vmem:[%s1 + $0x140] sm:$0xff]
  %v1398 = vld [vmem:[%s1 + $0x148] sm:$0xff]
  %v1399 = vld [vmem:[%s1 + $0x150] sm:$0xff]
  %v1400 = vld [vmem:[%s1 + $0x158] sm:$0xff]
  %v1401 = vld [vmem:[%s1 + $0x160] sm:$0xff]
  %v1402 = vld [vmem:[%s1 + $0x168] sm:$0xff]
  %v1403 = vld [vmem:[%s1 + $0x170] sm:$0xff]
  %v1404 = vld [vmem:[%s1 + $0x178] sm:$0xff]
  %1405 = vmatprep.subr.mxu0 %v1358
  %1406 = vmatpush1.msra.mxu0 %v1357
  %1407 = vmatprep.subr.mxu0 %v1361
  %1408 = vmatpush1.msra.mxu0 %v1360
  %1409 = vmatprep.subr.mxu0 %v1364
  %1410 = vmatpush1.msra.mxu0 %v1363
  %1411 = vmatprep.subr.mxu0 %v1367
  %1412 = vmatpush1.msra.mxu0 %v1366
  %1413 = vmatprep.subr.mxu0 %v1370
  %1414 = vmatpush1.msra.mxu0 %v1369
  %1415 = vmatprep.subr.mxu0 %v1373
  %1416 = vmatpush1.msra.mxu0 %v1372
  %1417 = vmatprep.subr.mxu0 %v1376
  %1418 = vmatpush1.msra.mxu0 %v1375
  %1419 = vmatprep.subr.mxu0 %v1379
  %1420 = vmatpush1.msra.mxu0 %v1378
  %1421 = vmatprep.subr.mxu0 %v1382
  %1422 = vmatpush1.msra.mxu0 %v1381
  %1423 = vmatprep.subr.mxu0 %v1385
  %1424 = vmatpush1.msra.mxu0 %v1384
  %1425 = vmatprep.subr.mxu0 %v1388
  %1426 = vmatpush1.msra.mxu0 %v1387
  %1427 = vmatprep.subr.mxu0 %v1391
  %1428 = vmatpush1.msra.mxu0 %v1390
  %1429 = vmatprep.subr.mxu0 %v1394
  %1430 = vmatpush1.msra.mxu0 %v1393
  %1431 = vmatprep.subr.mxu0 %v1397
  %1432 = vmatpush1.msra.mxu0 %v1396
  %1433 = vmatprep.subr.mxu0 %v1400
  %1434 = vmatpush1.msra.mxu0 %v1399
  %1435 = vmatprep.subr.mxu0 %v1403
  %1436 = vmatpush1.msra.mxu0 %v1402
  %1437 = vmatprep.subr.mxu0 0.0
  %1438 = vmatpush1.msra.mxu0 0.0
  %1439 = vmatprep.subr.mxu0 0.0
  %1440 = vmatpush1.msra.mxu0 0.0
  %1441 = vmatprep.subr.mxu0 0.0
  %1442 = vmatpush1.msra.mxu0 0.0
  %1443 = vmatprep.subr.mxu0 0.0
  %1444 = vmatpush1.msra.mxu0 0.0
  %1445 = vmatprep.subr.mxu0 0.0
  %1446 = vmatpush1.msra.mxu0 0.0
  %1447 = vmatprep.subr.mxu0 0.0
  %1448 = vmatpush1.msra.mxu0 0.0
  %1449 = vmatprep.subr.mxu0 0.0
  %1450 = vmatpush1.msra.mxu0 0.0
  %1451 = vmatprep.subr.mxu0 0.0
  %1452 = vmatpush1.msra.mxu0 0.0
  %1453 = vmatprep.subr.mxu0 0.0
  %1454 = vmatpush1.msra.mxu0 0.0
  %1455 = vmatprep.subr.mxu0 0.0
  %1456 = vmatpush1.msra.mxu0 0.0
  %1457 = vmatprep.subr.mxu0 0.0
  %1458 = vmatpush1.msra.mxu0 0.0
  %1459 = vmatprep.subr.mxu0 0.0
  %1460 = vmatpush1.msra.mxu0 0.0
  %1461 = vmatprep.subr.mxu0 0.0
  %1462 = vmatpush1.msra.mxu0 0.0
  %1463 = vmatprep.subr.mxu0 0.0
  %1464 = vmatpush1.msra.mxu0 0.0
  %1465 = vmatprep.subr.mxu0 0.0
  %1466 = vmatpush1.msra.mxu0 0.0
  %1467 = vmatprep.subr.mxu0 0.0
  %1468 = vmatpush1.msra.mxu0 0.0
  %1469 = vmatprep.mubr.f32.mxu0 0.0
  %1470 = vmatmul.mubr.f32.gmra.mrb[0].mxu0 %v1352
  %v1471 = vpop.f32.mrb[0].mxu0
  %v1472 = vadd.f32 %v30, %v1471
  %v1473 = vpop.f32.mrb[0].mxu0
  %v1474 = vadd.f32 %v34, %v1473
  %1475 = vdwg.mxu0
  %1476 = vmatprep.subr.mxu0 0.0
  %1477 = vmatpush1.msra.mxu0 %v1359
  %1478 = vmatprep.subr.mxu0 0.0
  %1479 = vmatpush1.msra.mxu0 %v1362
  %1480 = vmatprep.subr.mxu0 0.0
  %1481 = vmatpush1.msra.mxu0 %v1365
  %1482 = vmatprep.subr.mxu0 0.0
  %1483 = vmatpush1.msra.mxu0 %v1368
  %1484 = vmatprep.subr.mxu0 0.0
  %1485 = vmatpush1.msra.mxu0 %v1371
  %1486 = vmatprep.subr.mxu0 0.0
  %1487 = vmatpush1.msra.mxu0 %v1374
  %1488 = vmatprep.subr.mxu0 0.0
  %1489 = vmatpush1.msra.mxu0 %v1377
  %1490 = vmatprep.subr.mxu0 0.0
  %1491 = vmatpush1.msra.mxu0 %v1380
  %1492 = vmatprep.subr.mxu0 0.0
  %1493 = vmatpush1.msra.mxu0 %v1383
  %1494 = vmatprep.subr.mxu0 0.0
  %1495 = vmatpush1.msra.mxu0 %v1386
  %1496 = vmatprep.subr.mxu0 0.0
  %1497 = vmatpush1.msra.mxu0 %v1389
  %1498 = vmatprep.subr.mxu0 0.0
  %1499 = vmatpush1.msra.mxu0 %v1392
  %1500 = vmatprep.subr.mxu0 0.0
  %1501 = vmatpush1.msra.mxu0 %v1395
  %1502 = vmatprep.subr.mxu0 0.0
  %1503 = vmatpush1.msra.mxu0 %v1398
  %1504 = vmatprep.subr.mxu0 0.0
  %1505 = vmatpush1.msra.mxu0 %v1401
  %1506 = vmatprep.subr.mxu0 0.0
  %1507 = vmatpush1.msra.mxu0 %v1404
  %1508 = vmatprep.subr.mxu0 0.0
  %1509 = vmatpush1.msra.mxu0 0.0
  %1510 = vmatprep.subr.mxu0 0.0
  %1511 = vmatpush1.msra.mxu0 0.0
  %1512 = vmatprep.subr.mxu0 0.0
  %1513 = vmatpush1.msra.mxu0 0.0
  %1514 = vmatprep.subr.mxu0 0.0
  %1515 = vmatpush1.msra.mxu0 0.0
  %1516 = vmatprep.subr.mxu0 0.0
  %1517 = vmatpush1.msra.mxu0 0.0
  %1518 = vmatprep.subr.mxu0 0.0
  %1519 = vmatpush1.msra.mxu0 0.0
  %1520 = vmatprep.subr.mxu0 0.0
  %1521 = vmatpush1.msra.mxu0 0.0
  %1522 = vmatprep.subr.mxu0 0.0
  %1523 = vmatpush1.msra.mxu0 0.0
  %1524 = vmatprep.subr.mxu0 0.0
  %1525 = vmatpush1.msra.mxu0 0.0
  %1526 = vmatprep.subr.mxu0 0.0
  %1527 = vmatpush1.msra.mxu0 0.0
  %1528 = vmatprep.subr.mxu0 0.0
  %1529 = vmatpush1.msra.mxu0 0.0
  %1530 = vmatprep.subr.mxu0 0.0
  %1531 = vmatpush1.msra.mxu0 0.0
  %1532 = vmatprep.subr.mxu0 0.0
  %1533 = vmatpush1.msra.mxu0 0.0
  %1534 = vmatprep.subr.mxu0 0.0
  %1535 = vmatpush1.msra.mxu0 0.0
  %1536 = vmatprep.subr.mxu0 0.0
  %1537 = vmatpush1.msra.mxu0 0.0
  %1538 = vmatprep.subr.mxu0 0.0
  %1539 = vmatpush1.msra.mxu0 0.0
  %1540 = vmatprep.mubr.f32.mxu0 0.0
  %1541 = vmatmul.mubr.f32.gmra.mrb[0].mxu0 %v1352
  %v1542 = vpop.f32.mrb[0].mxu0
  %v1543 = vadd.f32 %v38, %v1542
  %v1544 = vpop.f32.mrb[0].mxu0
  %1545 = vdwg.mxu0
  %v1546 = vadd.f32 %v1356, %v1472
  %v1547 = vxor.u32 %v1546, 2147483648
  %v1548 = vmul.f32 %v1547, 1.442695
  %v1549 = vpow.pop %v1548
  %v1550 = vadd.f32 %v1549, 1.0
  %v1551 = vrcp.pop %v1550
  %v1552 = vmul.f32 1.0, %v1551
  %v1554 = vrot.slane %v1356, 2
  %v1556 = vadd.f32 %v1554, %v1474
  %v1557 = vxor.u32 %v1556, 2147483648
  %v1558 = vmul.f32 %v1557, 1.442695
  %v1559 = vpow.pop %v1558
  %v1560 = vadd.f32 %v1559, 1.0
  %v1561 = vrcp.pop %v1560
  %v1562 = vmul.f32 1.0, %v1561
  %v1563 = vmul.f32 %v1552, %v1543
  %v1564 = vrot.slane %v1356, 4
  %v1566 = vadd.f32 %v1564, %v1563
  %v1567 = vtanh.pop %v1566
  %v1568 = vsub.f32 1.0, %v1562
  %v1569 = vmul.f32 %v1568, %v1567
  %v1570 = vmul.f32 %v1562, %v1352
  %v1571 = vadd.f32 %v1569, %v1570
  %s1572 = scalar_lea.vmem %s4, 12
  %1573 = vst [vmem:[%s1572] sm:$0x3] %v1571
  %s1574 = scalar_lea.vmem %s0, 42
  %v1575 = vld [vmem:[%s1574] sm:$0x3f]
  %v1576 = vld [vmem:[%s1] sm:$0xff]
  %v1577 = vld [vmem:[%s1 + $0x8] sm:$0xff]
  %v1578 = vld [vmem:[%s1 + $0x10] sm:$0xff]
  %v1579 = vld [vmem:[%s1 + $0x18] sm:$0xff]
  %v1580 = vld [vmem:[%s1 + $0x20] sm:$0xff]
  %v1581 = vld [vmem:[%s1 + $0x28] sm:$0xff]
  %v1582 = vld [vmem:[%s1 + $0x30] sm:$0xff]
  %v1583 = vld [vmem:[%s1 + $0x38] sm:$0xff]
  %v1584 = vld [vmem:[%s1 + $0x40] sm:$0xff]
  %v1585 = vld [vmem:[%s1 + $0x48] sm:$0xff]
  %v1586 = vld [vmem:[%s1 + $0x50] sm:$0xff]
  %v1587 = vld [vmem:[%s1 + $0x58] sm:$0xff]
  %v1588 = vld [vmem:[%s1 + $0x60] sm:$0xff]
  %v1589 = vld [vmem:[%s1 + $0x68] sm:$0xff]
  %v1590 = vld [vmem:[%s1 + $0x70] sm:$0xff]
  %v1591 = vld [vmem:[%s1 + $0x78] sm:$0xff]
  %v1592 = vld [vmem:[%s1 + $0x80] sm:$0xff]
  %v1593 = vld [vmem:[%s1 + $0x88] sm:$0xff]
  %v1594 = vld [vmem:[%s1 + $0x90] sm:$0xff]
  %v1595 = vld [vmem:[%s1 + $0x98] sm:$0xff]
  %v1596 = vld [vmem:[%s1 + $0xa0] sm:$0xff]
  %v1597 = vld [vmem:[%s1 + $0xa8] sm:$0xff]
  %v1598 = vld [vmem:[%s1 + $0xb0] sm:$0xff]
  %v1599 = vld [vmem:[%s1 + $0xb8] sm:$0xff]
  %v1600 = vld [vmem:[%s1 + $0xc0] sm:$0xff]
  %v1601 = vld [vmem:[%s1 + $0xc8] sm:$0xff]
  %v1602 = vld [vmem:[%s1 + $0xd0] sm:$0xff]
  %v1603 = vld [vmem:[%s1 + $0xd8] sm:$0xff]
  %v1604 = vld [vmem:[%s1 + $0xe0] sm:$0xff]
  %v1605 = vld [vmem:[%s1 + $0xe8] sm:$0xff]
  %v1606 = vld [vmem:[%s1 + $0xf0] sm:$0xff]
  %v1607 = vld [vmem:[%s1 + $0xf8] sm:$0xff]
  %v1608 = vld [vmem:[%s1 + $0x100] sm:$0xff]
  %v1609 = vld [vmem:[%s1 + $0x108] sm:$0xff]
  %v1610 = vld [vmem:[%s1 + $0x110] sm:$0xff]
  %v1611 = vld [vmem:[%s1 + $0x118] sm:$0xff]
  %v1612 = vld [vmem:[%s1 + $0x120] sm:$0xff]
  %v1613 = vld [vmem:[%s1 + $0x128] sm:$0xff]
  %v1614 = vld [vmem:[%s1 + $0x130] sm:$0xff]
  %v1615 = vld [vmem:[%s1 + $0x138] sm:$0xff]
  %v1616 = vld [vmem:[%s1 + $0x140] sm:$0xff]
  %v1617 = vld [vmem:[%s1 + $0x148] sm:$0xff]
  %v1618 = vld [vmem:[%s1 + $0x150] sm:$0xff]
  %v1619 = vld [vmem:[%s1 + $0x158] sm:$0xff]
  %v1620 = vld [vmem:[%s1 + $0x160] sm:$0xff]
  %v1621 = vld [vmem:[%s1 + $0x168] sm:$0xff]
  %v1622 = vld [vmem:[%s1 + $0x170] sm:$0xff]
  %v1623 = vld [vmem:[%s1 + $0x178] sm:$0xff]
  %1624 = vmatprep.subr.mxu0 %v1577
  %1625 = vmatpush1.msra.mxu0 %v1576
  %1626 = vmatprep.subr.mxu0 %v1580
  %1627 = vmatpush1.msra.mxu0 %v1579
  %1628 = vmatprep.subr.mxu0 %v1583
  %1629 = vmatpush1.msra.mxu0 %v1582
  %1630 = vmatprep.subr.mxu0 %v1586
  %1631 = vmatpush1.msra.mxu0 %v1585
  %1632 = vmatprep.subr.mxu0 %v1589
  %1633 = vmatpush1.msra.mxu0 %v1588
  %1634 = vmatprep.subr.mxu0 %v1592
  %1635 = vmatpush1.msra.mxu0 %v1591
  %1636 = vmatprep.subr.mxu0 %v1595
  %1637 = vmatpush1.msra.mxu0 %v1594
  %1638 = vmatprep.subr.mxu0 %v1598
  %1639 = vmatpush1.msra.mxu0 %v1597
  %1640 = vmatprep.subr.mxu0 %v1601
  %1641 = vmatpush1.msra.mxu0 %v1600
  %1642 = vmatprep.subr.mxu0 %v1604
  %1643 = vmatpush1.msra.mxu0 %v1603
  %1644 = vmatprep.subr.mxu0 %v1607
  %1645 = vmatpush1.msra.mxu0 %v1606
  %1646 = vmatprep.subr.mxu0 %v1610
  %1647 = vmatpush1.msra.mxu0 %v1609
  %1648 = vmatprep.subr.mxu0 %v1613
  %1649 = vmatpush1.msra.mxu0 %v1612
  %1650 = vmatprep.subr.mxu0 %v1616
  %1651 = vmatpush1.msra.mxu0 %v1615
  %1652 = vmatprep.subr.mxu0 %v1619
  %1653 = vmatpush1.msra.mxu0 %v1618
  %1654 = vmatprep.subr.mxu0 %v1622
  %1655 = vmatpush1.msra.mxu0 %v1621
  %1656 = vmatprep.subr.mxu0 0.0
  %1657 = vmatpush1.msra.mxu0 0.0
  %1658 = vmatprep.subr.mxu0 0.0
  %1659 = vmatpush1.msra.mxu0 0.0
  %1660 = vmatprep.subr.mxu0 0.0
  %1661 = vmatpush1.msra.mxu0 0.0
  %1662 = vmatprep.subr.mxu0 0.0
  %1663 = vmatpush1.msra.mxu0 0.0
  %1664 = vmatprep.subr.mxu0 0.0
  %1665 = vmatpush1.msra.mxu0 0.0
  %1666 = vmatprep.subr.mxu0 0.0
  %1667 = vmatpush1.msra.mxu0 0.0
  %1668 = vmatprep.subr.mxu0 0.0
  %1669 = vmatpush1.msra.mxu0 0.0
  %1670 = vmatprep.subr.mxu0 0.0
  %1671 = vmatpush1.msra.mxu0 0.0
  %1672 = vmatprep.subr.mxu0 0.0
  %1673 = vmatpush1.msra.mxu0 0.0
  %1674 = vmatprep.subr.mxu0 0.0
  %1675 = vmatpush1.msra.mxu0 0.0
  %1676 = vmatprep.subr.mxu0 0.0
  %1677 = vmatpush1.msra.mxu0 0.0
  %1678 = vmatprep.subr.mxu0 0.0
  %1679 = vmatpush1.msra.mxu0 0.0
  %1680 = vmatprep.subr.mxu0 0.0
  %1681 = vmatpush1.msra.mxu0 0.0
  %1682 = vmatprep.subr.mxu0 0.0
  %1683 = vmatpush1.msra.mxu0 0.0
  %1684 = vmatprep.subr.mxu0 0.0
  %1685 = vmatpush1.msra.mxu0 0.0
  %1686 = vmatprep.subr.mxu0 0.0
  %1687 = vmatpush1.msra.mxu0 0.0
  %1688 = vmatprep.mubr.f32.mxu0 0.0
  %1689 = vmatmul.mubr.f32.gmra.mrb[0].mxu0 %v1571
  %v1690 = vpop.f32.mrb[0].mxu0
  %v1691 = vadd.f32 %v30, %v1690
  %v1692 = vpop.f32.mrb[0].mxu0
  %v1693 = vadd.f32 %v34, %v1692
  %1694 = vdwg.mxu0
  %1695 = vmatprep.subr.mxu0 0.0
  %1696 = vmatpush1.msra.mxu0 %v1578
  %1697 = vmatprep.subr.mxu0 0.0
  %1698 = vmatpush1.msra.mxu0 %v1581
  %1699 = vmatprep.subr.mxu0 0.0
  %1700 = vmatpush1.msra.mxu0 %v1584
  %1701 = vmatprep.subr.mxu0 0.0
  %1702 = vmatpush1.msra.mxu0 %v1587
  %1703 = vmatprep.subr.mxu0 0.0
  %1704 = vmatpush1.msra.mxu0 %v1590
  %1705 = vmatprep.subr.mxu0 0.0
  %1706 = vmatpush1.msra.mxu0 %v1593
  %1707 = vmatprep.subr.mxu0 0.0
  %1708 = vmatpush1.msra.mxu0 %v1596
  %1709 = vmatprep.subr.mxu0 0.0
  %1710 = vmatpush1.msra.mxu0 %v1599
  %1711 = vmatprep.subr.mxu0 0.0
  %1712 = vmatpush1.msra.mxu0 %v1602
  %1713 = vmatprep.subr.mxu0 0.0
  %1714 = vmatpush1.msra.mxu0 %v1605
  %1715 = vmatprep.subr.mxu0 0.0
  %1716 = vmatpush1.msra.mxu0 %v1608
  %1717 = vmatprep.subr.mxu0 0.0
  %1718 = vmatpush1.msra.mxu0 %v1611
  %1719 = vmatprep.subr.mxu0 0.0
  %1720 = vmatpush1.msra.mxu0 %v1614
  %1721 = vmatprep.subr.mxu0 0.0
  %1722 = vmatpush1.msra.mxu0 %v1617
  %1723 = vmatprep.subr.mxu0 0.0
  %1724 = vmatpush1.msra.mxu0 %v1620
  %1725 = vmatprep.subr.mxu0 0.0
  %1726 = vmatpush1.msra.mxu0 %v1623
  %1727 = vmatprep.subr.mxu0 0.0
  %1728 = vmatpush1.msra.mxu0 0.0
  %1729 = vmatprep.subr.mxu0 0.0
  %1730 = vmatpush1.msra.mxu0 0.0
  %1731 = vmatprep.subr.mxu0 0.0
  %1732 = vmatpush1.msra.mxu0 0.0
  %1733 = vmatprep.subr.mxu0 0.0
  %1734 = vmatpush1.msra.mxu0 0.0
  %1735 = vmatprep.subr.mxu0 0.0
  %1736 = vmatpush1.msra.mxu0 0.0
  %1737 = vmatprep.subr.mxu0 0.0
  %1738 = vmatpush1.msra.mxu0 0.0
  %1739 = vmatprep.subr.mxu0 0.0
  %1740 = vmatpush1.msra.mxu0 0.0
  %1741 = vmatprep.subr.mxu0 0.0
  %1742 = vmatpush1.msra.mxu0 0.0
  %1743 = vmatprep.subr.mxu0 0.0
  %1744 = vmatpush1.msra.mxu0 0.0
  %1745 = vmatprep.subr.mxu0 0.0
  %1746 = vmatpush1.msra.mxu0 0.0
  %1747 = vmatprep.subr.mxu0 0.0
  %1748 = vmatpush1.msra.mxu0 0.0
  %1749 = vmatprep.subr.mxu0 0.0
  %1750 = vmatpush1.msra.mxu0 0.0
  %1751 = vmatprep.subr.mxu0 0.0
  %1752 = vmatpush1.msra.mxu0 0.0
  %1753 = vmatprep.subr.mxu0 0.0
  %1754 = vmatpush1.msra.mxu0 0.0
  %1755 = vmatprep.subr.mxu0 0.0
  %1756 = vmatpush1.msra.mxu0 0.0
  %1757 = vmatprep.subr.mxu0 0.0
  %1758 = vmatpush1.msra.mxu0 0.0
  %1759 = vmatprep.mubr.f32.mxu0 0.0
  %1760 = vmatmul.mubr.f32.gmra.mrb[0].mxu0 %v1571
  %v1761 = vpop.f32.mrb[0].mxu0
  %v1762 = vadd.f32 %v38, %v1761
  %v1763 = vpop.f32.mrb[0].mxu0
  %1764 = vdwg.mxu0
  %v1765 = vadd.f32 %v1575, %v1691
  %v1766 = vxor.u32 %v1765, 2147483648
  %v1767 = vmul.f32 %v1766, 1.442695
  %v1768 = vpow.pop %v1767
  %v1769 = vadd.f32 %v1768, 1.0
  %v1770 = vrcp.pop %v1769
  %v1771 = vmul.f32 1.0, %v1770
  %v1773 = vrot.slane %v1575, 2
  %v1775 = vadd.f32 %v1773, %v1693
  %v1776 = vxor.u32 %v1775, 2147483648
  %v1777 = vmul.f32 %v1776, 1.442695
  %v1778 = vpow.pop %v1777
  %v1779 = vadd.f32 %v1778, 1.0
  %v1780 = vrcp.pop %v1779
  %v1781 = vmul.f32 1.0, %v1780
  %v1782 = vmul.f32 %v1771, %v1762
  %v1783 = vrot.slane %v1575, 4
  %v1785 = vadd.f32 %v1783, %v1782
  %v1786 = vtanh.pop %v1785
  %v1787 = vsub.f32 1.0, %v1781
  %v1788 = vmul.f32 %v1787, %v1786
  %v1789 = vmul.f32 %v1781, %v1571
  %v1790 = vadd.f32 %v1788, %v1789
  %s1791 = scalar_lea.vmem %s4, 14
  %1792 = vst [vmem:[%s1791] sm:$0x3] %v1790
  %1793 = vst [vmem:[#allocation2] sm:$0x3] %v1790
  // Predicated region
  $region22: #{recnet_forward.8} parent=0 // pred_check
    %p1794 = pneg %p19
  $region23: #{recnet_forward.8} parent=0 // pred_check_branch
    %1796 = sbr.rel (%p1794) target = $region25
  $region24: #{recnet_forward.8} parent=0 // pred_region
    %1797 = vst [vmem:[%s5] sm:$0x3] %v1790
  $region25: #{recnet_forward.8} parent=0 // pred_fallthru
    _
  // Predicated region
  $region26: #{recnet_forward.8} parent=0 // pred_check
    _
  $region27: #{recnet_forward.8} parent=0 // pred_check_branch
    %1799 = sbr.rel (0) target = $region29
  $region28: #{recnet_forward.8} parent=0 // pred_region
    _
  $region29: #{recnet_forward.8} parent=0 // pred_fallthru
    _
  // Predicated region
  $region30: #{recnet_forward.8} parent=0 // pred_check
    _
  $region31: #{recnet_forward.8} parent=0 // pred_check_branch
    %1801 = sbr.rel (0) target = $region33
  $region32: #{recnet_forward.8} parent=0 // pred_region
    _
  $region33: #{recnet_forward.8} parent=0 // pred_fallthru
    _
  // Predicated region
  $region34: #{recnet_forward.8} parent=0 // pred_check
    _
  $region35: #{recnet_forward.8} parent=0 // pred_check_branch
    %1803 = sbr.rel (0) target = $region37
  $region36: #{recnet_forward.8} parent=0 // pred_region
    _
  $region37: #{recnet_forward.8} parent=0 // pred_fallthru
    _
  // Predicated region
  $region38: #{recnet_forward.8} parent=0 // pred_check
    _
  $region39: #{recnet_forward.8} parent=0 // pred_check_branch
    %1805 = sbr.rel (0) target = $region41
  $region40: #{recnet_forward.8} parent=0 // pred_region
    _
  $region41: #{recnet_forward.8} parent=0 // pred_fallthru
    _

</llo_original>
